<compile_context>
chip_gen: v6e
topology: v6e:2x2x1
jax: 0.10.0
libtpu: 0.0.40
codegen_flags: <defaults>
</compile_context>

<pallas_src>
import numpy as np
import jax
import jax.numpy as jnp
from jax.experimental import pallas as pl
from jax.experimental.pallas import tpu as pltpu


# ----------------------------------------------------------------------------
# Synthetic cfg (same dict schema parse_cfg would produce, no file I/O).
# Exercises every layer type of Darknet.forward: convolutional (bn+leaky and
# linear+bias), shortcut, route (single & concat), upsample, yolo.
# ----------------------------------------------------------------------------
ANCHORS_STR = "10,13,16,30,33,23,30,61,62,45,59,119"

CFG_BLOCKS = [
    {"type": "net", "height": "32", "width": "32", "channels": "3"},
    # 0
    {"type": "convolutional", "batch_normalize": "1", "filters": "8",
     "size": "3", "stride": "1", "pad": "1", "activation": "leaky"},
    # 1
    {"type": "convolutional", "batch_normalize": "1", "filters": "16",
     "size": "3", "stride": "2", "pad": "1", "activation": "leaky"},
    # 2
    {"type": "convolutional", "batch_normalize": "1", "filters": "16",
     "size": "3", "stride": "1", "pad": "1", "activation": "leaky"},
    # 3
    {"type": "shortcut", "from": "-2", "activation": "linear"},
    # 4
    {"type": "convolutional", "batch_normalize": "1", "filters": "32",
     "size": "3", "stride": "2", "pad": "1", "activation": "leaky"},
    # 5  (3 anchors * (5 + 2 classes) = 21)
    {"type": "convolutional", "filters": "21",
     "size": "1", "stride": "1", "pad": "1", "activation": "linear"},
    # 6
    {"type": "yolo", "mask": "0,1,2", "anchors": ANCHORS_STR, "classes": "2"},
    # 7
    {"type": "route", "layers": "-3"},
    # 8
    {"type": "convolutional", "batch_normalize": "1", "filters": "16",
     "size": "1", "stride": "1", "pad": "1", "activation": "leaky"},
    # 9
    {"type": "upsample", "stride": "2"},
    # 10
    {"type": "route", "layers": "-1, -7"},
    # 11
    {"type": "convolutional", "filters": "21",
     "size": "3", "stride": "1", "pad": "1", "activation": "linear"},
    # 12
    {"type": "yolo", "mask": "3,4,5", "anchors": ANCHORS_STR, "classes": "2"},
]

BN_EPS = 1e-5


# ----------------------------------------------------------------------------
# Pallas kernels
# ----------------------------------------------------------------------------
def _make_conv_kernel(leaky):
    def kernel(w_ref, p_ref, shift_ref, o_ref):
        # bf16 is valid MXU input on v5e/v6e/v7x; accumulate and post-ops in f32.
        w = w_ref[...].astype(jnp.bfloat16)
        p = p_ref[...].astype(jnp.bfloat16)
        acc = jnp.dot(w, p, preferred_element_type=jnp.float32)   # (Cout, tm)
        y = acc + shift_ref[...]                                  # (Cout, 1) broadcast
        if leaky:
            y = jnp.where(y > 0, y, 0.1 * y)
        o_ref[...] = y
    return kernel


def _add_kernel(a_ref, b_ref, o_ref):
    o_ref[...] = a_ref[...] + b_ref[...]


def _upsample_kernel(x_ref, u_ref, o_ref):
    # out[C*B, Ho*Wo] = x[C*B, H*W] @ kron(Uh, Uw)^T  -> lane-dense output.
    o_ref[...] = jnp.dot(x_ref[...], u_ref[...], preferred_element_type=jnp.float32)


def _make_yolo_kernel(stride):
    stride = float(stride)

    def kernel(p_ref, off_ref, anc_ref, o_ref):
        p = p_ref[...]                                 # (A, attrs, M), lanes = M = B*G*G
        off = off_ref[...][None, :, :]                 # (1, attrs, M)
        anc = anc_ref[...]                             # (A, attrs, 1)
        attr = jax.lax.broadcasted_iota(jnp.int32, p.shape, 1)
        sig = 1.0 / (1.0 + jnp.exp(-p))
        val_xy = (sig + off) * stride                  # attrs 0,1
        val_wh = jnp.exp(p) * anc * stride             # attrs 2,3 (anchors already /stride)
        o_ref[...] = jnp.where(attr < 2, val_xy,
                               jnp.where(attr < 4, val_wh, sig))
    return kernel


# ----------------------------------------------------------------------------
# Layer wrappers (glue: reshape / patch extraction / parameter folding; compute in Pallas)
# ----------------------------------------------------------------------------
def _pick_tile(m, cap=2048):
    """Largest lane-dense tile (multiple of 128) dividing m, capped so large inputs still
    pipeline instead of blowing VMEM; falls back to a single full block (always legal)."""
    if m <= cap:
        return m
    t = cap - (cap % 128)
    while t >= 128:
        if m % t == 0:
            return t
        t -= 128
    return m


def conv2d_pallas(x_cbhw, weight, scale, shift, stride, pad, leaky):
    """x in (Cin, B, H, W); returns (Cout, B, Ho, Wo)."""
    Cin, B, H, W = x_cbhw.shape
    Cout, _, kH, kW = weight.shape

    if kH == 1 and kW == 1 and stride == 1 and pad == 0:
        Ho, Wo = H, W
        patches2d = x_cbhw.reshape(Cin, B * H * W)                 # K = Cin, no im2col op
    else:
        # Single XLA op for patch extraction; output already (K, B, Ho, Wo) -> no transposes.
        patches = jax.lax.conv_general_dilated_patches(
            x_cbhw, (kH, kW), (stride, stride),
            padding=[(pad, pad), (pad, pad)],
            dimension_numbers=("CNHW", "OIHW", "CNHW"))
        _, _, Ho, Wo = patches.shape
        patches2d = patches.reshape(Cin * kH * kW, B * Ho * Wo)    # K ordering = (Cin,kH,kW)

    K, M = patches2d.shape

    w2d = weight.reshape(Cout, Cin * kH * kW)
    if scale is not None:                                          # fold BN scale into weights
        w2d = w2d * scale[:, None]

    tm = _pick_tile(M)
    out2d = pl.pallas_call(
        _make_conv_kernel(leaky),
        out_shape=jax.ShapeDtypeStruct((Cout, M), jnp.float32),
        grid=(M // tm,),
        in_specs=[
            pl.BlockSpec((Cout, K), lambda i: (0, 0)),
            pl.BlockSpec((K, tm), lambda i: (0, i)),
            pl.BlockSpec((Cout, 1), lambda i: (0, 0)),
        ],
        out_specs=pl.BlockSpec((Cout, tm), lambda i: (0, i)),
        compiler_params=pltpu.CompilerParams(dimension_semantics=("parallel",)),
    )(w2d, patches2d, shift.reshape(Cout, 1))

    return out2d.reshape(Cout, B, Ho, Wo)


def _lane_dense_2d(size):
    for lanes in (2048, 1024, 512, 256, 128):
        if size % lanes == 0:
            return size // lanes, lanes
    return 1, size


def add_pallas(a, b):
    rows, lanes = _lane_dense_2d(a.size)
    out = pl.pallas_call(
        _add_kernel,
        out_shape=jax.ShapeDtypeStruct((rows, lanes), a.dtype),
    )(a.reshape(rows, lanes), b.reshape(rows, lanes))
    return out.reshape(a.shape)


def _bilinear_matrix(n_in, n_out):
    # align_corners=True mapping: src = o * (n_in - 1) / (n_out - 1)  (matches create_modules).
    src = np.arange(n_out, dtype=np.float64) * (n_in - 1) / max(n_out - 1, 1)
    i0 = np.clip(np.floor(src).astype(np.int64), 0, n_in - 1)
    i1 = np.clip(i0 + 1, 0, n_in - 1)
    w1 = (src - i0).astype(np.float32)
    U = np.zeros((n_out, n_in), np.float32)
    U[np.arange(n_out), i0] += (1.0 - w1)
    U[np.arange(n_out), i1] += w1
    return U


def upsample2x_pallas(x_cbhw):
    C, B, H, W = x_cbhw.shape
    Ho, Wo = 2 * H, 2 * W
    # One pallas_call, one GEMM, lane-dense output (Ho*Wo lanes).
    # TODO(synk): the kron matrix is O((H*W)^2); fine at these feature-map sizes, a 416x416
    #             net would use a separable two-GEMM formulation instead.
    u = np.kron(_bilinear_matrix(H, Ho), _bilinear_matrix(W, Wo)).T   # (H*W, Ho*Wo)
    out = pl.pallas_call(
        _upsample_kernel,
        out_shape=jax.ShapeDtypeStruct((C * B, Ho * Wo), jnp.float32),
    )(x_cbhw.reshape(C * B, H * W), jnp.asarray(u))
    return out.reshape(C, B, Ho, Wo)


def predict_transform_pallas(x_cbhw, inp_dim, anchors, num_classes):
    # Standard YOLOv3 predict_transform, computed lane-dense over M = B*G*G and transposed
    # to the torch (B, G*G*A, attrs) layout once at the end (tiny XLA transpose).
    Ctot, B, G, _ = x_cbhw.shape
    attrs = 5 + num_classes
    A = len(anchors)
    stride = inp_dim // G
    M = B * G * G

    p = x_cbhw.reshape(A, attrs, M)                  # channel = a*attrs + attr

    gy, gx = np.meshgrid(np.arange(G), np.arange(G), indexing="ij")
    off = np.zeros((attrs, M), np.float32)
    off[0] = np.tile(gx.reshape(-1), B)              # x offset per lane
    off[1] = np.tile(gy.reshape(-1), B)              # y offset per lane

    anc = np.zeros((A, attrs, 1), np.float32)
    for ai, (aw, ah) in enumerate(anchors):
        anc[ai, 2, 0] = aw / stride
        anc[ai, 3, 0] = ah / stride

    out = pl.pallas_call(
        _make_yolo_kernel(stride),
        out_shape=jax.ShapeDtypeStruct((A, attrs, M), jnp.float32),
    )(p, jnp.asarray(off), jnp.asarray(anc))

    det = out.reshape(A, attrs, B, G * G).transpose(2, 3, 0, 1)   # (B, G*G, A, attrs)
    return det.reshape(B, G * G * A, attrs)


# ----------------------------------------------------------------------------
# Parameter init (deterministic, mirrors create_modules' shape bookkeeping)
# ----------------------------------------------------------------------------
def init_darknet_params(blocks, key):
    params = []
    prev_filters = int(blocks[0].get("channels", 3))
    output_filters = []
    filters = prev_filters
    for index, b in enumerate(blocks[1:]):
        layer = {}
        t = b["type"]
        if t == "convolutional":
            bn = int(b.get("batch_normalize", 0))
            filters = int(b["filters"])
            ksize = int(b["size"])
            key, k1, k2, k3, k4, k5, k6 = jax.random.split(key, 7)
            layer["weight"] = 0.05 * jax.random.normal(
                k1, (filters, prev_filters, ksize, ksize), jnp.float32)
            if bn:
                layer["bn_gamma"] = 1.0 + 0.1 * jax.random.normal(k2, (filters,), jnp.float32)
                layer["bn_beta"] = 0.1 * jax.random.normal(k3, (filters,), jnp.float32)
                layer["bn_mean"] = 0.1 * jax.random.normal(k4, (filters,), jnp.float32)
                layer["bn_var"] = 1.0 + 0.1 * jnp.abs(jax.random.normal(k5, (filters,), jnp.float32))
            else:
                layer["bias"] = 0.1 * jax.random.normal(k6, (filters,), jnp.float32)
        elif t == "route":
            layers = [int(a) for a in b["layers"].split(",")]
            start = layers[0]
            end = layers[1] if len(layers) > 1 else 0
            if start > 0:
                start -= index
            if end > 0:
                end -= index
            if end < 0:
                filters = output_filters[index + start] + output_filters[index + end]
            else:
                filters = output_filters[index + start]
        # shortcut / upsample / yolo: filters unchanged (same as original code)
        params.append(layer)
        prev_filters = filters
        output_filters.append(filters)
    return params


# ----------------------------------------------------------------------------
# Darknet.forward equivalent (runs under jax.jit; activations stay in CBHW layout)
# ----------------------------------------------------------------------------
def darknet_forward(blocks, params, x_nchw):
    net_info = blocks[0]
    modules = blocks[1:]
    x = jnp.transpose(x_nchw, (1, 0, 2, 3))          # NCHW -> CBHW, once at the entry
    outputs = {}
    detections = None
    for i, module in enumerate(modules):
        t = module["type"]
        if t == "convolutional":
            p = params[i]
            bn = int(module.get("batch_normalize", 0))
            ksize = int(module["size"])
            stride = int(module["stride"])
            pad = (ksize - 1) // 2 if int(module["pad"]) else 0
            leaky = module["activation"] == "leaky"
            if bn:
                scale = p["bn_gamma"] / jnp.sqrt(p["bn_var"] + BN_EPS)
                shift = p["bn_beta"] - p["bn_mean"] * scale
            else:
                scale = None
                shift = p["bias"]
            x = conv2d_pallas(x, p["weight"], scale, shift, stride, pad, leaky)
        elif t == "upsample":
            x = upsample2x_pallas(x)
        elif t == "route":
            layers = [int(a) for a in module["layers"].split(",")]
            if layers[0] > 0:
                layers[0] -= i
            if len(layers) == 1:
                x = outputs[i + layers[0]]
            else:
                if layers[1] > 0:
                    layers[1] -= i
                # channel axis is 0 in CBHW layout
                x = jnp.concatenate([outputs[i + layers[0]], outputs[i + layers[1]]], axis=0)
        elif t == "shortcut":
            f = int(module["from"])
            x = add_pallas(outputs[i - 1], outputs[i + f])
        elif t == "yolo":
            mask = [int(m) for m in module["mask"].split(",")]
            anchors = [int(a) for a in module["anchors"].split(",")]
            anchors = [(anchors[j], anchors[j + 1]) for j in range(0, len(anchors), 2)]
            anchors = [anchors[m] for m in mask]
            inp_dim = int(net_info["height"])
            num_classes = int(module["classes"])
            x = predict_transform_pallas(x, inp_dim, anchors, num_classes)
            if detections is None:
                detections = x
            else:
                detections = jnp.concatenate([detections, x], axis=1)
        outputs[i] = x
    return detections


# ----------------------------------------------------------------------------
if __name__ == "__main__":
    key = jax.random.PRNGKey(0)
    key, kx = jax.random.split(key)
    x = jax.random.normal(kx, (2, 3, 32, 32), jnp.float32)   # NCHW, matches net cfg

    params = init_darknet_params(CFG_BLOCKS, key)

    forward = jax.jit(lambda prm, inp: darknet_forward(CFG_BLOCKS, prm, inp))
    detections = jax.block_until_ready(forward(params, x))

    # (2, 8*8*3 + 16*16*3, 5 + 2) = (2, 960, 7)
    assert detections.shape == (2, 960, 7), detections.shape
    assert bool(jnp.all(jnp.isfinite(detections)))
    print("KERNEL_OK")
</pallas_src>

<mosaic_0001>
module attributes {stable_mosaic.version = 11 : i64} {
  func.func @kernel(%arg0: i32, %arg1: memref<8x27xf32, #tpu.memory_space<vmem>>, %arg2: memref<27x2048xf32, #tpu.memory_space<vmem>>, %arg3: memref<8x1xf32, #tpu.memory_space<vmem>>, %arg4: memref<8x2048xf32, #tpu.memory_space<vmem>>) attributes {dimension_semantics = [#tpu.dimension_semantics<parallel>], iteration_bounds = array<i64: 1>, scalar_prefetch = 0 : i64, scratch_operands = 0 : i64, tpu.core_type = #tpu.core_type<tc>, window_params = [{pipeline_mode = #tpu.pipeline_mode<synchronous>, transform_indices = @transform_0, window_bounds = array<i64: 8, 27>}, {transform_indices = @transform_1, window_bounds = array<i64: 27, 2048>}, {pipeline_mode = #tpu.pipeline_mode<synchronous>, transform_indices = @transform_2, window_bounds = array<i64: 8, 1>}, {transform_indices = @transform_3, window_bounds = array<i64: 8, 2048>}]} {
    %c0 = arith.constant 0 : index
    %c0_0 = arith.constant 0 : index
    %0 = vector.load %arg1[%c0, %c0_0] : memref<8x27xf32, #tpu.memory_space<vmem>>, vector<8x27xf32>
    %1 = arith.truncf %0 : vector<8x27xf32> to vector<8x27xbf16>
    %c0_1 = arith.constant 0 : index
    %c0_2 = arith.constant 0 : index
    %2 = vector.load %arg2[%c0_1, %c0_2] : memref<27x2048xf32, #tpu.memory_space<vmem>>, vector<27x2048xf32>
    %3 = arith.truncf %2 : vector<27x2048xf32> to vector<27x2048xbf16>
    %cst = arith.constant dense<0.000000e+00> : vector<8x2048xf32>
    %4 = tpu.matmul %1, %3, %cst {dimension_numbers = #tpu.dot_dimension_numbers<[1], [0], [0], [1], [0, 0, 1, 1], [], []>} : vector<8x27xbf16>, vector<27x2048xbf16>, vector<8x2048xf32> -> vector<8x2048xf32>
    %c0_3 = arith.constant 0 : index
    %c0_4 = arith.constant 0 : index
    %5 = vector.load %arg3[%c0_3, %c0_4] : memref<8x1xf32, #tpu.memory_space<vmem>>, vector<8x1xf32>
    %6 = vector.broadcast %5 : vector<8x1xf32> to vector<8x2048xf32>
    %7 = arith.addf %4, %6 : vector<8x2048xf32>
    %cst_5 = arith.constant 0.000000e+00 : f32
    %8 = vector.broadcast %cst_5 : f32 to vector<8x2048xf32>
    %9 = arith.cmpf ogt, %7, %8 : vector<8x2048xf32>
    %cst_6 = arith.constant 1.000000e-01 : f32
    %10 = vector.broadcast %cst_6 : f32 to vector<8x2048xf32>
    %11 = arith.mulf %10, %7 : vector<8x2048xf32>
    %12 = arith.select %9, %7, %11 : vector<8x2048xi1>, vector<8x2048xf32>
    %c0_7 = arith.constant 0 : index
    %c0_8 = arith.constant 0 : index
    %13 = vector.load %arg4[%c0_7, %c0_8] : memref<8x2048xf32, #tpu.memory_space<vmem>>, vector<8x2048xf32>
    tpu.vector_store %arg4[%c0_7, %c0_8], %12 {strides = array<i32>} : memref<8x2048xf32, #tpu.memory_space<vmem>>, vector<8x2048xf32>,
    return
  }
  func.func @transform_0(%arg0: i32) -> (i32, i32) {
    %c0_i32 = arith.constant 0 : i32
    %c0_i32_0 = arith.constant 0 : i32
    %c0_i32_1 = arith.constant 0 : i32
    return %c0_i32, %c0_i32_0 : i32, i32
  }
  func.func @transform_1(%arg0: i32) -> (i32, i32) {
    %c0_i32 = arith.constant 0 : i32
    %c0_i32_0 = arith.constant 0 : i32
    return %c0_i32, %arg0 : i32, i32
  }
  func.func @transform_2(%arg0: i32) -> (i32, i32) {
    %c0_i32 = arith.constant 0 : i32
    %c0_i32_0 = arith.constant 0 : i32
    %c0_i32_1 = arith.constant 0 : i32
    return %c0_i32, %c0_i32_0 : i32, i32
  }
  func.func @transform_3(%arg0: i32) -> (i32, i32) {
    %c0_i32 = arith.constant 0 : i32
    %c0_i32_0 = arith.constant 0 : i32
    return %c0_i32, %arg0 : i32, i32
  }
}

module attributes {stable_mosaic.version = 11 : i64} {
  func.func @kernel(%arg0: i32, %arg1: memref<16x72xf32, #tpu.memory_space<vmem>>, %arg2: memref<72x512xf32, #tpu.memory_space<vmem>>, %arg3: memref<16x1xf32, #tpu.memory_space<vmem>>, %arg4: memref<16x512xf32, #tpu.memory_space<vmem>>) attributes {dimension_semantics = [#tpu.dimension_semantics<parallel>], iteration_bounds = array<i64: 1>, scalar_prefetch = 0 : i64, scratch_operands = 0 : i64, tpu.core_type = #tpu.core_type<tc>, window_params = [{pipeline_mode = #tpu.pipeline_mode<synchronous>, transform_indices = @transform_0, window_bounds = array<i64: 16, 72>}, {transform_indices = @transform_1, window_bounds = array<i64: 72, 512>}, {pipeline_mode = #tpu.pipeline_mode<synchronous>, transform_indices = @transform_2, window_bounds = array<i64: 16, 1>}, {transform_indices = @transform_3, window_bounds = array<i64: 16, 512>}]} {
    %c0 = arith.constant 0 : index
    %c0_0 = arith.constant 0 : index
    %0 = vector.load %arg1[%c0, %c0_0] : memref<16x72xf32, #tpu.memory_space<vmem>>, vector<16x72xf32>
    %1 = arith.truncf %0 : vector<16x72xf32> to vector<16x72xbf16>
    %c0_1 = arith.constant 0 : index
    %c0_2 = arith.constant 0 : index
    %2 = vector.load %arg2[%c0_1, %c0_2] : memref<72x512xf32, #tpu.memory_space<vmem>>, vector<72x512xf32>
    %3 = arith.truncf %2 : vector<72x512xf32> to vector<72x512xbf16>
    %cst = arith.constant dense<0.000000e+00> : vector<16x512xf32>
    %4 = tpu.matmul %1, %3, %cst {dimension_numbers = #tpu.dot_dimension_numbers<[1], [0], [0], [1], [0, 0, 1, 1], [], []>} : vector<16x72xbf16>, vector<72x512xbf16>, vector<16x512xf32> -> vector<16x512xf32>
    %c0_3 = arith.constant 0 : index
    %c0_4 = arith.constant 0 : index
    %5 = vector.load %arg3[%c0_3, %c0_4] : memref<16x1xf32, #tpu.memory_space<vmem>>, vector<16x1xf32>
    %6 = vector.broadcast %5 : vector<16x1xf32> to vector<16x512xf32>
    %7 = arith.addf %4, %6 : vector<16x512xf32>
    %cst_5 = arith.constant 0.000000e+00 : f32
    %8 = vector.broadcast %cst_5 : f32 to vector<16x512xf32>
    %9 = arith.cmpf ogt, %7, %8 : vector<16x512xf32>
    %cst_6 = arith.constant 1.000000e-01 : f32
    %10 = vector.broadcast %cst_6 : f32 to vector<16x512xf32>
    %11 = arith.mulf %10, %7 : vector<16x512xf32>
    %12 = arith.select %9, %7, %11 : vector<16x512xi1>, vector<16x512xf32>
    %c0_7 = arith.constant 0 : index
    %c0_8 = arith.constant 0 : index
    %13 = vector.load %arg4[%c0_7, %c0_8] : memref<16x512xf32, #tpu.memory_space<vmem>>, vector<16x512xf32>
    tpu.vector_store %arg4[%c0_7, %c0_8], %12 {strides = array<i32>} : memref<16x512xf32, #tpu.memory_space<vmem>>, vector<16x512xf32>,
    return
  }
  func.func @transform_0(%arg0: i32) -> (i32, i32) {
    %c0_i32 = arith.constant 0 : i32
    %c0_i32_0 = arith.constant 0 : i32
    %c0_i32_1 = arith.constant 0 : i32
    return %c0_i32, %c0_i32_0 : i32, i32
  }
  func.func @transform_1(%arg0: i32) -> (i32, i32) {
    %c0_i32 = arith.constant 0 : i32
    %c0_i32_0 = arith.constant 0 : i32
    return %c0_i32, %arg0 : i32, i32
  }
  func.func @transform_2(%arg0: i32) -> (i32, i32) {
    %c0_i32 = arith.constant 0 : i32
    %c0_i32_0 = arith.constant 0 : i32
    %c0_i32_1 = arith.constant 0 : i32
    return %c0_i32, %c0_i32_0 : i32, i32
  }
  func.func @transform_3(%arg0: i32) -> (i32, i32) {
    %c0_i32 = arith.constant 0 : i32
    %c0_i32_0 = arith.constant 0 : i32
    return %c0_i32, %arg0 : i32, i32
  }
}

module attributes {stable_mosaic.version = 11 : i64} {
  func.func @kernel(%arg0: i32, %arg1: memref<16x144xf32, #tpu.memory_space<vmem>>, %arg2: memref<144x512xf32, #tpu.memory_space<vmem>>, %arg3: memref<16x1xf32, #tpu.memory_space<vmem>>, %arg4: memref<16x512xf32, #tpu.memory_space<vmem>>) attributes {dimension_semantics = [#tpu.dimension_semantics<parallel>], iteration_bounds = array<i64: 1>, scalar_prefetch = 0 : i64, scratch_operands = 0 : i64, tpu.core_type = #tpu.core_type<tc>, window_params = [{pipeline_mode = #tpu.pipeline_mode<synchronous>, transform_indices = @transform_0, window_bounds = array<i64: 16, 144>}, {transform_indices = @transform_1, window_bounds = array<i64: 144, 512>}, {pipeline_mode = #tpu.pipeline_mode<synchronous>, transform_indices = @transform_2, window_bounds = array<i64: 16, 1>}, {transform_indices = @transform_3, window_bounds = array<i64: 16, 512>}]} {
    %c0 = arith.constant 0 : index
    %c0_0 = arith.constant 0 : index
    %0 = vector.load %arg1[%c0, %c0_0] : memref<16x144xf32, #tpu.memory_space<vmem>>, vector<16x144xf32>
    %1 = arith.truncf %0 : vector<16x144xf32> to vector<16x144xbf16>
    %c0_1 = arith.constant 0 : index
    %c0_2 = arith.constant 0 : index
    %2 = vector.load %arg2[%c0_1, %c0_2] : memref<144x512xf32, #tpu.memory_space<vmem>>, vector<144x512xf32>
    %3 = arith.truncf %2 : vector<144x512xf32> to vector<144x512xbf16>
    %cst = arith.constant dense<0.000000e+00> : vector<16x512xf32>
    %4 = tpu.matmul %1, %3, %cst {dimension_numbers = #tpu.dot_dimension_numbers<[1], [0], [0], [1], [0, 0, 1, 1], [], []>} : vector<16x144xbf16>, vector<144x512xbf16>, vector<16x512xf32> -> vector<16x512xf32>
    %c0_3 = arith.constant 0 : index
    %c0_4 = arith.constant 0 : index
    %5 = vector.load %arg3[%c0_3, %c0_4] : memref<16x1xf32, #tpu.memory_space<vmem>>, vector<16x1xf32>
    %6 = vector.broadcast %5 : vector<16x1xf32> to vector<16x512xf32>
    %7 = arith.addf %4, %6 : vector<16x512xf32>
    %cst_5 = arith.constant 0.000000e+00 : f32
    %8 = vector.broadcast %cst_5 : f32 to vector<16x512xf32>
    %9 = arith.cmpf ogt, %7, %8 : vector<16x512xf32>
    %cst_6 = arith.constant 1.000000e-01 : f32
    %10 = vector.broadcast %cst_6 : f32 to vector<16x512xf32>
    %11 = arith.mulf %10, %7 : vector<16x512xf32>
    %12 = arith.select %9, %7, %11 : vector<16x512xi1>, vector<16x512xf32>
    %c0_7 = arith.constant 0 : index
    %c0_8 = arith.constant 0 : index
    %13 = vector.load %arg4[%c0_7, %c0_8] : memref<16x512xf32, #tpu.memory_space<vmem>>, vector<16x512xf32>
    tpu.vector_store %arg4[%c0_7, %c0_8], %12 {strides = array<i32>} : memref<16x512xf32, #tpu.memory_space<vmem>>, vector<16x512xf32>,
    return
  }
  func.func @transform_0(%arg0: i32) -> (i32, i32) {
    %c0_i32 = arith.constant 0 : i32
    %c0_i32_0 = arith.constant 0 : i32
    %c0_i32_1 = arith.constant 0 : i32
    return %c0_i32, %c0_i32_0 : i32, i32
  }
  func.func @transform_1(%arg0: i32) -> (i32, i32) {
    %c0_i32 = arith.constant 0 : i32
    %c0_i32_0 = arith.constant 0 : i32
    return %c0_i32, %arg0 : i32, i32
  }
  func.func @transform_2(%arg0: i32) -> (i32, i32) {
    %c0_i32 = arith.constant 0 : i32
    %c0_i32_0 = arith.constant 0 : i32
    %c0_i32_1 = arith.constant 0 : i32
    return %c0_i32, %c0_i32_0 : i32, i32
  }
  func.func @transform_3(%arg0: i32) -> (i32, i32) {
    %c0_i32 = arith.constant 0 : i32
    %c0_i32_0 = arith.constant 0 : i32
    return %c0_i32, %arg0 : i32, i32
  }
}

module attributes {stable_mosaic.version = 11 : i64} {
  func.func @_add_kernel(%arg0: memref<4x2048xf32, #tpu.memory_space<vmem>>, %arg1: memref<4x2048xf32, #tpu.memory_space<vmem>>, %arg2: memref<4x2048xf32, #tpu.memory_space<vmem>>) attributes {dimension_semantics = [], scalar_prefetch = 0 : i64, scratch_operands = 0 : i64, tpu.core_type = #tpu.core_type<tc>} {
    %c0 = arith.constant 0 : index
    %c0_0 = arith.constant 0 : index
    %0 = vector.load %arg0[%c0, %c0_0] : memref<4x2048xf32, #tpu.memory_space<vmem>>, vector<4x2048xf32>
    %c0_1 = arith.constant 0 : index
    %c0_2 = arith.constant 0 : index
    %1 = vector.load %arg1[%c0_1, %c0_2] : memref<4x2048xf32, #tpu.memory_space<vmem>>, vector<4x2048xf32>
    %2 = arith.addf %0, %1 : vector<4x2048xf32>
    %c0_3 = arith.constant 0 : index
    %c0_4 = arith.constant 0 : index
    %3 = vector.load %arg2[%c0_3, %c0_4] : memref<4x2048xf32, #tpu.memory_space<vmem>>, vector<4x2048xf32>
    tpu.vector_store %arg2[%c0_3, %c0_4], %2 {strides = array<i32>} : memref<4x2048xf32, #tpu.memory_space<vmem>>, vector<4x2048xf32>,
    return
  }
}

module attributes {stable_mosaic.version = 11 : i64} {
  func.func @kernel(%arg0: i32, %arg1: memref<32x144xf32, #tpu.memory_space<vmem>>, %arg2: memref<144x128xf32, #tpu.memory_space<vmem>>, %arg3: memref<32x1xf32, #tpu.memory_space<vmem>>, %arg4: memref<32x128xf32, #tpu.memory_space<vmem>>) attributes {dimension_semantics = [#tpu.dimension_semantics<parallel>], iteration_bounds = array<i64: 1>, scalar_prefetch = 0 : i64, scratch_operands = 0 : i64, tpu.core_type = #tpu.core_type<tc>, window_params = [{pipeline_mode = #tpu.pipeline_mode<synchronous>, transform_indices = @transform_0, window_bounds = array<i64: 32, 144>}, {transform_indices = @transform_1, window_bounds = array<i64: 144, 128>}, {pipeline_mode = #tpu.pipeline_mode<synchronous>, transform_indices = @transform_2, window_bounds = array<i64: 32, 1>}, {transform_indices = @transform_3, window_bounds = array<i64: 32, 128>}]} {
    %c0 = arith.constant 0 : index
    %c0_0 = arith.constant 0 : index
    %0 = vector.load %arg1[%c0, %c0_0] : memref<32x144xf32, #tpu.memory_space<vmem>>, vector<32x144xf32>
    %1 = arith.truncf %0 : vector<32x144xf32> to vector<32x144xbf16>
    %c0_1 = arith.constant 0 : index
    %c0_2 = arith.constant 0 : index
    %2 = vector.load %arg2[%c0_1, %c0_2] : memref<144x128xf32, #tpu.memory_space<vmem>>, vector<144x128xf32>
    %3 = arith.truncf %2 : vector<144x128xf32> to vector<144x128xbf16>
    %cst = arith.constant dense<0.000000e+00> : vector<32x128xf32>
    %4 = tpu.matmul %1, %3, %cst {dimension_numbers = #tpu.dot_dimension_numbers<[1], [0], [0], [1], [0, 0, 1, 1], [], []>} : vector<32x144xbf16>, vector<144x128xbf16>, vector<32x128xf32> -> vector<32x128xf32>
    %c0_3 = arith.constant 0 : index
    %c0_4 = arith.constant 0 : index
    %5 = vector.load %arg3[%c0_3, %c0_4] : memref<32x1xf32, #tpu.memory_space<vmem>>, vector<32x1xf32>
    %6 = vector.broadcast %5 : vector<32x1xf32> to vector<32x128xf32>
    %7 = arith.addf %4, %6 : vector<32x128xf32>
    %cst_5 = arith.constant 0.000000e+00 : f32
    %8 = vector.broadcast %cst_5 : f32 to vector<32x128xf32>
    %9 = arith.cmpf ogt, %7, %8 : vector<32x128xf32>
    %cst_6 = arith.constant 1.000000e-01 : f32
    %10 = vector.broadcast %cst_6 : f32 to vector<32x128xf32>
    %11 = arith.mulf %10, %7 : vector<32x128xf32>
    %12 = arith.select %9, %7, %11 : vector<32x128xi1>, vector<32x128xf32>
    %c0_7 = arith.constant 0 : index
    %c0_8 = arith.constant 0 : index
    %13 = vector.load %arg4[%c0_7, %c0_8] : memref<32x128xf32, #tpu.memory_space<vmem>>, vector<32x128xf32>
    tpu.vector_store %arg4[%c0_7, %c0_8], %12 {strides = array<i32>} : memref<32x128xf32, #tpu.memory_space<vmem>>, vector<32x128xf32>,
    return
  }
  func.func @transform_0(%arg0: i32) -> (i32, i32) {
    %c0_i32 = arith.constant 0 : i32
    %c0_i32_0 = arith.constant 0 : i32
    %c0_i32_1 = arith.constant 0 : i32
    return %c0_i32, %c0_i32_0 : i32, i32
  }
  func.func @transform_1(%arg0: i32) -> (i32, i32) {
    %c0_i32 = arith.constant 0 : i32
    %c0_i32_0 = arith.constant 0 : i32
    return %c0_i32, %arg0 : i32, i32
  }
  func.func @transform_2(%arg0: i32) -> (i32, i32) {
    %c0_i32 = arith.constant 0 : i32
    %c0_i32_0 = arith.constant 0 : i32
    %c0_i32_1 = arith.constant 0 : i32
    return %c0_i32, %c0_i32_0 : i32, i32
  }
  func.func @transform_3(%arg0: i32) -> (i32, i32) {
    %c0_i32 = arith.constant 0 : i32
    %c0_i32_0 = arith.constant 0 : i32
    return %c0_i32, %arg0 : i32, i32
  }
}

module attributes {stable_mosaic.version = 11 : i64} {
  func.func @kernel(%arg0: i32, %arg1: memref<16x32xf32, #tpu.memory_space<vmem>>, %arg2: memref<32x128xf32, #tpu.memory_space<vmem>>, %arg3: memref<16x1xf32, #tpu.memory_space<vmem>>, %arg4: memref<16x128xf32, #tpu.memory_space<vmem>>) attributes {dimension_semantics = [#tpu.dimension_semantics<parallel>], iteration_bounds = array<i64: 1>, scalar_prefetch = 0 : i64, scratch_operands = 0 : i64, tpu.core_type = #tpu.core_type<tc>, window_params = [{pipeline_mode = #tpu.pipeline_mode<synchronous>, transform_indices = @transform_0, window_bounds = array<i64: 16, 32>}, {transform_indices = @transform_1, window_bounds = array<i64: 32, 128>}, {pipeline_mode = #tpu.pipeline_mode<synchronous>, transform_indices = @transform_2, window_bounds = array<i64: 16, 1>}, {transform_indices = @transform_3, window_bounds = array<i64: 16, 128>}]} {
    %c0 = arith.constant 0 : index
    %c0_0 = arith.constant 0 : index
    %0 = vector.load %arg1[%c0, %c0_0] : memref<16x32xf32, #tpu.memory_space<vmem>>, vector<16x32xf32>
    %1 = arith.truncf %0 : vector<16x32xf32> to vector<16x32xbf16>
    %c0_1 = arith.constant 0 : index
    %c0_2 = arith.constant 0 : index
    %2 = vector.load %arg2[%c0_1, %c0_2] : memref<32x128xf32, #tpu.memory_space<vmem>>, vector<32x128xf32>
    %3 = arith.truncf %2 : vector<32x128xf32> to vector<32x128xbf16>
    %cst = arith.constant dense<0.000000e+00> : vector<16x128xf32>
    %4 = tpu.matmul %1, %3, %cst {dimension_numbers = #tpu.dot_dimension_numbers<[1], [0], [0], [1], [0, 0, 1, 1], [], []>} : vector<16x32xbf16>, vector<32x128xbf16>, vector<16x128xf32> -> vector<16x128xf32>
    %c0_3 = arith.constant 0 : index
    %c0_4 = arith.constant 0 : index
    %5 = vector.load %arg3[%c0_3, %c0_4] : memref<16x1xf32, #tpu.memory_space<vmem>>, vector<16x1xf32>
    %6 = vector.broadcast %5 : vector<16x1xf32> to vector<16x128xf32>
    %7 = arith.addf %4, %6 : vector<16x128xf32>
    %cst_5 = arith.constant 0.000000e+00 : f32
    %8 = vector.broadcast %cst_5 : f32 to vector<16x128xf32>
    %9 = arith.cmpf ogt, %7, %8 : vector<16x128xf32>
    %cst_6 = arith.constant 1.000000e-01 : f32
    %10 = vector.broadcast %cst_6 : f32 to vector<16x128xf32>
    %11 = arith.mulf %10, %7 : vector<16x128xf32>
    %12 = arith.select %9, %7, %11 : vector<16x128xi1>, vector<16x128xf32>
    %c0_7 = arith.constant 0 : index
    %c0_8 = arith.constant 0 : index
    %13 = vector.load %arg4[%c0_7, %c0_8] : memref<16x128xf32, #tpu.memory_space<vmem>>, vector<16x128xf32>
    tpu.vector_store %arg4[%c0_7, %c0_8], %12 {strides = array<i32>} : memref<16x128xf32, #tpu.memory_space<vmem>>, vector<16x128xf32>,
    return
  }
  func.func @transform_0(%arg0: i32) -> (i32, i32) {
    %c0_i32 = arith.constant 0 : i32
    %c0_i32_0 = arith.constant 0 : i32
    %c0_i32_1 = arith.constant 0 : i32
    return %c0_i32, %c0_i32_0 : i32, i32
  }
  func.func @transform_1(%arg0: i32) -> (i32, i32) {
    %c0_i32 = arith.constant 0 : i32
    %c0_i32_0 = arith.constant 0 : i32
    return %c0_i32, %arg0 : i32, i32
  }
  func.func @transform_2(%arg0: i32) -> (i32, i32) {
    %c0_i32 = arith.constant 0 : i32
    %c0_i32_0 = arith.constant 0 : i32
    %c0_i32_1 = arith.constant 0 : i32
    return %c0_i32, %c0_i32_0 : i32, i32
  }
  func.func @transform_3(%arg0: i32) -> (i32, i32) {
    %c0_i32 = arith.constant 0 : i32
    %c0_i32_0 = arith.constant 0 : i32
    return %c0_i32, %arg0 : i32, i32
  }
}

module attributes {stable_mosaic.version = 11 : i64} {
  func.func @_upsample_kernel(%arg0: memref<32x64xf32, #tpu.memory_space<vmem>>, %arg1: memref<64x256xf32, #tpu.memory_space<vmem>>, %arg2: memref<32x256xf32, #tpu.memory_space<vmem>>) attributes {dimension_semantics = [], scalar_prefetch = 0 : i64, scratch_operands = 0 : i64, tpu.core_type = #tpu.core_type<tc>} {
    %c0 = arith.constant 0 : index
    %c0_0 = arith.constant 0 : index
    %0 = vector.load %arg0[%c0, %c0_0] : memref<32x64xf32, #tpu.memory_space<vmem>>, vector<32x64xf32>
    %c0_1 = arith.constant 0 : index
    %c0_2 = arith.constant 0 : index
    %1 = vector.load %arg1[%c0_1, %c0_2] : memref<64x256xf32, #tpu.memory_space<vmem>>, vector<64x256xf32>
    %cst = arith.constant dense<0.000000e+00> : vector<32x256xf32>
    %2 = tpu.matmul %0, %1, %cst {dimension_numbers = #tpu.dot_dimension_numbers<[1], [0], [0], [1], [0, 0, 1, 1], [], []>} : vector<32x64xf32>, vector<64x256xf32>, vector<32x256xf32> -> vector<32x256xf32>
    %c0_3 = arith.constant 0 : index
    %c0_4 = arith.constant 0 : index
    %3 = vector.load %arg2[%c0_3, %c0_4] : memref<32x256xf32, #tpu.memory_space<vmem>>, vector<32x256xf32>
    tpu.vector_store %arg2[%c0_3, %c0_4], %2 {strides = array<i32>} : memref<32x256xf32, #tpu.memory_space<vmem>>, vector<32x256xf32>,
    return
  }
}

module attributes {stable_mosaic.version = 11 : i64} {
  func.func @kernel(%arg0: memref<3x7x512xf32, #tpu.memory_space<vmem>>, %arg1: memref<7x512xf32, #tpu.memory_space<vmem>>, %arg2: memref<3x7x1xf32, #tpu.memory_space<vmem>>, %arg3: memref<3x7x512xf32, #tpu.memory_space<vmem>>) attributes {dimension_semantics = [], scalar_prefetch = 0 : i64, scratch_operands = 0 : i64, tpu.core_type = #tpu.core_type<tc>} {
    %c0 = arith.constant 0 : index
    %c0_0 = arith.constant 0 : index
    %c0_1 = arith.constant 0 : index
    %0 = vector.load %arg0[%c0, %c0_0, %c0_1] : memref<3x7x512xf32, #tpu.memory_space<vmem>>, vector<3x7x512xf32>
    %c0_2 = arith.constant 0 : index
    %c0_3 = arith.constant 0 : index
    %1 = vector.load %arg1[%c0_2, %c0_3] : memref<7x512xf32, #tpu.memory_space<vmem>>, vector<7x512xf32>
    %2 = vector.shape_cast %1 : vector<7x512xf32> to vector<1x7x512xf32>
    %c0_4 = arith.constant 0 : index
    %c0_5 = arith.constant 0 : index
    %c0_6 = arith.constant 0 : index
    %3 = vector.load %arg2[%c0_4, %c0_5, %c0_6] : memref<3x7x1xf32, #tpu.memory_space<vmem>>, vector<3x7x1xf32>
    %4 = tpu.iota {dimensions = array<i32: 1>} : vector<3x7x512xi32>
    %cst = arith.constant 0.000000e+00 : f32
    %5 = vector.broadcast %cst : f32 to vector<3x7x512xf32>
    %6 = arith.subf %5, %0 : vector<3x7x512xf32>
    %7 = math.exp %6 : vector<3x7x512xf32>
    %cst_7 = arith.constant 1.000000e+00 : f32
    %8 = vector.broadcast %cst_7 : f32 to vector<3x7x512xf32>
    %9 = arith.addf %8, %7 : vector<3x7x512xf32>
    %cst_8 = arith.constant 1.000000e+00 : f32
    %10 = vector.broadcast %cst_8 : f32 to vector<3x7x512xf32>
    %11 = arith.divf %10, %9 : vector<3x7x512xf32>
    %12 = vector.broadcast %2 : vector<1x7x512xf32> to vector<3x7x512xf32>
    %13 = arith.addf %11, %12 : vector<3x7x512xf32>
    %cst_9 = arith.constant 2.000000e+00 : f32
    %14 = vector.broadcast %cst_9 : f32 to vector<3x7x512xf32>
    %15 = arith.mulf %13, %14 : vector<3x7x512xf32>
    %16 = math.exp %0 : vector<3x7x512xf32>
    %17 = vector.broadcast %3 : vector<3x7x1xf32> to vector<3x7x512xf32>
    %18 = arith.mulf %16, %17 : vector<3x7x512xf32>
    %cst_10 = arith.constant 2.000000e+00 : f32
    %19 = vector.broadcast %cst_10 : f32 to vector<3x7x512xf32>
    %20 = arith.mulf %18, %19 : vector<3x7x512xf32>
    %c2_i32 = arith.constant 2 : i32
    %21 = vector.broadcast %c2_i32 : i32 to vector<3x7x512xi32>
    %22 = arith.cmpi slt, %4, %21 : vector<3x7x512xi32>
    %c4_i32 = arith.constant 4 : i32
    %23 = vector.broadcast %c4_i32 : i32 to vector<3x7x512xi32>
    %24 = arith.cmpi slt, %4, %23 : vector<3x7x512xi32>
    %25 = arith.select %24, %20, %11 : vector<3x7x512xi1>, vector<3x7x512xf32>
    %26 = arith.select %22, %15, %25 : vector<3x7x512xi1>, vector<3x7x512xf32>
    %c0_11 = arith.constant 0 : index
    %c0_12 = arith.constant 0 : index
    %c0_13 = arith.constant 0 : index
    %27 = vector.load %arg3[%c0_11, %c0_12, %c0_13] : memref<3x7x512xf32, #tpu.memory_space<vmem>>, vector<3x7x512xf32>
    tpu.vector_store %arg3[%c0_11, %c0_12, %c0_13], %26 {strides = array<i32>} : memref<3x7x512xf32, #tpu.memory_space<vmem>>, vector<3x7x512xf32>,
    return
  }
}

module attributes {stable_mosaic.version = 11 : i64} {
  func.func @kernel(%arg0: i32, %arg1: memref<21x288xf32, #tpu.memory_space<vmem>>, %arg2: memref<288x512xf32, #tpu.memory_space<vmem>>, %arg3: memref<21x1xf32, #tpu.memory_space<vmem>>, %arg4: memref<21x512xf32, #tpu.memory_space<vmem>>) attributes {dimension_semantics = [#tpu.dimension_semantics<parallel>], iteration_bounds = array<i64: 1>, scalar_prefetch = 0 : i64, scratch_operands = 0 : i64, tpu.core_type = #tpu.core_type<tc>, window_params = [{pipeline_mode = #tpu.pipeline_mode<synchronous>, transform_indices = @transform_0, window_bounds = array<i64: 21, 288>}, {transform_indices = @transform_1, window_bounds = array<i64: 288, 512>}, {pipeline_mode = #tpu.pipeline_mode<synchronous>, transform_indices = @transform_2, window_bounds = array<i64: 21, 1>}, {transform_indices = @transform_3, window_bounds = array<i64: 21, 512>}]} {
    %c0 = arith.constant 0 : index
    %c0_0 = arith.constant 0 : index
    %0 = vector.load %arg1[%c0, %c0_0] : memref<21x288xf32, #tpu.memory_space<vmem>>, vector<21x288xf32>
    %1 = arith.truncf %0 : vector<21x288xf32> to vector<21x288xbf16>
    %c0_1 = arith.constant 0 : index
    %c0_2 = arith.constant 0 : index
    %2 = vector.load %arg2[%c0_1, %c0_2] : memref<288x512xf32, #tpu.memory_space<vmem>>, vector<288x512xf32>
    %3 = arith.truncf %2 : vector<288x512xf32> to vector<288x512xbf16>
    %cst = arith.constant dense<0.000000e+00> : vector<21x512xf32>
    %4 = tpu.matmul %1, %3, %cst {dimension_numbers = #tpu.dot_dimension_numbers<[1], [0], [0], [1], [0, 0, 1, 1], [], []>} : vector<21x288xbf16>, vector<288x512xbf16>, vector<21x512xf32> -> vector<21x512xf32>
    %c0_3 = arith.constant 0 : index
    %c0_4 = arith.constant 0 : index
    %5 = vector.load %arg3[%c0_3, %c0_4] : memref<21x1xf32, #tpu.memory_space<vmem>>, vector<21x1xf32>
    %6 = vector.broadcast %5 : vector<21x1xf32> to vector<21x512xf32>
    %7 = arith.addf %4, %6 : vector<21x512xf32>
    %c0_5 = arith.constant 0 : index
    %c0_6 = arith.constant 0 : index
    %8 = vector.load %arg4[%c0_5, %c0_6] : memref<21x512xf32, #tpu.memory_space<vmem>>, vector<21x512xf32>
    tpu.vector_store %arg4[%c0_5, %c0_6], %7 {strides = array<i32>} : memref<21x512xf32, #tpu.memory_space<vmem>>, vector<21x512xf32>,
    return
  }
  func.func @transform_0(%arg0: i32) -> (i32, i32) {
    %c0_i32 = arith.constant 0 : i32
    %c0_i32_0 = arith.constant 0 : i32
    %c0_i32_1 = arith.constant 0 : i32
    return %c0_i32, %c0_i32_0 : i32, i32
  }
  func.func @transform_1(%arg0: i32) -> (i32, i32) {
    %c0_i32 = arith.constant 0 : i32
    %c0_i32_0 = arith.constant 0 : i32
    return %c0_i32, %arg0 : i32, i32
  }
  func.func @transform_2(%arg0: i32) -> (i32, i32) {
    %c0_i32 = arith.constant 0 : i32
    %c0_i32_0 = arith.constant 0 : i32
    %c0_i32_1 = arith.constant 0 : i32
    return %c0_i32, %c0_i32_0 : i32, i32
  }
  func.func @transform_3(%arg0: i32) -> (i32, i32) {
    %c0_i32 = arith.constant 0 : i32
    %c0_i32_0 = arith.constant 0 : i32
    return %c0_i32, %arg0 : i32, i32
  }
}

module attributes {stable_mosaic.version = 11 : i64} {
  func.func @kernel(%arg0: i32, %arg1: memref<21x32xf32, #tpu.memory_space<vmem>>, %arg2: memref<32x128xf32, #tpu.memory_space<vmem>>, %arg3: memref<21x1xf32, #tpu.memory_space<vmem>>, %arg4: memref<21x128xf32, #tpu.memory_space<vmem>>) attributes {dimension_semantics = [#tpu.dimension_semantics<parallel>], iteration_bounds = array<i64: 1>, scalar_prefetch = 0 : i64, scratch_operands = 0 : i64, tpu.core_type = #tpu.core_type<tc>, window_params = [{pipeline_mode = #tpu.pipeline_mode<synchronous>, transform_indices = @transform_0, window_bounds = array<i64: 21, 32>}, {transform_indices = @transform_1, window_bounds = array<i64: 32, 128>}, {pipeline_mode = #tpu.pipeline_mode<synchronous>, transform_indices = @transform_2, window_bounds = array<i64: 21, 1>}, {transform_indices = @transform_3, window_bounds = array<i64: 21, 128>}]} {
    %c0 = arith.constant 0 : index
    %c0_0 = arith.constant 0 : index
    %0 = vector.load %arg1[%c0, %c0_0] : memref<21x32xf32, #tpu.memory_space<vmem>>, vector<21x32xf32>
    %1 = arith.truncf %0 : vector<21x32xf32> to vector<21x32xbf16>
    %c0_1 = arith.constant 0 : index
    %c0_2 = arith.constant 0 : index
    %2 = vector.load %arg2[%c0_1, %c0_2] : memref<32x128xf32, #tpu.memory_space<vmem>>, vector<32x128xf32>
    %3 = arith.truncf %2 : vector<32x128xf32> to vector<32x128xbf16>
    %cst = arith.constant dense<0.000000e+00> : vector<21x128xf32>
    %4 = tpu.matmul %1, %3, %cst {dimension_numbers = #tpu.dot_dimension_numbers<[1], [0], [0], [1], [0, 0, 1, 1], [], []>} : vector<21x32xbf16>, vector<32x128xbf16>, vector<21x128xf32> -> vector<21x128xf32>
    %c0_3 = arith.constant 0 : index
    %c0_4 = arith.constant 0 : index
    %5 = vector.load %arg3[%c0_3, %c0_4] : memref<21x1xf32, #tpu.memory_space<vmem>>, vector<21x1xf32>
    %6 = vector.broadcast %5 : vector<21x1xf32> to vector<21x128xf32>
    %7 = arith.addf %4, %6 : vector<21x128xf32>
    %c0_5 = arith.constant 0 : index
    %c0_6 = arith.constant 0 : index
    %8 = vector.load %arg4[%c0_5, %c0_6] : memref<21x128xf32, #tpu.memory_space<vmem>>, vector<21x128xf32>
    tpu.vector_store %arg4[%c0_5, %c0_6], %7 {strides = array<i32>} : memref<21x128xf32, #tpu.memory_space<vmem>>, vector<21x128xf32>,
    return
  }
  func.func @transform_0(%arg0: i32) -> (i32, i32) {
    %c0_i32 = arith.constant 0 : i32
    %c0_i32_0 = arith.constant 0 : i32
    %c0_i32_1 = arith.constant 0 : i32
    return %c0_i32, %c0_i32_0 : i32, i32
  }
  func.func @transform_1(%arg0: i32) -> (i32, i32) {
    %c0_i32 = arith.constant 0 : i32
    %c0_i32_0 = arith.constant 0 : i32
    return %c0_i32, %arg0 : i32, i32
  }
  func.func @transform_2(%arg0: i32) -> (i32, i32) {
    %c0_i32 = arith.constant 0 : i32
    %c0_i32_0 = arith.constant 0 : i32
    %c0_i32_1 = arith.constant 0 : i32
    return %c0_i32, %c0_i32_0 : i32, i32
  }
  func.func @transform_3(%arg0: i32) -> (i32, i32) {
    %c0_i32 = arith.constant 0 : i32
    %c0_i32_0 = arith.constant 0 : i32
    return %c0_i32, %arg0 : i32, i32
  }
}

module attributes {stable_mosaic.version = 11 : i64} {
  func.func @kernel(%arg0: memref<3x7x128xf32, #tpu.memory_space<vmem>>, %arg1: memref<7x128xf32, #tpu.memory_space<vmem>>, %arg2: memref<3x7x1xf32, #tpu.memory_space<vmem>>, %arg3: memref<3x7x128xf32, #tpu.memory_space<vmem>>) attributes {dimension_semantics = [], scalar_prefetch = 0 : i64, scratch_operands = 0 : i64, tpu.core_type = #tpu.core_type<tc>} {
    %c0 = arith.constant 0 : index
    %c0_0 = arith.constant 0 : index
    %c0_1 = arith.constant 0 : index
    %0 = vector.load %arg0[%c0, %c0_0, %c0_1] : memref<3x7x128xf32, #tpu.memory_space<vmem>>, vector<3x7x128xf32>
    %c0_2 = arith.constant 0 : index
    %c0_3 = arith.constant 0 : index
    %1 = vector.load %arg1[%c0_2, %c0_3] : memref<7x128xf32, #tpu.memory_space<vmem>>, vector<7x128xf32>
    %2 = vector.shape_cast %1 : vector<7x128xf32> to vector<1x7x128xf32>
    %c0_4 = arith.constant 0 : index
    %c0_5 = arith.constant 0 : index
    %c0_6 = arith.constant 0 : index
    %3 = vector.load %arg2[%c0_4, %c0_5, %c0_6] : memref<3x7x1xf32, #tpu.memory_space<vmem>>, vector<3x7x1xf32>
    %4 = tpu.iota {dimensions = array<i32: 1>} : vector<3x7x128xi32>
    %cst = arith.constant 0.000000e+00 : f32
    %5 = vector.broadcast %cst : f32 to vector<3x7x128xf32>
    %6 = arith.subf %5, %0 : vector<3x7x128xf32>
    %7 = math.exp %6 : vector<3x7x128xf32>
    %cst_7 = arith.constant 1.000000e+00 : f32
    %8 = vector.broadcast %cst_7 : f32 to vector<3x7x128xf32>
    %9 = arith.addf %8, %7 : vector<3x7x128xf32>
    %cst_8 = arith.constant 1.000000e+00 : f32
    %10 = vector.broadcast %cst_8 : f32 to vector<3x7x128xf32>
    %11 = arith.divf %10, %9 : vector<3x7x128xf32>
    %12 = vector.broadcast %2 : vector<1x7x128xf32> to vector<3x7x128xf32>
    %13 = arith.addf %11, %12 : vector<3x7x128xf32>
    %cst_9 = arith.constant 4.000000e+00 : f32
    %14 = vector.broadcast %cst_9 : f32 to vector<3x7x128xf32>
    %15 = arith.mulf %13, %14 : vector<3x7x128xf32>
    %16 = math.exp %0 : vector<3x7x128xf32>
    %17 = vector.broadcast %3 : vector<3x7x1xf32> to vector<3x7x128xf32>
    %18 = arith.mulf %16, %17 : vector<3x7x128xf32>
    %cst_10 = arith.constant 4.000000e+00 : f32
    %19 = vector.broadcast %cst_10 : f32 to vector<3x7x128xf32>
    %20 = arith.mulf %18, %19 : vector<3x7x128xf32>
    %c2_i32 = arith.constant 2 : i32
    %21 = vector.broadcast %c2_i32 : i32 to vector<3x7x128xi32>
    %22 = arith.cmpi slt, %4, %21 : vector<3x7x128xi32>
    %c4_i32 = arith.constant 4 : i32
    %23 = vector.broadcast %c4_i32 : i32 to vector<3x7x128xi32>
    %24 = arith.cmpi slt, %4, %23 : vector<3x7x128xi32>
    %25 = arith.select %24, %20, %11 : vector<3x7x128xi1>, vector<3x7x128xf32>
    %26 = arith.select %22, %15, %25 : vector<3x7x128xi1>, vector<3x7x128xf32>
    %c0_11 = arith.constant 0 : index
    %c0_12 = arith.constant 0 : index
    %c0_13 = arith.constant 0 : index
    %27 = vector.load %arg3[%c0_11, %c0_12, %c0_13] : memref<3x7x128xf32, #tpu.memory_space<vmem>>, vector<3x7x128xf32>
    tpu.vector_store %arg3[%c0_11, %c0_12, %c0_13], %26 {strides = array<i32>} : memref<3x7x128xf32, #tpu.memory_space<vmem>>, vector<3x7x128xf32>,
    return
  }
}

</mosaic_0001>

<llo_original>
// kernel: _lambda_.11
$region0: #{_lambda_.11}
  #allocation0 [shape = 'u32[]', space=smem, size = 0x4, offset = 0x4, fixed_abs, tag = 'smem constant byte address 0x4 - core index']
  #allocation1 [shape = 'u32[144,128]{1,0:T(1,128)}', space=vmem, size = 0x12000, scoped, tag = 'internal scratch']
  %s0 = inlined_call_operand.vmem [shape: f32[8,27], index: 0, kind: input, shape index: {}]
  %s1 = inlined_call_operand.vmem [shape: f32[27,2048], index: 1, kind: input, shape index: {}]
  %s2 = inlined_call_operand.vmem [shape: f32[8,1], index: 2, kind: input, shape index: {}]
  %s3 = inlined_call_operand.vmem [shape: f32[8,2048], index: 3, kind: output, shape index: {}]
  %s4 = sld [smem:[#allocation0]]
  $region22: #{_lambda_.11} parent=0
    _
  %s6 = ssub.s32 1, %s4
  %s7 = scalar_select 0, %s6, %s4
  // Predicated region
  $region2: #{_lambda_.11} parent=0 // pred_check
    _
  $region3: #{_lambda_.11} parent=0 // pred_check_branch
    %9 = sbr.rel (0) target = $region5
  $region4: #{_lambda_.11} parent=0 // pred_region
    _
  $region5: #{_lambda_.11} parent=0 // pred_fallthru
    _
  // Predicated region
  $region6: #{_lambda_.11} parent=0 // pred_check
    _
  $region7: #{_lambda_.11} parent=0 // pred_check_branch
    %11 = sbr.rel (0) target = $region9
  $region8: #{_lambda_.11} parent=0 // pred_region
    _
  $region9: #{_lambda_.11} parent=0 // pred_fallthru
    _
  // Predicated region
  $region10: #{_lambda_.11} parent=0 // pred_check
    _
  $region11: #{_lambda_.11} parent=0 // pred_check_branch
    %13 = sbr.rel (0) target = $region13
  $region12: #{_lambda_.11} parent=0 // pred_region
    _
  $region13: #{_lambda_.11} parent=0 // pred_fallthru
    _
  %v15 = vld [vmem:[%s0] sm:$0xff]
  %v16 = vpack.c.bf16 %v15, %v15
  %v17 = vld [vmem:[%s1] sm:$0xff]
  %v18 = vld [vmem:[%s1 + $0x8] sm:$0xff]
  %v19 = vld [vmem:[%s1 + $0x10] sm:$0xff]
  %v20 = vld [vmem:[%s1 + $0x18] sm:$0xff]
  %v21 = vld [vmem:[%s1 + $0x20] sm:$0xff]
  %v22 = vld [vmem:[%s1 + $0x28] sm:$0xff]
  %v23 = vld [vmem:[%s1 + $0x30] sm:$0xff]
  %v24 = vld [vmem:[%s1 + $0x38] sm:$0xff]
  %v25 = vld [vmem:[%s1 + $0x40] sm:$0xff]
  %v26 = vld [vmem:[%s1 + $0x48] sm:$0xff]
  %v27 = vld [vmem:[%s1 + $0x50] sm:$0xff]
  %v28 = vld [vmem:[%s1 + $0x58] sm:$0xff]
  %v29 = vld [vmem:[%s1 + $0x60] sm:$0xff]
  %v30 = vld [vmem:[%s1 + $0x68] sm:$0xff]
  %v31 = vld [vmem:[%s1 + $0x70] sm:$0xff]
  %v32 = vld [vmem:[%s1 + $0x78] sm:$0xff]
  %v33 = vld [vmem:[%s1 + $0x80] sm:$0xff]
  %v34 = vld [vmem:[%s1 + $0x88] sm:$0xff]
  %v35 = vld [vmem:[%s1 + $0x90] sm:$0xff]
  %v36 = vld [vmem:[%s1 + $0x98] sm:$0xff]
  %v37 = vld [vmem:[%s1 + $0xa0] sm:$0xff]
  %v38 = vld [vmem:[%s1 + $0xa8] sm:$0xff]
  %v39 = vld [vmem:[%s1 + $0xb0] sm:$0xff]
  %v40 = vld [vmem:[%s1 + $0xb8] sm:$0xff]
  %v41 = vld [vmem:[%s1 + $0xc0] sm:$0xff]
  %v42 = vld [vmem:[%s1 + $0xc8] sm:$0xff]
  %v43 = vld [vmem:[%s1 + $0xd0] sm:$0xff]
  %v44 = vld [vmem:[%s1 + $0xd8] sm:$0xff]
  %v45 = vld [vmem:[%s1 + $0xe0] sm:$0xff]
  %v46 = vld [vmem:[%s1 + $0xe8] sm:$0xff]
  %v47 = vld [vmem:[%s1 + $0xf0] sm:$0xff]
  %v48 = vld [vmem:[%s1 + $0xf8] sm:$0xff]
  %v49 = vld [vmem:[%s1 + $0x100] sm:$0xff]
  %v50 = vld [vmem:[%s1 + $0x108] sm:$0xff]
  %v51 = vld [vmem:[%s1 + $0x110] sm:$0xff]
  %v52 = vld [vmem:[%s1 + $0x118] sm:$0xff]
  %v53 = vld [vmem:[%s1 + $0x120] sm:$0xff]
  %v54 = vld [vmem:[%s1 + $0x128] sm:$0xff]
  %v55 = vld [vmem:[%s1 + $0x130] sm:$0xff]
  %v56 = vld [vmem:[%s1 + $0x138] sm:$0xff]
  %v57 = vld [vmem:[%s1 + $0x140] sm:$0xff]
  %v58 = vld [vmem:[%s1 + $0x148] sm:$0xff]
  %v59 = vld [vmem:[%s1 + $0x150] sm:$0xff]
  %v60 = vld [vmem:[%s1 + $0x158] sm:$0xff]
  %v61 = vld [vmem:[%s1 + $0x160] sm:$0xff]
  %v62 = vld [vmem:[%s1 + $0x168] sm:$0xff]
  %v63 = vld [vmem:[%s1 + $0x170] sm:$0xff]
  %v64 = vld [vmem:[%s1 + $0x178] sm:$0xff]
  %v65 = vld [vmem:[%s1 + $0x180] sm:$0x7]
  %v66 = vld [vmem:[%s1 + $0x188] sm:$0x7]
  %v67 = vld [vmem:[%s1 + $0x190] sm:$0x7]
  %v68 = vld [vmem:[%s1 + $0x198] sm:$0x7]
  %v69 = vld [vmem:[%s1 + $0x1a0] sm:$0x7]
  %v70 = vld [vmem:[%s1 + $0x1a8] sm:$0x7]
  %v71 = vld [vmem:[%s1 + $0x1b0] sm:$0x7]
  %v72 = vld [vmem:[%s1 + $0x1b8] sm:$0x7]
  %v73 = vld [vmem:[%s1 + $0x1c0] sm:$0x7]
  %v74 = vld [vmem:[%s1 + $0x1c8] sm:$0x7]
  %v75 = vld [vmem:[%s1 + $0x1d0] sm:$0x7]
  %v76 = vld [vmem:[%s1 + $0x1d8] sm:$0x7]
  %v77 = vld [vmem:[%s1 + $0x1e0] sm:$0x7]
  %v78 = vld [vmem:[%s1 + $0x1e8] sm:$0x7]
  %v79 = vld [vmem:[%s1 + $0x1f0] sm:$0x7]
  %v80 = vld [vmem:[%s1 + $0x1f8] sm:$0x7]
  %v81 = vpack.c.bf16 %v33, %v17
  %v82 = vpack.c.bf16 %v34, %v18
  %v83 = vpack.c.bf16 %v35, %v19
  %v84 = vpack.c.bf16 %v36, %v20
  %v85 = vpack.c.bf16 %v37, %v21
  %v86 = vpack.c.bf16 %v38, %v22
  %v87 = vpack.c.bf16 %v39, %v23
  %v88 = vpack.c.bf16 %v40, %v24
  %v89 = vpack.c.bf16 %v41, %v25
  %v90 = vpack.c.bf16 %v42, %v26
  %v91 = vpack.c.bf16 %v43, %v27
  %v92 = vpack.c.bf16 %v44, %v28
  %v93 = vpack.c.bf16 %v45, %v29
  %v94 = vpack.c.bf16 %v46, %v30
  %v95 = vpack.c.bf16 %v47, %v31
  %v96 = vpack.c.bf16 %v48, %v32
  %v97 = vpack.c.bf16 %v65, %v49
  %v98 = vpack.c.bf16 %v66, %v50
  %v99 = vpack.c.bf16 %v67, %v51
  %v100 = vpack.c.bf16 %v68, %v52
  %v101 = vpack.c.bf16 %v69, %v53
  %v102 = vpack.c.bf16 %v70, %v54
  %v103 = vpack.c.bf16 %v71, %v55
  %v104 = vpack.c.bf16 %v72, %v56
  %v105 = vpack.c.bf16 %v73, %v57
  %v106 = vpack.c.bf16 %v74, %v58
  %v107 = vpack.c.bf16 %v75, %v59
  %v108 = vpack.c.bf16 %v76, %v60
  %v109 = vpack.c.bf16 %v77, %v61
  %v110 = vpack.c.bf16 %v78, %v62
  %v111 = vpack.c.bf16 %v79, %v63
  %v112 = vpack.c.bf16 %v80, %v64
  %v113 = vld [vmem:[%s2] sm:$0xff]
  %115 = vset.pattern.permute.xlu0 0
  %116 = vperm.xlu0 %115, %v113
  %v117 = vpop.permute.xlu0 %116
  %vm119 = vcmask 220160
  %v121 = vsel %vm119, %v16, 0
  %vm123 = vcmask 1044480
  %vm124 = vcmask 1045504
  %v125 = vsel %vm123, 4294967295, 65535
  %v126 = vsel %vm124, %v125, 0
  %v128 = vand.u32 %v97, %v126
  %v131 = vand.u32 %v98, %v126
  %v134 = vand.u32 %v99, %v126
  %v137 = vand.u32 %v100, %v126
  %v140 = vand.u32 %v101, %v126
  %v143 = vand.u32 %v102, %v126
  %v146 = vand.u32 %v103, %v126
  %v149 = vand.u32 %v104, %v126
  %v152 = vand.u32 %v105, %v126
  %v155 = vand.u32 %v106, %v126
  %v158 = vand.u32 %v107, %v126
  %v161 = vand.u32 %v108, %v126
  %v164 = vand.u32 %v109, %v126
  %v167 = vand.u32 %v110, %v126
  %v170 = vand.u32 %v111, %v126
  %v173 = vand.u32 %v112, %v126
  %175 = vmatprep.subr.bf16.mxu0 0
  %176 = vmatpush1.bf16.msra.mxu0 0
  %177 = vmatprep.subr.bf16.mxu0 0
  %178 = vmatpush1.bf16.msra.mxu0 0
  %179 = vmatprep.subr.bf16.mxu0 0
  %180 = vmatpush1.bf16.msra.mxu0 0
  %181 = vmatprep.subr.bf16.mxu0 0
  %182 = vmatpush1.bf16.msra.mxu0 0
  %183 = vmatprep.subr.bf16.mxu0 0
  %184 = vmatpush1.bf16.msra.mxu0 0
  %185 = vmatprep.subr.bf16.mxu0 0
  %186 = vmatpush1.bf16.msra.mxu0 0
  %187 = vmatprep.subr.bf16.mxu0 %v131
  %188 = vmatpush1.bf16.msra.mxu0 %v128
  %189 = vmatprep.subr.bf16.mxu0 %v82
  %190 = vmatpush1.bf16.msra.mxu0 %v81
  %191 = vmatprep.subr.bf16.mxu0 0
  %192 = vmatpush2.bf16.msra.mxu0 0
  %193 = vmatprep.subr.bf16.mxu0 0
  %194 = vmatpush2.bf16.msra.mxu0 0
  %195 = vmatprep.subr.bf16.mxu0 0
  %196 = vmatpush2.bf16.msra.mxu0 0
  %197 = vmatprep.subr.bf16.mxu0 0
  %198 = vmatpush2.bf16.msra.mxu0 0
  %199 = vmatprep.subr.bf16.mxu0 0
  %200 = vmatpush2.bf16.msra.mxu0 0
  %201 = vmatprep.subr.bf16.mxu0 0
  %202 = vmatpush2.bf16.msra.mxu0 0
  %203 = vmatprep.subr.bf16.mxu0 0
  %204 = vmatpush2.bf16.msra.mxu0 0
  %205 = vmatprep.subr.bf16.mxu0 0
  %206 = vmatpush2.bf16.msra.mxu0 0
  %207 = vmatprep.mubr.bf16.mxu0 0
  %208 = vmatmul.mubr.bf16.gmra.mxu0 %v121
  %v209 = vpop.f32.mrf.mxu0
  %v210 = vadd.f32 %v117, %v209
  %v211 = vpop.f32.mrf.mxu0
  %v212 = vadd.f32 %v117, %v211
  %v213 = vpop.f32.mrf.mxu0
  %v214 = vpop.f32.mrf.mxu0
  %215 = vdwg.mxu0
  %216 = vmatprep.subr.bf16.mxu0 0
  %217 = vmatpush1.bf16.msra.mxu0 0
  %218 = vmatprep.subr.bf16.mxu0 0
  %219 = vmatpush1.bf16.msra.mxu0 0
  %220 = vmatprep.subr.bf16.mxu0 0
  %221 = vmatpush1.bf16.msra.mxu0 0
  %222 = vmatprep.subr.bf16.mxu0 0
  %223 = vmatpush1.bf16.msra.mxu0 0
  %224 = vmatprep.subr.bf16.mxu0 0
  %225 = vmatpush1.bf16.msra.mxu0 0
  %226 = vmatprep.subr.bf16.mxu0 0
  %227 = vmatpush1.bf16.msra.mxu0 0
  %228 = vmatprep.subr.bf16.mxu0 %v137
  %229 = vmatpush1.bf16.msra.mxu0 %v134
  %230 = vmatprep.subr.bf16.mxu0 %v84
  %231 = vmatpush1.bf16.msra.mxu0 %v83
  %232 = vmatprep.subr.bf16.mxu0 0
  %233 = vmatpush2.bf16.msra.mxu0 0
  %234 = vmatprep.subr.bf16.mxu0 0
  %235 = vmatpush2.bf16.msra.mxu0 0
  %236 = vmatprep.subr.bf16.mxu0 0
  %237 = vmatpush2.bf16.msra.mxu0 0
  %238 = vmatprep.subr.bf16.mxu0 0
  %239 = vmatpush2.bf16.msra.mxu0 0
  %240 = vmatprep.subr.bf16.mxu0 0
  %241 = vmatpush2.bf16.msra.mxu0 0
  %242 = vmatprep.subr.bf16.mxu0 0
  %243 = vmatpush2.bf16.msra.mxu0 0
  %244 = vmatprep.subr.bf16.mxu0 0
  %245 = vmatpush2.bf16.msra.mxu0 0
  %246 = vmatprep.subr.bf16.mxu0 0
  %247 = vmatpush2.bf16.msra.mxu0 0
  %248 = vmatprep.mubr.bf16.mxu0 0
  %249 = vmatmul.mubr.bf16.gmra.mxu0 %v121
  %v250 = vpop.f32.mrf.mxu0
  %v251 = vadd.f32 %v117, %v250
  %v252 = vpop.f32.mrf.mxu0
  %v253 = vadd.f32 %v117, %v252
  %v254 = vpop.f32.mrf.mxu0
  %v255 = vpop.f32.mrf.mxu0
  %256 = vdwg.mxu0
  %257 = vmatprep.subr.bf16.mxu0 0
  %258 = vmatpush1.bf16.msra.mxu0 0
  %259 = vmatprep.subr.bf16.mxu0 0
  %260 = vmatpush1.bf16.msra.mxu0 0
  %261 = vmatprep.subr.bf16.mxu0 0
  %262 = vmatpush1.bf16.msra.mxu0 0
  %263 = vmatprep.subr.bf16.mxu0 0
  %264 = vmatpush1.bf16.msra.mxu0 0
  %265 = vmatprep.subr.bf16.mxu0 0
  %266 = vmatpush1.bf16.msra.mxu0 0
  %267 = vmatprep.subr.bf16.mxu0 0
  %268 = vmatpush1.bf16.msra.mxu0 0
  %269 = vmatprep.subr.bf16.mxu0 %v143
  %270 = vmatpush1.bf16.msra.mxu0 %v140
  %271 = vmatprep.subr.bf16.mxu0 %v86
  %272 = vmatpush1.bf16.msra.mxu0 %v85
  %273 = vmatprep.subr.bf16.mxu0 0
  %274 = vmatpush2.bf16.msra.mxu0 0
  %275 = vmatprep.subr.bf16.mxu0 0
  %276 = vmatpush2.bf16.msra.mxu0 0
  %277 = vmatprep.subr.bf16.mxu0 0
  %278 = vmatpush2.bf16.msra.mxu0 0
  %279 = vmatprep.subr.bf16.mxu0 0
  %280 = vmatpush2.bf16.msra.mxu0 0
  %281 = vmatprep.subr.bf16.mxu0 0
  %282 = vmatpush2.bf16.msra.mxu0 0
  %283 = vmatprep.subr.bf16.mxu0 0
  %284 = vmatpush2.bf16.msra.mxu0 0
  %285 = vmatprep.subr.bf16.mxu0 0
  %286 = vmatpush2.bf16.msra.mxu0 0
  %287 = vmatprep.subr.bf16.mxu0 0
  %288 = vmatpush2.bf16.msra.mxu0 0
  %289 = vmatprep.mubr.bf16.mxu0 0
  %290 = vmatmul.mubr.bf16.gmra.mxu0 %v121
  %v291 = vpop.f32.mrf.mxu0
  %v292 = vadd.f32 %v117, %v291
  %v293 = vpop.f32.mrf.mxu0
  %v294 = vadd.f32 %v117, %v293
  %v295 = vpop.f32.mrf.mxu0
  %v296 = vpop.f32.mrf.mxu0
  %297 = vdwg.mxu0
  %298 = vmatprep.subr.bf16.mxu0 0
  %299 = vmatpush1.bf16.msra.mxu0 0
  %300 = vmatprep.subr.bf16.mxu0 0
  %301 = vmatpush1.bf16.msra.mxu0 0
  %302 = vmatprep.subr.bf16.mxu0 0
  %303 = vmatpush1.bf16.msra.mxu0 0
  %304 = vmatprep.subr.bf16.mxu0 0
  %305 = vmatpush1.bf16.msra.mxu0 0
  %306 = vmatprep.subr.bf16.mxu0 0
  %307 = vmatpush1.bf16.msra.mxu0 0
  %308 = vmatprep.subr.bf16.mxu0 0
  %309 = vmatpush1.bf16.msra.mxu0 0
  %310 = vmatprep.subr.bf16.mxu0 %v149
  %311 = vmatpush1.bf16.msra.mxu0 %v146
  %312 = vmatprep.subr.bf16.mxu0 %v88
  %313 = vmatpush1.bf16.msra.mxu0 %v87
  %314 = vmatprep.subr.bf16.mxu0 0
  %315 = vmatpush2.bf16.msra.mxu0 0
  %316 = vmatprep.subr.bf16.mxu0 0
  %317 = vmatpush2.bf16.msra.mxu0 0
  %318 = vmatprep.subr.bf16.mxu0 0
  %319 = vmatpush2.bf16.msra.mxu0 0
  %320 = vmatprep.subr.bf16.mxu0 0
  %321 = vmatpush2.bf16.msra.mxu0 0
  %322 = vmatprep.subr.bf16.mxu0 0
  %323 = vmatpush2.bf16.msra.mxu0 0
  %324 = vmatprep.subr.bf16.mxu0 0
  %325 = vmatpush2.bf16.msra.mxu0 0
  %326 = vmatprep.subr.bf16.mxu0 0
  %327 = vmatpush2.bf16.msra.mxu0 0
  %328 = vmatprep.subr.bf16.mxu0 0
  %329 = vmatpush2.bf16.msra.mxu0 0
  %330 = vmatprep.mubr.bf16.mxu0 0
  %331 = vmatmul.mubr.bf16.gmra.mxu0 %v121
  %v332 = vpop.f32.mrf.mxu0
  %v333 = vadd.f32 %v117, %v332
  %v334 = vpop.f32.mrf.mxu0
  %v335 = vadd.f32 %v117, %v334
  %v336 = vpop.f32.mrf.mxu0
  %v337 = vpop.f32.mrf.mxu0
  %338 = vdwg.mxu0
  %339 = vmatprep.subr.bf16.mxu0 0
  %340 = vmatpush1.bf16.msra.mxu0 0
  %341 = vmatprep.subr.bf16.mxu0 0
  %342 = vmatpush1.bf16.msra.mxu0 0
  %343 = vmatprep.subr.bf16.mxu0 0
  %344 = vmatpush1.bf16.msra.mxu0 0
  %345 = vmatprep.subr.bf16.mxu0 0
  %346 = vmatpush1.bf16.msra.mxu0 0
  %347 = vmatprep.subr.bf16.mxu0 0
  %348 = vmatpush1.bf16.msra.mxu0 0
  %349 = vmatprep.subr.bf16.mxu0 0
  %350 = vmatpush1.bf16.msra.mxu0 0
  %351 = vmatprep.subr.bf16.mxu0 %v155
  %352 = vmatpush1.bf16.msra.mxu0 %v152
  %353 = vmatprep.subr.bf16.mxu0 %v90
  %354 = vmatpush1.bf16.msra.mxu0 %v89
  %355 = vmatprep.subr.bf16.mxu0 0
  %356 = vmatpush2.bf16.msra.mxu0 0
  %357 = vmatprep.subr.bf16.mxu0 0
  %358 = vmatpush2.bf16.msra.mxu0 0
  %359 = vmatprep.subr.bf16.mxu0 0
  %360 = vmatpush2.bf16.msra.mxu0 0
  %361 = vmatprep.subr.bf16.mxu0 0
  %362 = vmatpush2.bf16.msra.mxu0 0
  %363 = vmatprep.subr.bf16.mxu0 0
  %364 = vmatpush2.bf16.msra.mxu0 0
  %365 = vmatprep.subr.bf16.mxu0 0
  %366 = vmatpush2.bf16.msra.mxu0 0
  %367 = vmatprep.subr.bf16.mxu0 0
  %368 = vmatpush2.bf16.msra.mxu0 0
  %369 = vmatprep.subr.bf16.mxu0 0
  %370 = vmatpush2.bf16.msra.mxu0 0
  %371 = vmatprep.mubr.bf16.mxu0 0
  %372 = vmatmul.mubr.bf16.gmra.mxu0 %v121
  %v373 = vpop.f32.mrf.mxu0
  %v374 = vadd.f32 %v117, %v373
  %v375 = vpop.f32.mrf.mxu0
  %v376 = vadd.f32 %v117, %v375
  %v377 = vpop.f32.mrf.mxu0
  %v378 = vpop.f32.mrf.mxu0
  %379 = vdwg.mxu0
  %380 = vmatprep.subr.bf16.mxu0 0
  %381 = vmatpush1.bf16.msra.mxu0 0
  %382 = vmatprep.subr.bf16.mxu0 0
  %383 = vmatpush1.bf16.msra.mxu0 0
  %384 = vmatprep.subr.bf16.mxu0 0
  %385 = vmatpush1.bf16.msra.mxu0 0
  %386 = vmatprep.subr.bf16.mxu0 0
  %387 = vmatpush1.bf16.msra.mxu0 0
  %388 = vmatprep.subr.bf16.mxu0 0
  %389 = vmatpush1.bf16.msra.mxu0 0
  %390 = vmatprep.subr.bf16.mxu0 0
  %391 = vmatpush1.bf16.msra.mxu0 0
  %392 = vmatprep.subr.bf16.mxu0 %v161
  %393 = vmatpush1.bf16.msra.mxu0 %v158
  %394 = vmatprep.subr.bf16.mxu0 %v92
  %395 = vmatpush1.bf16.msra.mxu0 %v91
  %396 = vmatprep.subr.bf16.mxu0 0
  %397 = vmatpush2.bf16.msra.mxu0 0
  %398 = vmatprep.subr.bf16.mxu0 0
  %399 = vmatpush2.bf16.msra.mxu0 0
  %400 = vmatprep.subr.bf16.mxu0 0
  %401 = vmatpush2.bf16.msra.mxu0 0
  %402 = vmatprep.subr.bf16.mxu0 0
  %403 = vmatpush2.bf16.msra.mxu0 0
  %404 = vmatprep.subr.bf16.mxu0 0
  %405 = vmatpush2.bf16.msra.mxu0 0
  %406 = vmatprep.subr.bf16.mxu0 0
  %407 = vmatpush2.bf16.msra.mxu0 0
  %408 = vmatprep.subr.bf16.mxu0 0
  %409 = vmatpush2.bf16.msra.mxu0 0
  %410 = vmatprep.subr.bf16.mxu0 0
  %411 = vmatpush2.bf16.msra.mxu0 0
  %412 = vmatprep.mubr.bf16.mxu0 0
  %413 = vmatmul.mubr.bf16.gmra.mxu0 %v121
  %v414 = vpop.f32.mrf.mxu0
  %v415 = vadd.f32 %v117, %v414
  %v416 = vpop.f32.mrf.mxu0
  %v417 = vadd.f32 %v117, %v416
  %v418 = vpop.f32.mrf.mxu0
  %v419 = vpop.f32.mrf.mxu0
  %420 = vdwg.mxu0
  %421 = vmatprep.subr.bf16.mxu0 0
  %422 = vmatpush1.bf16.msra.mxu0 0
  %423 = vmatprep.subr.bf16.mxu0 0
  %424 = vmatpush1.bf16.msra.mxu0 0
  %425 = vmatprep.subr.bf16.mxu0 0
  %426 = vmatpush1.bf16.msra.mxu0 0
  %427 = vmatprep.subr.bf16.mxu0 0
  %428 = vmatpush1.bf16.msra.mxu0 0
  %429 = vmatprep.subr.bf16.mxu0 0
  %430 = vmatpush1.bf16.msra.mxu0 0
  %431 = vmatprep.subr.bf16.mxu0 0
  %432 = vmatpush1.bf16.msra.mxu0 0
  %433 = vmatprep.subr.bf16.mxu0 %v167
  %434 = vmatpush1.bf16.msra.mxu0 %v164
  %435 = vmatprep.subr.bf16.mxu0 %v94
  %436 = vmatpush1.bf16.msra.mxu0 %v93
  %437 = vmatprep.subr.bf16.mxu0 0
  %438 = vmatpush2.bf16.msra.mxu0 0
  %439 = vmatprep.subr.bf16.mxu0 0
  %440 = vmatpush2.bf16.msra.mxu0 0
  %441 = vmatprep.subr.bf16.mxu0 0
  %442 = vmatpush2.bf16.msra.mxu0 0
  %443 = vmatprep.subr.bf16.mxu0 0
  %444 = vmatpush2.bf16.msra.mxu0 0
  %445 = vmatprep.subr.bf16.mxu0 0
  %446 = vmatpush2.bf16.msra.mxu0 0
  %447 = vmatprep.subr.bf16.mxu0 0
  %448 = vmatpush2.bf16.msra.mxu0 0
  %449 = vmatprep.subr.bf16.mxu0 0
  %450 = vmatpush2.bf16.msra.mxu0 0
  %451 = vmatprep.subr.bf16.mxu0 0
  %452 = vmatpush2.bf16.msra.mxu0 0
  %453 = vmatprep.mubr.bf16.mxu0 0
  %454 = vmatmul.mubr.bf16.gmra.mxu0 %v121
  %v455 = vpop.f32.mrf.mxu0
  %v456 = vadd.f32 %v117, %v455
  %v457 = vpop.f32.mrf.mxu0
  %v458 = vadd.f32 %v117, %v457
  %v459 = vpop.f32.mrf.mxu0
  %v460 = vpop.f32.mrf.mxu0
  %461 = vdwg.mxu0
  %462 = vmatprep.subr.bf16.mxu0 0
  %463 = vmatpush1.bf16.msra.mxu0 0
  %464 = vmatprep.subr.bf16.mxu0 0
  %465 = vmatpush1.bf16.msra.mxu0 0
  %466 = vmatprep.subr.bf16.mxu0 0
  %467 = vmatpush1.bf16.msra.mxu0 0
  %468 = vmatprep.subr.bf16.mxu0 0
  %469 = vmatpush1.bf16.msra.mxu0 0
  %470 = vmatprep.subr.bf16.mxu0 0
  %471 = vmatpush1.bf16.msra.mxu0 0
  %472 = vmatprep.subr.bf16.mxu0 0
  %473 = vmatpush1.bf16.msra.mxu0 0
  %474 = vmatprep.subr.bf16.mxu0 %v173
  %475 = vmatpush1.bf16.msra.mxu0 %v170
  %476 = vmatprep.subr.bf16.mxu0 %v96
  %477 = vmatpush1.bf16.msra.mxu0 %v95
  %478 = vmatprep.subr.bf16.mxu0 0
  %479 = vmatpush2.bf16.msra.mxu0 0
  %480 = vmatprep.subr.bf16.mxu0 0
  %481 = vmatpush2.bf16.msra.mxu0 0
  %482 = vmatprep.subr.bf16.mxu0 0
  %483 = vmatpush2.bf16.msra.mxu0 0
  %484 = vmatprep.subr.bf16.mxu0 0
  %485 = vmatpush2.bf16.msra.mxu0 0
  %486 = vmatprep.subr.bf16.mxu0 0
  %487 = vmatpush2.bf16.msra.mxu0 0
  %488 = vmatprep.subr.bf16.mxu0 0
  %489 = vmatpush2.bf16.msra.mxu0 0
  %490 = vmatprep.subr.bf16.mxu0 0
  %491 = vmatpush2.bf16.msra.mxu0 0
  %492 = vmatprep.subr.bf16.mxu0 0
  %493 = vmatpush2.bf16.msra.mxu0 0
  %494 = vmatprep.mubr.bf16.mxu0 0
  %495 = vmatmul.mubr.bf16.gmra.mxu0 %v121
  %v496 = vpop.f32.mrf.mxu0
  %v497 = vadd.f32 %v117, %v496
  %v498 = vpop.f32.mrf.mxu0
  %v499 = vadd.f32 %v117, %v498
  %v500 = vpop.f32.mrf.mxu0
  %v501 = vpop.f32.mrf.mxu0
  %502 = vdwg.mxu0
  %vm503 = vcmp.gt.f32.partialorder %v210, 0.0
  %vm504 = vcmp.gt.f32.partialorder %v212, 0.0
  %vm505 = vcmp.gt.f32.partialorder %v251, 0.0
  %vm506 = vcmp.gt.f32.partialorder %v253, 0.0
  %vm507 = vcmp.gt.f32.partialorder %v292, 0.0
  %vm508 = vcmp.gt.f32.partialorder %v294, 0.0
  %vm509 = vcmp.gt.f32.partialorder %v333, 0.0
  %vm510 = vcmp.gt.f32.partialorder %v335, 0.0
  %vm511 = vcmp.gt.f32.partialorder %v374, 0.0
  %vm512 = vcmp.gt.f32.partialorder %v376, 0.0
  %vm513 = vcmp.gt.f32.partialorder %v415, 0.0
  %vm514 = vcmp.gt.f32.partialorder %v417, 0.0
  %vm515 = vcmp.gt.f32.partialorder %v456, 0.0
  %vm516 = vcmp.gt.f32.partialorder %v458, 0.0
  %vm517 = vcmp.gt.f32.partialorder %v497, 0.0
  %vm518 = vcmp.gt.f32.partialorder %v499, 0.0
  %v519 = vmul.f32 %v210, 0.1
  %v520 = vmul.f32 %v212, 0.1
  %v521 = vmul.f32 %v251, 0.1
  %v522 = vmul.f32 %v253, 0.1
  %v523 = vmul.f32 %v292, 0.1
  %v524 = vmul.f32 %v294, 0.1
  %v525 = vmul.f32 %v333, 0.1
  %v526 = vmul.f32 %v335, 0.1
  %v527 = vmul.f32 %v374, 0.1
  %v528 = vmul.f32 %v376, 0.1
  %v529 = vmul.f32 %v415, 0.1
  %v530 = vmul.f32 %v417, 0.1
  %v531 = vmul.f32 %v456, 0.1
  %v532 = vmul.f32 %v458, 0.1
  %v533 = vmul.f32 %v497, 0.1
  %v534 = vmul.f32 %v499, 0.1
  %v535 = vsel %vm503, %v210, %v519
  %v536 = vsel %vm504, %v212, %v520
  %v537 = vsel %vm505, %v251, %v521
  %v538 = vsel %vm506, %v253, %v522
  %v539 = vsel %vm507, %v292, %v523
  %v540 = vsel %vm508, %v294, %v524
  %v541 = vsel %vm509, %v333, %v525
  %v542 = vsel %vm510, %v335, %v526
  %v543 = vsel %vm511, %v374, %v527
  %v544 = vsel %vm512, %v376, %v528
  %v545 = vsel %vm513, %v415, %v529
  %v546 = vsel %vm514, %v417, %v530
  %v547 = vsel %vm515, %v456, %v531
  %v548 = vsel %vm516, %v458, %v532
  %v549 = vsel %vm517, %v497, %v533
  %v550 = vsel %vm518, %v499, %v534
  %551 = vst [vmem:[%s3] sm:$0xff] %v535
  %552 = vst [vmem:[%s3 + $0x8] sm:$0xff] %v536
  %553 = vst [vmem:[%s3 + $0x10] sm:$0xff] %v537
  %554 = vst [vmem:[%s3 + $0x18] sm:$0xff] %v538
  %555 = vst [vmem:[%s3 + $0x20] sm:$0xff] %v539
  %556 = vst [vmem:[%s3 + $0x28] sm:$0xff] %v540
  %557 = vst [vmem:[%s3 + $0x30] sm:$0xff] %v541
  %558 = vst [vmem:[%s3 + $0x38] sm:$0xff] %v542
  %559 = vst [vmem:[%s3 + $0x40] sm:$0xff] %v543
  %560 = vst [vmem:[%s3 + $0x48] sm:$0xff] %v544
  %561 = vst [vmem:[%s3 + $0x50] sm:$0xff] %v545
  %562 = vst [vmem:[%s3 + $0x58] sm:$0xff] %v546
  %563 = vst [vmem:[%s3 + $0x60] sm:$0xff] %v547
  %564 = vst [vmem:[%s3 + $0x68] sm:$0xff] %v548
  %565 = vst [vmem:[%s3 + $0x70] sm:$0xff] %v549
  %566 = vst [vmem:[%s3 + $0x78] sm:$0xff] %v550
  // Predicated region
  $region14: #{_lambda_.11} parent=0 // pred_check
    _
  $region15: #{_lambda_.11} parent=0 // pred_check_branch
    %568 = sbr.rel (0) target = $region17
  $region16: #{_lambda_.11} parent=0 // pred_region
    _
  $region17: #{_lambda_.11} parent=0 // pred_fallthru
    _
  // Predicated region
  $region18: #{_lambda_.11} parent=0 // pred_check
    _
  $region19: #{_lambda_.11} parent=0 // pred_check_branch
    %570 = sbr.rel (0) target = $region21
  $region20: #{_lambda_.11} parent=0 // pred_region
    _
  $region21: #{_lambda_.11} parent=0 // pred_fallthru
    _

// kernel: _lambda_.12
$region0: #{_lambda_.12}
  #allocation0 [shape = 'u32[]', space=smem, size = 0x4, offset = 0x4, fixed_abs, tag = 'smem constant byte address 0x4 - core index']
  #allocation1 [shape = 'u32[144,128]{1,0:T(1,128)}', space=vmem, size = 0x12000, scoped, tag = 'internal scratch']
  %s0 = inlined_call_operand.vmem [shape: f32[16,72], index: 0, kind: input, shape index: {}]
  %s1 = inlined_call_operand.vmem [shape: f32[72,512], index: 1, kind: input, shape index: {}]
  %s2 = inlined_call_operand.vmem [shape: f32[16,1], index: 2, kind: input, shape index: {}]
  %s3 = inlined_call_operand.vmem [shape: f32[16,512], index: 3, kind: output, shape index: {}]
  %s4 = sld [smem:[#allocation0]]
  $region22: #{_lambda_.12} parent=0
    _
  %s6 = ssub.s32 1, %s4
  %s7 = scalar_select 0, %s6, %s4
  // Predicated region
  $region2: #{_lambda_.12} parent=0 // pred_check
    _
  $region3: #{_lambda_.12} parent=0 // pred_check_branch
    %9 = sbr.rel (0) target = $region5
  $region4: #{_lambda_.12} parent=0 // pred_region
    _
  $region5: #{_lambda_.12} parent=0 // pred_fallthru
    _
  // Predicated region
  $region6: #{_lambda_.12} parent=0 // pred_check
    _
  $region7: #{_lambda_.12} parent=0 // pred_check_branch
    %11 = sbr.rel (0) target = $region9
  $region8: #{_lambda_.12} parent=0 // pred_region
    _
  $region9: #{_lambda_.12} parent=0 // pred_fallthru
    _
  // Predicated region
  $region10: #{_lambda_.12} parent=0 // pred_check
    _
  $region11: #{_lambda_.12} parent=0 // pred_check_branch
    %13 = sbr.rel (0) target = $region13
  $region12: #{_lambda_.12} parent=0 // pred_region
    _
  $region13: #{_lambda_.12} parent=0 // pred_fallthru
    _
  %v15 = vld [vmem:[%s0] sm:$0xff]
  %v16 = vld [vmem:[%s0 + $0x8] sm:$0xff]
  %v17 = vpack.c.bf16 %v16, %v15
  %v18 = vld [vmem:[%s1] sm:$0xff]
  %v19 = vld [vmem:[%s1 + $0x8] sm:$0xff]
  %v20 = vld [vmem:[%s1 + $0x10] sm:$0xff]
  %v21 = vld [vmem:[%s1 + $0x18] sm:$0xff]
  %v22 = vld [vmem:[%s1 + $0x20] sm:$0xff]
  %v23 = vld [vmem:[%s1 + $0x28] sm:$0xff]
  %v24 = vld [vmem:[%s1 + $0x30] sm:$0xff]
  %v25 = vld [vmem:[%s1 + $0x38] sm:$0xff]
  %v26 = vld [vmem:[%s1 + $0x40] sm:$0xff]
  %v27 = vld [vmem:[%s1 + $0x48] sm:$0xff]
  %v28 = vld [vmem:[%s1 + $0x50] sm:$0xff]
  %v29 = vld [vmem:[%s1 + $0x58] sm:$0xff]
  %v30 = vld [vmem:[%s1 + $0x60] sm:$0xff]
  %v31 = vld [vmem:[%s1 + $0x68] sm:$0xff]
  %v32 = vld [vmem:[%s1 + $0x70] sm:$0xff]
  %v33 = vld [vmem:[%s1 + $0x78] sm:$0xff]
  %v34 = vld [vmem:[%s1 + $0x80] sm:$0xff]
  %v35 = vld [vmem:[%s1 + $0x88] sm:$0xff]
  %v36 = vld [vmem:[%s1 + $0x90] sm:$0xff]
  %v37 = vld [vmem:[%s1 + $0x98] sm:$0xff]
  %v38 = vld [vmem:[%s1 + $0xa0] sm:$0xff]
  %v39 = vld [vmem:[%s1 + $0xa8] sm:$0xff]
  %v40 = vld [vmem:[%s1 + $0xb0] sm:$0xff]
  %v41 = vld [vmem:[%s1 + $0xb8] sm:$0xff]
  %v42 = vld [vmem:[%s1 + $0xc0] sm:$0xff]
  %v43 = vld [vmem:[%s1 + $0xc8] sm:$0xff]
  %v44 = vld [vmem:[%s1 + $0xd0] sm:$0xff]
  %v45 = vld [vmem:[%s1 + $0xd8] sm:$0xff]
  %v46 = vld [vmem:[%s1 + $0xe0] sm:$0xff]
  %v47 = vld [vmem:[%s1 + $0xe8] sm:$0xff]
  %v48 = vld [vmem:[%s1 + $0xf0] sm:$0xff]
  %v49 = vld [vmem:[%s1 + $0xf8] sm:$0xff]
  %v50 = vld [vmem:[%s1 + $0x100] sm:$0xff]
  %v51 = vld [vmem:[%s1 + $0x108] sm:$0xff]
  %v52 = vld [vmem:[%s1 + $0x110] sm:$0xff]
  %v53 = vld [vmem:[%s1 + $0x118] sm:$0xff]
  %v54 = vpack.c.bf16 %v22, %v18
  %v55 = vpack.c.bf16 %v23, %v19
  %v56 = vpack.c.bf16 %v24, %v20
  %v57 = vpack.c.bf16 %v25, %v21
  %v58 = vpack.c.bf16 %v30, %v26
  %v59 = vpack.c.bf16 %v31, %v27
  %v60 = vpack.c.bf16 %v32, %v28
  %v61 = vpack.c.bf16 %v33, %v29
  %v62 = vpack.c.bf16 %v38, %v34
  %v63 = vpack.c.bf16 %v39, %v35
  %v64 = vpack.c.bf16 %v40, %v36
  %v65 = vpack.c.bf16 %v41, %v37
  %v66 = vpack.c.bf16 %v46, %v42
  %v67 = vpack.c.bf16 %v47, %v43
  %v68 = vpack.c.bf16 %v48, %v44
  %v69 = vpack.c.bf16 %v49, %v45
  %v70 = vpack.c.bf16 %v50, %v50
  %v71 = vpack.c.bf16 %v51, %v51
  %v72 = vpack.c.bf16 %v52, %v52
  %v73 = vpack.c.bf16 %v53, %v53
  %v74 = vld [vmem:[%s2] sm:$0xff]
  %v75 = vld [vmem:[%s2 + $0x8] sm:$0xff]
  %77 = vset.pattern.permute.xlu0 0
  %78 = vperm.xlu0 %77, %v74
  %v79 = vpop.permute.xlu0 %78
  %82 = vset.pattern.permute.xlu0 0
  %83 = vperm.xlu0 %82, %v75
  %v84 = vpop.permute.xlu0 %83
  %vm86 = vcmask 588800
  %v88 = vsel %vm86, %v17, 0
  %vm90 = vcmask 1043456
  %v92 = vsel %vm90, %v70, 0
  %v95 = vsel %vm90, %v71, 0
  %v98 = vsel %vm90, %v72, 0
  %v101 = vsel %vm90, %v73, 0
  %103 = vmatprep.subr.bf16.mxu0 0
  %104 = vmatpush1.bf16.msra.mxu0 0
  %105 = vmatprep.subr.bf16.mxu0 0
  %106 = vmatpush1.bf16.msra.mxu0 0
  %107 = vmatprep.subr.bf16.mxu0 0
  %108 = vmatpush1.bf16.msra.mxu0 0
  %109 = vmatprep.subr.bf16.mxu0 %v95
  %110 = vmatpush1.bf16.msra.mxu0 %v92
  %111 = vmatprep.subr.bf16.mxu0 %v67
  %112 = vmatpush1.bf16.msra.mxu0 %v66
  %113 = vmatprep.subr.bf16.mxu0 %v63
  %114 = vmatpush1.bf16.msra.mxu0 %v62
  %115 = vmatprep.subr.bf16.mxu0 %v59
  %116 = vmatpush1.bf16.msra.mxu0 %v58
  %117 = vmatprep.subr.bf16.mxu0 %v55
  %118 = vmatpush1.bf16.msra.mxu0 %v54
  %119 = vmatprep.subr.bf16.mxu0 0
  %120 = vmatpush2.bf16.msra.mxu0 0
  %121 = vmatprep.subr.bf16.mxu0 0
  %122 = vmatpush2.bf16.msra.mxu0 0
  %123 = vmatprep.subr.bf16.mxu0 0
  %124 = vmatpush2.bf16.msra.mxu0 0
  %125 = vmatprep.subr.bf16.mxu0 0
  %126 = vmatpush2.bf16.msra.mxu0 0
  %127 = vmatprep.subr.bf16.mxu0 0
  %128 = vmatpush2.bf16.msra.mxu0 0
  %129 = vmatprep.subr.bf16.mxu0 0
  %130 = vmatpush2.bf16.msra.mxu0 0
  %131 = vmatprep.subr.bf16.mxu0 0
  %132 = vmatpush2.bf16.msra.mxu0 0
  %133 = vmatprep.subr.bf16.mxu0 0
  %134 = vmatpush2.bf16.msra.mxu0 0
  %135 = vmatprep.mubr.bf16.mxu0 0
  %136 = vmatmul.mubr.bf16.gmra.mxu0 %v88
  %v137 = vpop.f32.mrf.mxu0
  %v138 = vadd.f32 %v79, %v137
  %v139 = vpop.f32.mrf.mxu0
  %v140 = vadd.f32 %v79, %v139
  %v141 = vpop.f32.mrf.mxu0
  %v142 = vadd.f32 %v84, %v141
  %v143 = vpop.f32.mrf.mxu0
  %v144 = vadd.f32 %v84, %v143
  %145 = vdwg.mxu0
  %146 = vmatprep.subr.bf16.mxu0 0
  %147 = vmatpush1.bf16.msra.mxu0 0
  %148 = vmatprep.subr.bf16.mxu0 0
  %149 = vmatpush1.bf16.msra.mxu0 0
  %150 = vmatprep.subr.bf16.mxu0 0
  %151 = vmatpush1.bf16.msra.mxu0 0
  %152 = vmatprep.subr.bf16.mxu0 %v101
  %153 = vmatpush1.bf16.msra.mxu0 %v98
  %154 = vmatprep.subr.bf16.mxu0 %v69
  %155 = vmatpush1.bf16.msra.mxu0 %v68
  %156 = vmatprep.subr.bf16.mxu0 %v65
  %157 = vmatpush1.bf16.msra.mxu0 %v64
  %158 = vmatprep.subr.bf16.mxu0 %v61
  %159 = vmatpush1.bf16.msra.mxu0 %v60
  %160 = vmatprep.subr.bf16.mxu0 %v57
  %161 = vmatpush1.bf16.msra.mxu0 %v56
  %162 = vmatprep.subr.bf16.mxu0 0
  %163 = vmatpush2.bf16.msra.mxu0 0
  %164 = vmatprep.subr.bf16.mxu0 0
  %165 = vmatpush2.bf16.msra.mxu0 0
  %166 = vmatprep.subr.bf16.mxu0 0
  %167 = vmatpush2.bf16.msra.mxu0 0
  %168 = vmatprep.subr.bf16.mxu0 0
  %169 = vmatpush2.bf16.msra.mxu0 0
  %170 = vmatprep.subr.bf16.mxu0 0
  %171 = vmatpush2.bf16.msra.mxu0 0
  %172 = vmatprep.subr.bf16.mxu0 0
  %173 = vmatpush2.bf16.msra.mxu0 0
  %174 = vmatprep.subr.bf16.mxu0 0
  %175 = vmatpush2.bf16.msra.mxu0 0
  %176 = vmatprep.subr.bf16.mxu0 0
  %177 = vmatpush2.bf16.msra.mxu0 0
  %178 = vmatprep.mubr.bf16.mxu0 0
  %179 = vmatmul.mubr.bf16.gmra.mxu0 %v88
  %v180 = vpop.f32.mrf.mxu0
  %v181 = vadd.f32 %v79, %v180
  %v182 = vpop.f32.mrf.mxu0
  %v183 = vadd.f32 %v79, %v182
  %v184 = vpop.f32.mrf.mxu0
  %v185 = vadd.f32 %v84, %v184
  %v186 = vpop.f32.mrf.mxu0
  %v187 = vadd.f32 %v84, %v186
  %188 = vdwg.mxu0
  %vm189 = vcmp.gt.f32.partialorder %v138, 0.0
  %vm190 = vcmp.gt.f32.partialorder %v140, 0.0
  %vm191 = vcmp.gt.f32.partialorder %v181, 0.0
  %vm192 = vcmp.gt.f32.partialorder %v183, 0.0
  %vm193 = vcmp.gt.f32.partialorder %v142, 0.0
  %vm194 = vcmp.gt.f32.partialorder %v144, 0.0
  %vm195 = vcmp.gt.f32.partialorder %v185, 0.0
  %vm196 = vcmp.gt.f32.partialorder %v187, 0.0
  %v197 = vmul.f32 %v138, 0.1
  %v198 = vmul.f32 %v140, 0.1
  %v199 = vmul.f32 %v181, 0.1
  %v200 = vmul.f32 %v183, 0.1
  %v201 = vmul.f32 %v142, 0.1
  %v202 = vmul.f32 %v144, 0.1
  %v203 = vmul.f32 %v185, 0.1
  %v204 = vmul.f32 %v187, 0.1
  %v205 = vsel %vm189, %v138, %v197
  %v206 = vsel %vm190, %v140, %v198
  %v207 = vsel %vm191, %v181, %v199
  %v208 = vsel %vm192, %v183, %v200
  %v209 = vsel %vm193, %v142, %v201
  %v210 = vsel %vm194, %v144, %v202
  %v211 = vsel %vm195, %v185, %v203
  %v212 = vsel %vm196, %v187, %v204
  %213 = vst [vmem:[%s3] sm:$0xff] %v205
  %214 = vst [vmem:[%s3 + $0x8] sm:$0xff] %v206
  %215 = vst [vmem:[%s3 + $0x10] sm:$0xff] %v207
  %216 = vst [vmem:[%s3 + $0x18] sm:$0xff] %v208
  %217 = vst [vmem:[%s3 + $0x20] sm:$0xff] %v209
  %218 = vst [vmem:[%s3 + $0x28] sm:$0xff] %v210
  %219 = vst [vmem:[%s3 + $0x30] sm:$0xff] %v211
  %220 = vst [vmem:[%s3 + $0x38] sm:$0xff] %v212
  // Predicated region
  $region14: #{_lambda_.12} parent=0 // pred_check
    _
  $region15: #{_lambda_.12} parent=0 // pred_check_branch
    %222 = sbr.rel (0) target = $region17
  $region16: #{_lambda_.12} parent=0 // pred_region
    _
  $region17: #{_lambda_.12} parent=0 // pred_fallthru
    _
  // Predicated region
  $region18: #{_lambda_.12} parent=0 // pred_check
    _
  $region19: #{_lambda_.12} parent=0 // pred_check_branch
    %224 = sbr.rel (0) target = $region21
  $region20: #{_lambda_.12} parent=0 // pred_region
    _
  $region21: #{_lambda_.12} parent=0 // pred_fallthru
    _

// kernel: _lambda_.13
$region0: #{_lambda_.13}
  #allocation0 [shape = 'u32[]', space=smem, size = 0x4, offset = 0x4, fixed_abs, tag = 'smem constant byte address 0x4 - core index']
  #allocation1 [shape = 'u32[144,128]{1,0:T(1,128)}', space=vmem, size = 0x12000, scoped, tag = 'internal scratch']
  %s0 = inlined_call_operand.vmem [shape: f32[16,144], index: 0, kind: input, shape index: {}]
  %s1 = inlined_call_operand.vmem [shape: f32[144,512], index: 1, kind: input, shape index: {}]
  %s2 = inlined_call_operand.vmem [shape: f32[16,1], index: 2, kind: input, shape index: {}]
  %s3 = inlined_call_operand.vmem [shape: f32[16,512], index: 3, kind: output, shape index: {}]
  %s4 = sld [smem:[#allocation0]]
  $region22: #{_lambda_.13} parent=0
    _
  %s6 = ssub.s32 1, %s4
  %s7 = scalar_select 0, %s6, %s4
  // Predicated region
  $region2: #{_lambda_.13} parent=0 // pred_check
    _
  $region3: #{_lambda_.13} parent=0 // pred_check_branch
    %9 = sbr.rel (0) target = $region5
  $region4: #{_lambda_.13} parent=0 // pred_region
    _
  $region5: #{_lambda_.13} parent=0 // pred_fallthru
    _
  // Predicated region
  $region6: #{_lambda_.13} parent=0 // pred_check
    _
  $region7: #{_lambda_.13} parent=0 // pred_check_branch
    %11 = sbr.rel (0) target = $region9
  $region8: #{_lambda_.13} parent=0 // pred_region
    _
  $region9: #{_lambda_.13} parent=0 // pred_fallthru
    _
  // Predicated region
  $region10: #{_lambda_.13} parent=0 // pred_check
    _
  $region11: #{_lambda_.13} parent=0 // pred_check_branch
    %13 = sbr.rel (0) target = $region13
  $region12: #{_lambda_.13} parent=0 // pred_region
    _
  $region13: #{_lambda_.13} parent=0 // pred_fallthru
    _
  %v15 = vld [vmem:[%s0] sm:$0xff]
  %v16 = vld [vmem:[%s0 + $0x8] sm:$0xff]
  %v17 = vld [vmem:[%s0 + $0x10] sm:$0xff]
  %v18 = vld [vmem:[%s0 + $0x18] sm:$0xff]
  %v19 = vpack.c.bf16 %v17, %v15
  %v20 = vpack.c.bf16 %v18, %v16
  %v21 = vld [vmem:[%s1] sm:$0xff]
  %v22 = vld [vmem:[%s1 + $0x8] sm:$0xff]
  %v23 = vld [vmem:[%s1 + $0x10] sm:$0xff]
  %v24 = vld [vmem:[%s1 + $0x18] sm:$0xff]
  %v25 = vld [vmem:[%s1 + $0x20] sm:$0xff]
  %v26 = vld [vmem:[%s1 + $0x28] sm:$0xff]
  %v27 = vld [vmem:[%s1 + $0x30] sm:$0xff]
  %v28 = vld [vmem:[%s1 + $0x38] sm:$0xff]
  %v29 = vld [vmem:[%s1 + $0x40] sm:$0xff]
  %v30 = vld [vmem:[%s1 + $0x48] sm:$0xff]
  %v31 = vld [vmem:[%s1 + $0x50] sm:$0xff]
  %v32 = vld [vmem:[%s1 + $0x58] sm:$0xff]
  %v33 = vld [vmem:[%s1 + $0x60] sm:$0xff]
  %v34 = vld [vmem:[%s1 + $0x68] sm:$0xff]
  %v35 = vld [vmem:[%s1 + $0x70] sm:$0xff]
  %v36 = vld [vmem:[%s1 + $0x78] sm:$0xff]
  %v37 = vld [vmem:[%s1 + $0x80] sm:$0xff]
  %v38 = vld [vmem:[%s1 + $0x88] sm:$0xff]
  %v39 = vld [vmem:[%s1 + $0x90] sm:$0xff]
  %v40 = vld [vmem:[%s1 + $0x98] sm:$0xff]
  %v41 = vld [vmem:[%s1 + $0xa0] sm:$0xff]
  %v42 = vld [vmem:[%s1 + $0xa8] sm:$0xff]
  %v43 = vld [vmem:[%s1 + $0xb0] sm:$0xff]
  %v44 = vld [vmem:[%s1 + $0xb8] sm:$0xff]
  %v45 = vld [vmem:[%s1 + $0xc0] sm:$0xff]
  %v46 = vld [vmem:[%s1 + $0xc8] sm:$0xff]
  %v47 = vld [vmem:[%s1 + $0xd0] sm:$0xff]
  %v48 = vld [vmem:[%s1 + $0xd8] sm:$0xff]
  %v49 = vld [vmem:[%s1 + $0xe0] sm:$0xff]
  %v50 = vld [vmem:[%s1 + $0xe8] sm:$0xff]
  %v51 = vld [vmem:[%s1 + $0xf0] sm:$0xff]
  %v52 = vld [vmem:[%s1 + $0xf8] sm:$0xff]
  %v53 = vld [vmem:[%s1 + $0x100] sm:$0xff]
  %v54 = vld [vmem:[%s1 + $0x108] sm:$0xff]
  %v55 = vld [vmem:[%s1 + $0x110] sm:$0xff]
  %v56 = vld [vmem:[%s1 + $0x118] sm:$0xff]
  %v57 = vld [vmem:[%s1 + $0x120] sm:$0xff]
  %v58 = vld [vmem:[%s1 + $0x128] sm:$0xff]
  %v59 = vld [vmem:[%s1 + $0x130] sm:$0xff]
  %v60 = vld [vmem:[%s1 + $0x138] sm:$0xff]
  %v61 = vld [vmem:[%s1 + $0x140] sm:$0xff]
  %v62 = vld [vmem:[%s1 + $0x148] sm:$0xff]
  %v63 = vld [vmem:[%s1 + $0x150] sm:$0xff]
  %v64 = vld [vmem:[%s1 + $0x158] sm:$0xff]
  %v65 = vld [vmem:[%s1 + $0x160] sm:$0xff]
  %v66 = vld [vmem:[%s1 + $0x168] sm:$0xff]
  %v67 = vld [vmem:[%s1 + $0x170] sm:$0xff]
  %v68 = vld [vmem:[%s1 + $0x178] sm:$0xff]
  %v69 = vld [vmem:[%s1 + $0x180] sm:$0xff]
  %v70 = vld [vmem:[%s1 + $0x188] sm:$0xff]
  %v71 = vld [vmem:[%s1 + $0x190] sm:$0xff]
  %v72 = vld [vmem:[%s1 + $0x198] sm:$0xff]
  %v73 = vld [vmem:[%s1 + $0x1a0] sm:$0xff]
  %v74 = vld [vmem:[%s1 + $0x1a8] sm:$0xff]
  %v75 = vld [vmem:[%s1 + $0x1b0] sm:$0xff]
  %v76 = vld [vmem:[%s1 + $0x1b8] sm:$0xff]
  %v77 = vld [vmem:[%s1 + $0x1c0] sm:$0xff]
  %v78 = vld [vmem:[%s1 + $0x1c8] sm:$0xff]
  %v79 = vld [vmem:[%s1 + $0x1d0] sm:$0xff]
  %v80 = vld [vmem:[%s1 + $0x1d8] sm:$0xff]
  %v81 = vld [vmem:[%s1 + $0x1e0] sm:$0xff]
  %v82 = vld [vmem:[%s1 + $0x1e8] sm:$0xff]
  %v83 = vld [vmem:[%s1 + $0x1f0] sm:$0xff]
  %v84 = vld [vmem:[%s1 + $0x1f8] sm:$0xff]
  %v85 = vld [vmem:[%s1 + $0x200] sm:$0xff]
  %v86 = vld [vmem:[%s1 + $0x208] sm:$0xff]
  %v87 = vld [vmem:[%s1 + $0x210] sm:$0xff]
  %v88 = vld [vmem:[%s1 + $0x218] sm:$0xff]
  %v89 = vld [vmem:[%s1 + $0x220] sm:$0xff]
  %v90 = vld [vmem:[%s1 + $0x228] sm:$0xff]
  %v91 = vld [vmem:[%s1 + $0x230] sm:$0xff]
  %v92 = vld [vmem:[%s1 + $0x238] sm:$0xff]
  %v93 = vpack.c.bf16 %v25, %v21
  %v94 = vpack.c.bf16 %v26, %v22
  %v95 = vpack.c.bf16 %v27, %v23
  %v96 = vpack.c.bf16 %v28, %v24
  %v97 = vpack.c.bf16 %v33, %v29
  %v98 = vpack.c.bf16 %v34, %v30
  %v99 = vpack.c.bf16 %v35, %v31
  %v100 = vpack.c.bf16 %v36, %v32
  %v101 = vpack.c.bf16 %v41, %v37
  %v102 = vpack.c.bf16 %v42, %v38
  %v103 = vpack.c.bf16 %v43, %v39
  %v104 = vpack.c.bf16 %v44, %v40
  %v105 = vpack.c.bf16 %v49, %v45
  %v106 = vpack.c.bf16 %v50, %v46
  %v107 = vpack.c.bf16 %v51, %v47
  %v108 = vpack.c.bf16 %v52, %v48
  %v109 = vpack.c.bf16 %v57, %v53
  %v110 = vpack.c.bf16 %v58, %v54
  %v111 = vpack.c.bf16 %v59, %v55
  %v112 = vpack.c.bf16 %v60, %v56
  %v113 = vpack.c.bf16 %v65, %v61
  %v114 = vpack.c.bf16 %v66, %v62
  %v115 = vpack.c.bf16 %v67, %v63
  %v116 = vpack.c.bf16 %v68, %v64
  %v117 = vpack.c.bf16 %v73, %v69
  %v118 = vpack.c.bf16 %v74, %v70
  %v119 = vpack.c.bf16 %v75, %v71
  %v120 = vpack.c.bf16 %v76, %v72
  %v121 = vpack.c.bf16 %v81, %v77
  %v122 = vpack.c.bf16 %v82, %v78
  %v123 = vpack.c.bf16 %v83, %v79
  %v124 = vpack.c.bf16 %v84, %v80
  %v125 = vpack.c.bf16 %v89, %v85
  %v126 = vpack.c.bf16 %v90, %v86
  %v127 = vpack.c.bf16 %v91, %v87
  %v128 = vpack.c.bf16 %v92, %v88
  %v129 = vld [vmem:[%s2] sm:$0xff]
  %v130 = vld [vmem:[%s2 + $0x8] sm:$0xff]
  %132 = vset.pattern.permute.xlu0 0
  %133 = vperm.xlu0 %132, %v129
  %v134 = vpop.permute.xlu0 %133
  %137 = vset.pattern.permute.xlu0 0
  %138 = vperm.xlu0 %137, %v130
  %v139 = vpop.permute.xlu0 %138
  %vm141 = vcmask 130048
  %v143 = vsel %vm141, %v20, 0
  %145 = vmatprep.subr.bf16.mxu0 %v122
  %146 = vmatpush1.bf16.msra.mxu0 %v121
  %147 = vmatprep.subr.bf16.mxu0 %v118
  %148 = vmatpush1.bf16.msra.mxu0 %v117
  %149 = vmatprep.subr.bf16.mxu0 %v114
  %150 = vmatpush1.bf16.msra.mxu0 %v113
  %151 = vmatprep.subr.bf16.mxu0 %v110
  %152 = vmatpush1.bf16.msra.mxu0 %v109
  %153 = vmatprep.subr.bf16.mxu0 %v106
  %154 = vmatpush1.bf16.msra.mxu0 %v105
  %155 = vmatprep.subr.bf16.mxu0 %v102
  %156 = vmatpush1.bf16.msra.mxu0 %v101
  %157 = vmatprep.subr.bf16.mxu0 %v98
  %158 = vmatpush1.bf16.msra.mxu0 %v97
  %159 = vmatprep.subr.bf16.mxu0 %v94
  %160 = vmatpush1.bf16.msra.mxu0 %v93
  %161 = vmatprep.subr.bf16.mxu0 0
  %162 = vmatpush2.bf16.msra.mxu0 0
  %163 = vmatprep.subr.bf16.mxu0 0
  %164 = vmatpush2.bf16.msra.mxu0 0
  %165 = vmatprep.subr.bf16.mxu0 0
  %166 = vmatpush2.bf16.msra.mxu0 0
  %167 = vmatprep.subr.bf16.mxu0 0
  %168 = vmatpush2.bf16.msra.mxu0 0
  %169 = vmatprep.subr.bf16.mxu0 0
  %170 = vmatpush2.bf16.msra.mxu0 0
  %171 = vmatprep.subr.bf16.mxu0 0
  %172 = vmatpush2.bf16.msra.mxu0 0
  %173 = vmatprep.subr.bf16.mxu0 0
  %174 = vmatpush2.bf16.msra.mxu0 0
  %175 = vmatprep.subr.bf16.mxu0 %v126
  %176 = vmatpush2.bf16.msra.mxu0 %v125
  %177 = vmatprep.mubr.bf16.mxu0 %v143
  %178 = vmatmul.mubr.bf16.gmra.mxu0 %v19
  %v179 = vpop.f32.mrf.mxu0
  %v180 = vadd.f32 %v134, %v179
  %v181 = vpop.f32.mrf.mxu0
  %v182 = vadd.f32 %v134, %v181
  %v183 = vpop.f32.mrf.mxu0
  %v184 = vadd.f32 %v139, %v183
  %v185 = vpop.f32.mrf.mxu0
  %v186 = vadd.f32 %v139, %v185
  %187 = vdwg.mxu0
  %188 = vmatprep.subr.bf16.mxu0 %v124
  %189 = vmatpush1.bf16.msra.mxu0 %v123
  %190 = vmatprep.subr.bf16.mxu0 %v120
  %191 = vmatpush1.bf16.msra.mxu0 %v119
  %192 = vmatprep.subr.bf16.mxu0 %v116
  %193 = vmatpush1.bf16.msra.mxu0 %v115
  %194 = vmatprep.subr.bf16.mxu0 %v112
  %195 = vmatpush1.bf16.msra.mxu0 %v111
  %196 = vmatprep.subr.bf16.mxu0 %v108
  %197 = vmatpush1.bf16.msra.mxu0 %v107
  %198 = vmatprep.subr.bf16.mxu0 %v104
  %199 = vmatpush1.bf16.msra.mxu0 %v103
  %200 = vmatprep.subr.bf16.mxu0 %v100
  %201 = vmatpush1.bf16.msra.mxu0 %v99
  %202 = vmatprep.subr.bf16.mxu0 %v96
  %203 = vmatpush1.bf16.msra.mxu0 %v95
  %204 = vmatprep.subr.bf16.mxu0 0
  %205 = vmatpush2.bf16.msra.mxu0 0
  %206 = vmatprep.subr.bf16.mxu0 0
  %207 = vmatpush2.bf16.msra.mxu0 0
  %208 = vmatprep.subr.bf16.mxu0 0
  %209 = vmatpush2.bf16.msra.mxu0 0
  %210 = vmatprep.subr.bf16.mxu0 0
  %211 = vmatpush2.bf16.msra.mxu0 0
  %212 = vmatprep.subr.bf16.mxu0 0
  %213 = vmatpush2.bf16.msra.mxu0 0
  %214 = vmatprep.subr.bf16.mxu0 0
  %215 = vmatpush2.bf16.msra.mxu0 0
  %216 = vmatprep.subr.bf16.mxu0 0
  %217 = vmatpush2.bf16.msra.mxu0 0
  %218 = vmatprep.subr.bf16.mxu0 %v128
  %219 = vmatpush2.bf16.msra.mxu0 %v127
  %220 = vmatprep.mubr.bf16.mxu0 %v143
  %221 = vmatmul.mubr.bf16.gmra.mxu0 %v19
  %v222 = vpop.f32.mrf.mxu0
  %v223 = vadd.f32 %v134, %v222
  %v224 = vpop.f32.mrf.mxu0
  %v225 = vadd.f32 %v134, %v224
  %v226 = vpop.f32.mrf.mxu0
  %v227 = vadd.f32 %v139, %v226
  %v228 = vpop.f32.mrf.mxu0
  %v229 = vadd.f32 %v139, %v228
  %230 = vdwg.mxu0
  %vm231 = vcmp.gt.f32.partialorder %v180, 0.0
  %vm232 = vcmp.gt.f32.partialorder %v182, 0.0
  %vm233 = vcmp.gt.f32.partialorder %v223, 0.0
  %vm234 = vcmp.gt.f32.partialorder %v225, 0.0
  %vm235 = vcmp.gt.f32.partialorder %v184, 0.0
  %vm236 = vcmp.gt.f32.partialorder %v186, 0.0
  %vm237 = vcmp.gt.f32.partialorder %v227, 0.0
  %vm238 = vcmp.gt.f32.partialorder %v229, 0.0
  %v239 = vmul.f32 %v180, 0.1
  %v240 = vmul.f32 %v182, 0.1
  %v241 = vmul.f32 %v223, 0.1
  %v242 = vmul.f32 %v225, 0.1
  %v243 = vmul.f32 %v184, 0.1
  %v244 = vmul.f32 %v186, 0.1
  %v245 = vmul.f32 %v227, 0.1
  %v246 = vmul.f32 %v229, 0.1
  %v247 = vsel %vm231, %v180, %v239
  %v248 = vsel %vm232, %v182, %v240
  %v249 = vsel %vm233, %v223, %v241
  %v250 = vsel %vm234, %v225, %v242
  %v251 = vsel %vm235, %v184, %v243
  %v252 = vsel %vm236, %v186, %v244
  %v253 = vsel %vm237, %v227, %v245
  %v254 = vsel %vm238, %v229, %v246
  %255 = vst [vmem:[%s3] sm:$0xff] %v247
  %256 = vst [vmem:[%s3 + $0x8] sm:$0xff] %v248
  %257 = vst [vmem:[%s3 + $0x10] sm:$0xff] %v249
  %258 = vst [vmem:[%s3 + $0x18] sm:$0xff] %v250
  %259 = vst [vmem:[%s3 + $0x20] sm:$0xff] %v251
  %260 = vst [vmem:[%s3 + $0x28] sm:$0xff] %v252
  %261 = vst [vmem:[%s3 + $0x30] sm:$0xff] %v253
  %262 = vst [vmem:[%s3 + $0x38] sm:$0xff] %v254
  // Predicated region
  $region14: #{_lambda_.13} parent=0 // pred_check
    _
  $region15: #{_lambda_.13} parent=0 // pred_check_branch
    %264 = sbr.rel (0) target = $region17
  $region16: #{_lambda_.13} parent=0 // pred_region
    _
  $region17: #{_lambda_.13} parent=0 // pred_fallthru
    _
  // Predicated region
  $region18: #{_lambda_.13} parent=0 // pred_check
    _
  $region19: #{_lambda_.13} parent=0 // pred_check_branch
    %266 = sbr.rel (0) target = $region21
  $region20: #{_lambda_.13} parent=0 // pred_region
    _
  $region21: #{_lambda_.13} parent=0 // pred_fallthru
    _

// kernel: _lambda_.14
$region0: #{_lambda_.14}
  #allocation0 [shape = 'u32[]', space=smem, size = 0x4, offset = 0x4, fixed_abs, tag = 'smem constant byte address 0x4 - core index']
  #allocation1 [shape = 'u32[144,128]{1,0:T(1,128)}', space=vmem, size = 0x12000, scoped, tag = 'internal scratch']
  %s0 = inlined_call_operand.vmem [shape: f32[4,2048], index: 0, kind: input, shape index: {}]
  %s1 = inlined_call_operand.vmem [shape: f32[4,2048], index: 1, kind: input, shape index: {}]
  %s2 = inlined_call_operand.vmem [shape: f32[4,2048], index: 2, kind: output, shape index: {}]
  %s3 = sld [smem:[#allocation0]]
  $region18: #{_lambda_.14} parent=0
    _
  %s5 = ssub.s32 1, %s3
  %s6 = scalar_select 0, %s5, %s3
  // Predicated region
  $region2: #{_lambda_.14} parent=0 // pred_check
    _
  $region3: #{_lambda_.14} parent=0 // pred_check_branch
    %8 = sbr.rel (0) target = $region5
  $region4: #{_lambda_.14} parent=0 // pred_region
    _
  $region5: #{_lambda_.14} parent=0 // pred_fallthru
    _
  // Predicated region
  $region6: #{_lambda_.14} parent=0 // pred_check
    _
  $region7: #{_lambda_.14} parent=0 // pred_check_branch
    %10 = sbr.rel (0) target = $region9
  $region8: #{_lambda_.14} parent=0 // pred_region
    _
  $region9: #{_lambda_.14} parent=0 // pred_fallthru
    _
  %v11 = vld [vmem:[%s0] sm:$0xff]
  %v12 = vld [vmem:[%s0 + $0x8] sm:$0xff]
  %v13 = vld [vmem:[%s0 + $0x10] sm:$0xff]
  %v14 = vld [vmem:[%s0 + $0x18] sm:$0xff]
  %v15 = vld [vmem:[%s0 + $0x20] sm:$0xff]
  %v16 = vld [vmem:[%s0 + $0x28] sm:$0xff]
  %v17 = vld [vmem:[%s0 + $0x30] sm:$0xff]
  %v18 = vld [vmem:[%s0 + $0x38] sm:$0xff]
  %v19 = vld [vmem:[%s1] sm:$0xff]
  %v20 = vld [vmem:[%s1 + $0x8] sm:$0xff]
  %v21 = vld [vmem:[%s1 + $0x10] sm:$0xff]
  %v22 = vld [vmem:[%s1 + $0x18] sm:$0xff]
  %v23 = vld [vmem:[%s1 + $0x20] sm:$0xff]
  %v24 = vld [vmem:[%s1 + $0x28] sm:$0xff]
  %v25 = vld [vmem:[%s1 + $0x30] sm:$0xff]
  %v26 = vld [vmem:[%s1 + $0x38] sm:$0xff]
  %v27 = vadd.f32 %v11, %v19
  %v28 = vadd.f32 %v12, %v20
  %v29 = vadd.f32 %v13, %v21
  %v30 = vadd.f32 %v14, %v22
  %v31 = vadd.f32 %v15, %v23
  %v32 = vadd.f32 %v16, %v24
  %v33 = vadd.f32 %v17, %v25
  %v34 = vadd.f32 %v18, %v26
  %35 = vst [vmem:[%s2] sm:$0xff] %v27
  %36 = vst [vmem:[%s2 + $0x8] sm:$0xff] %v28
  %37 = vst [vmem:[%s2 + $0x10] sm:$0xff] %v29
  %38 = vst [vmem:[%s2 + $0x18] sm:$0xff] %v30
  %39 = vst [vmem:[%s2 + $0x20] sm:$0xff] %v31
  %40 = vst [vmem:[%s2 + $0x28] sm:$0xff] %v32
  %41 = vst [vmem:[%s2 + $0x30] sm:$0xff] %v33
  %42 = vst [vmem:[%s2 + $0x38] sm:$0xff] %v34
  // Predicated region
  $region10: #{_lambda_.14} parent=0 // pred_check
    _
  $region11: #{_lambda_.14} parent=0 // pred_check_branch
    %44 = sbr.rel (0) target = $region13
  $region12: #{_lambda_.14} parent=0 // pred_region
    _
  $region13: #{_lambda_.14} parent=0 // pred_fallthru
    _
  // Predicated region
  $region14: #{_lambda_.14} parent=0 // pred_check
    _
  $region15: #{_lambda_.14} parent=0 // pred_check_branch
    %46 = sbr.rel (0) target = $region17
  $region16: #{_lambda_.14} parent=0 // pred_region
    _
  $region17: #{_lambda_.14} parent=0 // pred_fallthru
    _

// kernel: _lambda_.15
$region0: #{_lambda_.15}
  #allocation0 [shape = 'u32[]', space=smem, size = 0x4, offset = 0x4, fixed_abs, tag = 'smem constant byte address 0x4 - core index']
  #allocation1 [shape = 'u32[144,128]{1,0:T(1,128)}', space=vmem, size = 0x12000, scoped, tag = 'internal scratch']
  %s0 = inlined_call_operand.vmem [shape: f32[32,144], index: 0, kind: input, shape index: {}]
  %s1 = inlined_call_operand.vmem [shape: f32[144,128], index: 1, kind: input, shape index: {}]
  %s2 = inlined_call_operand.vmem [shape: f32[32,1], index: 2, kind: input, shape index: {}]
  %s3 = inlined_call_operand.vmem [shape: f32[32,128], index: 3, kind: output, shape index: {}]
  %s4 = sld [smem:[#allocation0]]
  $region22: #{_lambda_.15} parent=0
    _
  %s6 = ssub.s32 1, %s4
  %s7 = scalar_select 0, %s6, %s4
  // Predicated region
  $region2: #{_lambda_.15} parent=0 // pred_check
    _
  $region3: #{_lambda_.15} parent=0 // pred_check_branch
    %9 = sbr.rel (0) target = $region5
  $region4: #{_lambda_.15} parent=0 // pred_region
    _
  $region5: #{_lambda_.15} parent=0 // pred_fallthru
    _
  // Predicated region
  $region6: #{_lambda_.15} parent=0 // pred_check
    _
  $region7: #{_lambda_.15} parent=0 // pred_check_branch
    %11 = sbr.rel (0) target = $region9
  $region8: #{_lambda_.15} parent=0 // pred_region
    _
  $region9: #{_lambda_.15} parent=0 // pred_fallthru
    _
  // Predicated region
  $region10: #{_lambda_.15} parent=0 // pred_check
    _
  $region11: #{_lambda_.15} parent=0 // pred_check_branch
    %13 = sbr.rel (0) target = $region13
  $region12: #{_lambda_.15} parent=0 // pred_region
    _
  $region13: #{_lambda_.15} parent=0 // pred_fallthru
    _
  %v15 = vld [vmem:[%s0] sm:$0xff]
  %v16 = vld [vmem:[%s0 + $0x8] sm:$0xff]
  %v17 = vld [vmem:[%s0 + $0x10] sm:$0xff]
  %v18 = vld [vmem:[%s0 + $0x18] sm:$0xff]
  %v19 = vld [vmem:[%s0 + $0x20] sm:$0xff]
  %v20 = vld [vmem:[%s0 + $0x28] sm:$0xff]
  %v21 = vld [vmem:[%s0 + $0x30] sm:$0xff]
  %v22 = vld [vmem:[%s0 + $0x38] sm:$0xff]
  %v23 = vpack.c.bf16 %v17, %v15
  %v24 = vpack.c.bf16 %v18, %v16
  %v25 = vpack.c.bf16 %v21, %v19
  %v26 = vpack.c.bf16 %v22, %v20
  %v27 = vld [vmem:[%s1] sm:$0xff]
  %v28 = vld [vmem:[%s1 + $0x8] sm:$0xff]
  %v29 = vld [vmem:[%s1 + $0x10] sm:$0xff]
  %v30 = vld [vmem:[%s1 + $0x18] sm:$0xff]
  %v31 = vld [vmem:[%s1 + $0x20] sm:$0xff]
  %v32 = vld [vmem:[%s1 + $0x28] sm:$0xff]
  %v33 = vld [vmem:[%s1 + $0x30] sm:$0xff]
  %v34 = vld [vmem:[%s1 + $0x38] sm:$0xff]
  %v35 = vld [vmem:[%s1 + $0x40] sm:$0xff]
  %v36 = vld [vmem:[%s1 + $0x48] sm:$0xff]
  %v37 = vld [vmem:[%s1 + $0x50] sm:$0xff]
  %v38 = vld [vmem:[%s1 + $0x58] sm:$0xff]
  %v39 = vld [vmem:[%s1 + $0x60] sm:$0xff]
  %v40 = vld [vmem:[%s1 + $0x68] sm:$0xff]
  %v41 = vld [vmem:[%s1 + $0x70] sm:$0xff]
  %v42 = vld [vmem:[%s1 + $0x78] sm:$0xff]
  %v43 = vld [vmem:[%s1 + $0x80] sm:$0xff]
  %v44 = vld [vmem:[%s1 + $0x88] sm:$0xff]
  %v45 = vpack.c.bf16 %v28, %v27
  %v46 = vpack.c.bf16 %v30, %v29
  %v47 = vpack.c.bf16 %v32, %v31
  %v48 = vpack.c.bf16 %v34, %v33
  %v49 = vpack.c.bf16 %v36, %v35
  %v50 = vpack.c.bf16 %v38, %v37
  %v51 = vpack.c.bf16 %v40, %v39
  %v52 = vpack.c.bf16 %v42, %v41
  %v53 = vpack.c.bf16 %v44, %v43
  %v54 = vld [vmem:[%s2] sm:$0xff]
  %v55 = vld [vmem:[%s2 + $0x8] sm:$0xff]
  %v56 = vld [vmem:[%s2 + $0x10] sm:$0xff]
  %v57 = vld [vmem:[%s2 + $0x18] sm:$0xff]
  %59 = vset.pattern.permute.xlu0 0
  %60 = vperm.xlu0 %59, %v54
  %v61 = vpop.permute.xlu0 %60
  %64 = vset.pattern.permute.xlu0 0
  %65 = vperm.xlu0 %64, %v55
  %v66 = vpop.permute.xlu0 %65
  %69 = vset.pattern.permute.xlu0 0
  %70 = vperm.xlu0 %69, %v56
  %v71 = vpop.permute.xlu0 %70
  %74 = vset.pattern.permute.xlu0 0
  %75 = vperm.xlu0 %74, %v57
  %v76 = vpop.permute.xlu0 %75
  %vm78 = vcmask 130048
  %v80 = vsel %vm78, %v24, 0
  %v83 = vsel %vm78, %v26, 0
  %85 = vmatprep.subr.bf16.mxu0 0
  %86 = vmatpush1.bf16.msra.mxu0 %v52
  %87 = vmatprep.subr.bf16.mxu0 0
  %88 = vmatpush1.bf16.msra.mxu0 %v51
  %89 = vmatprep.subr.bf16.mxu0 0
  %90 = vmatpush1.bf16.msra.mxu0 %v50
  %91 = vmatprep.subr.bf16.mxu0 0
  %92 = vmatpush1.bf16.msra.mxu0 %v49
  %93 = vmatprep.subr.bf16.mxu0 0
  %94 = vmatpush1.bf16.msra.mxu0 %v48
  %95 = vmatprep.subr.bf16.mxu0 0
  %96 = vmatpush1.bf16.msra.mxu0 %v47
  %97 = vmatprep.subr.bf16.mxu0 0
  %98 = vmatpush1.bf16.msra.mxu0 %v46
  %99 = vmatprep.subr.bf16.mxu0 0
  %100 = vmatpush1.bf16.msra.mxu0 %v45
  %101 = vmatprep.subr.bf16.mxu0 0
  %102 = vmatpush2.bf16.msra.mxu0 0
  %103 = vmatprep.subr.bf16.mxu0 0
  %104 = vmatpush2.bf16.msra.mxu0 0
  %105 = vmatprep.subr.bf16.mxu0 0
  %106 = vmatpush2.bf16.msra.mxu0 0
  %107 = vmatprep.subr.bf16.mxu0 0
  %108 = vmatpush2.bf16.msra.mxu0 0
  %109 = vmatprep.subr.bf16.mxu0 0
  %110 = vmatpush2.bf16.msra.mxu0 0
  %111 = vmatprep.subr.bf16.mxu0 0
  %112 = vmatpush2.bf16.msra.mxu0 0
  %113 = vmatprep.subr.bf16.mxu0 0
  %114 = vmatpush2.bf16.msra.mxu0 0
  %115 = vmatprep.subr.bf16.mxu0 0
  %116 = vmatpush2.bf16.msra.mxu0 %v53
  %117 = vmatprep.mubr.bf16.mxu0 %v80
  %118 = vmatmul.mubr.bf16.gmra.mxu0 %v23
  %v119 = vpop.f32.mrf.mxu0
  %v120 = vadd.f32 %v61, %v119
  %v121 = vpop.f32.mrf.mxu0
  %v122 = vpop.f32.mrf.mxu0
  %v123 = vadd.f32 %v66, %v122
  %v124 = vpop.f32.mrf.mxu0
  %125 = vmatprep.mubr.bf16.mxu0 %v83
  %126 = vmatmul.mubr.bf16.gmra.mxu0 %v25
  %v127 = vpop.f32.mrf.mxu0
  %v128 = vadd.f32 %v71, %v127
  %v129 = vpop.f32.mrf.mxu0
  %v130 = vpop.f32.mrf.mxu0
  %v131 = vadd.f32 %v76, %v130
  %v132 = vpop.f32.mrf.mxu0
  %133 = vdwg.mxu0
  %vm134 = vcmp.gt.f32.partialorder %v120, 0.0
  %vm135 = vcmp.gt.f32.partialorder %v123, 0.0
  %vm136 = vcmp.gt.f32.partialorder %v128, 0.0
  %vm137 = vcmp.gt.f32.partialorder %v131, 0.0
  %v138 = vmul.f32 %v120, 0.1
  %v139 = vmul.f32 %v123, 0.1
  %v140 = vmul.f32 %v128, 0.1
  %v141 = vmul.f32 %v131, 0.1
  %v142 = vsel %vm134, %v120, %v138
  %v143 = vsel %vm135, %v123, %v139
  %v144 = vsel %vm136, %v128, %v140
  %v145 = vsel %vm137, %v131, %v141
  %146 = vst [vmem:[%s3] sm:$0xff] %v142
  %147 = vst [vmem:[%s3 + $0x8] sm:$0xff] %v143
  %148 = vst [vmem:[%s3 + $0x10] sm:$0xff] %v144
  %149 = vst [vmem:[%s3 + $0x18] sm:$0xff] %v145
  // Predicated region
  $region14: #{_lambda_.15} parent=0 // pred_check
    _
  $region15: #{_lambda_.15} parent=0 // pred_check_branch
    %151 = sbr.rel (0) target = $region17
  $region16: #{_lambda_.15} parent=0 // pred_region
    _
  $region17: #{_lambda_.15} parent=0 // pred_fallthru
    _
  // Predicated region
  $region18: #{_lambda_.15} parent=0 // pred_check
    _
  $region19: #{_lambda_.15} parent=0 // pred_check_branch
    %153 = sbr.rel (0) target = $region21
  $region20: #{_lambda_.15} parent=0 // pred_region
    _
  $region21: #{_lambda_.15} parent=0 // pred_fallthru
    _

// kernel: _lambda_.18
$region0: #{_lambda_.18}
  #allocation0 [shape = 'u32[]', space=smem, size = 0x4, offset = 0x4, fixed_abs, tag = 'smem constant byte address 0x4 - core index']
  #allocation1 [shape = 'u32[144,128]{1,0:T(1,128)}', space=vmem, size = 0x12000, scoped, tag = 'internal scratch']
  %s0 = inlined_call_operand.vmem [shape: f32[16,32], index: 0, kind: input, shape index: {}]
  %s1 = inlined_call_operand.vmem [shape: f32[32,128], index: 1, kind: input, shape index: {}]
  %s2 = inlined_call_operand.vmem [shape: f32[16,1], index: 2, kind: input, shape index: {}]
  %s3 = inlined_call_operand.vmem [shape: f32[16,128], index: 3, kind: output, shape index: {}]
  %s4 = sld [smem:[#allocation0]]
  $region22: #{_lambda_.18} parent=0
    _
  %s6 = ssub.s32 1, %s4
  %s7 = scalar_select 0, %s6, %s4
  // Predicated region
  $region2: #{_lambda_.18} parent=0 // pred_check
    _
  $region3: #{_lambda_.18} parent=0 // pred_check_branch
    %9 = sbr.rel (0) target = $region5
  $region4: #{_lambda_.18} parent=0 // pred_region
    _
  $region5: #{_lambda_.18} parent=0 // pred_fallthru
    _
  // Predicated region
  $region6: #{_lambda_.18} parent=0 // pred_check
    _
  $region7: #{_lambda_.18} parent=0 // pred_check_branch
    %11 = sbr.rel (0) target = $region9
  $region8: #{_lambda_.18} parent=0 // pred_region
    _
  $region9: #{_lambda_.18} parent=0 // pred_fallthru
    _
  // Predicated region
  $region10: #{_lambda_.18} parent=0 // pred_check
    _
  $region11: #{_lambda_.18} parent=0 // pred_check_branch
    %13 = sbr.rel (0) target = $region13
  $region12: #{_lambda_.18} parent=0 // pred_region
    _
  $region13: #{_lambda_.18} parent=0 // pred_fallthru
    _
  %v15 = vld [vmem:[%s0] sm:$0xff]
  %v16 = vld [vmem:[%s0 + $0x8] sm:$0xff]
  %v17 = vpack.c.bf16 %v16, %v15
  %v18 = vld [vmem:[%s1] sm:$0xff]
  %v19 = vld [vmem:[%s1 + $0x8] sm:$0xff]
  %v20 = vld [vmem:[%s1 + $0x10] sm:$0xff]
  %v21 = vld [vmem:[%s1 + $0x18] sm:$0xff]
  %v22 = vpack.c.bf16 %v19, %v18
  %v23 = vpack.c.bf16 %v21, %v20
  %v24 = vld [vmem:[%s2] sm:$0xff]
  %v25 = vld [vmem:[%s2 + $0x8] sm:$0xff]
  %27 = vset.pattern.permute.xlu0 0
  %28 = vperm.xlu0 %27, %v24
  %v29 = vpop.permute.xlu0 %28
  %32 = vset.pattern.permute.xlu0 0
  %33 = vperm.xlu0 %32, %v25
  %v34 = vpop.permute.xlu0 %33
  %vm36 = vcmask 261120
  %v38 = vsel %vm36, %v17, 0
  %40 = vmatprep.subr.bf16.mxu0 0
  %41 = vmatpush1.bf16.msra.mxu0 0
  %42 = vmatprep.subr.bf16.mxu0 0
  %43 = vmatpush1.bf16.msra.mxu0 0
  %44 = vmatprep.subr.bf16.mxu0 0
  %45 = vmatpush1.bf16.msra.mxu0 0
  %46 = vmatprep.subr.bf16.mxu0 0
  %47 = vmatpush1.bf16.msra.mxu0 0
  %48 = vmatprep.subr.bf16.mxu0 0
  %49 = vmatpush1.bf16.msra.mxu0 0
  %50 = vmatprep.subr.bf16.mxu0 0
  %51 = vmatpush1.bf16.msra.mxu0 0
  %52 = vmatprep.subr.bf16.mxu0 0
  %53 = vmatpush1.bf16.msra.mxu0 %v23
  %54 = vmatprep.subr.bf16.mxu0 0
  %55 = vmatpush1.bf16.msra.mxu0 %v22
  %56 = vmatprep.subr.bf16.mxu0 0
  %57 = vmatpush2.bf16.msra.mxu0 0
  %58 = vmatprep.subr.bf16.mxu0 0
  %59 = vmatpush2.bf16.msra.mxu0 0
  %60 = vmatprep.subr.bf16.mxu0 0
  %61 = vmatpush2.bf16.msra.mxu0 0
  %62 = vmatprep.subr.bf16.mxu0 0
  %63 = vmatpush2.bf16.msra.mxu0 0
  %64 = vmatprep.subr.bf16.mxu0 0
  %65 = vmatpush2.bf16.msra.mxu0 0
  %66 = vmatprep.subr.bf16.mxu0 0
  %67 = vmatpush2.bf16.msra.mxu0 0
  %68 = vmatprep.subr.bf16.mxu0 0
  %69 = vmatpush2.bf16.msra.mxu0 0
  %70 = vmatprep.subr.bf16.mxu0 0
  %71 = vmatpush2.bf16.msra.mxu0 0
  %72 = vmatprep.mubr.bf16.mxu0 0
  %73 = vmatmul.mubr.bf16.gmra.mxu0 %v38
  %v74 = vpop.f32.mrf.mxu0
  %v75 = vadd.f32 %v29, %v74
  %v76 = vpop.f32.mrf.mxu0
  %v77 = vpop.f32.mrf.mxu0
  %v78 = vadd.f32 %v34, %v77
  %v79 = vpop.f32.mrf.mxu0
  %80 = vdwg.mxu0
  %vm81 = vcmp.gt.f32.partialorder %v75, 0.0
  %vm82 = vcmp.gt.f32.partialorder %v78, 0.0
  %v83 = vmul.f32 %v75, 0.1
  %v84 = vmul.f32 %v78, 0.1
  %v85 = vsel %vm81, %v75, %v83
  %v86 = vsel %vm82, %v78, %v84
  %87 = vst [vmem:[%s3] sm:$0xff] %v85
  %88 = vst [vmem:[%s3 + $0x8] sm:$0xff] %v86
  // Predicated region
  $region14: #{_lambda_.18} parent=0 // pred_check
    _
  $region15: #{_lambda_.18} parent=0 // pred_check_branch
    %90 = sbr.rel (0) target = $region17
  $region16: #{_lambda_.18} parent=0 // pred_region
    _
  $region17: #{_lambda_.18} parent=0 // pred_fallthru
    _
  // Predicated region
  $region18: #{_lambda_.18} parent=0 // pred_check
    _
  $region19: #{_lambda_.18} parent=0 // pred_check_branch
    %92 = sbr.rel (0) target = $region21
  $region20: #{_lambda_.18} parent=0 // pred_region
    _
  $region21: #{_lambda_.18} parent=0 // pred_fallthru
    _

// kernel: _lambda_.19
$region0: #{_lambda_.19}
  #allocation0 [shape = 'u32[]', space=smem, size = 0x4, offset = 0x4, fixed_abs, tag = 'smem constant byte address 0x4 - core index']
  #allocation1 [shape = 'u32[144,128]{1,0:T(1,128)}', space=vmem, size = 0x12000, scoped, tag = 'internal scratch']
  %s0 = inlined_call_operand.vmem [shape: f32[32,64], index: 0, kind: input, shape index: {}]
  %s1 = inlined_call_operand.vmem [shape: f32[64,256], index: 1, kind: input, shape index: {}]
  %s2 = inlined_call_operand.vmem [shape: f32[32,256], index: 2, kind: output, shape index: {}]
  %s3 = sld [smem:[#allocation0]]
  $region18: #{_lambda_.19} parent=0
    _
  %s5 = ssub.s32 1, %s3
  %s6 = scalar_select 0, %s5, %s3
  // Predicated region
  $region2: #{_lambda_.19} parent=0 // pred_check
    _
  $region3: #{_lambda_.19} parent=0 // pred_check_branch
    %8 = sbr.rel (0) target = $region5
  $region4: #{_lambda_.19} parent=0 // pred_region
    _
  $region5: #{_lambda_.19} parent=0 // pred_fallthru
    _
  // Predicated region
  $region6: #{_lambda_.19} parent=0 // pred_check
    _
  $region7: #{_lambda_.19} parent=0 // pred_check_branch
    %10 = sbr.rel (0) target = $region9
  $region8: #{_lambda_.19} parent=0 // pred_region
    _
  $region9: #{_lambda_.19} parent=0 // pred_fallthru
    _
  %v11 = vld [vmem:[%s0] sm:$0xff]
  %v12 = vld [vmem:[%s0 + $0x8] sm:$0xff]
  %v13 = vld [vmem:[%s0 + $0x10] sm:$0xff]
  %v14 = vld [vmem:[%s0 + $0x18] sm:$0xff]
  %v15 = vld [vmem:[%s1] sm:$0xff]
  %v16 = vld [vmem:[%s1 + $0x8] sm:$0xff]
  %v17 = vld [vmem:[%s1 + $0x10] sm:$0xff]
  %v18 = vld [vmem:[%s1 + $0x18] sm:$0xff]
  %v19 = vld [vmem:[%s1 + $0x20] sm:$0xff]
  %v20 = vld [vmem:[%s1 + $0x28] sm:$0xff]
  %v21 = vld [vmem:[%s1 + $0x30] sm:$0xff]
  %v22 = vld [vmem:[%s1 + $0x38] sm:$0xff]
  %v23 = vld [vmem:[%s1 + $0x40] sm:$0xff]
  %v24 = vld [vmem:[%s1 + $0x48] sm:$0xff]
  %v25 = vld [vmem:[%s1 + $0x50] sm:$0xff]
  %v26 = vld [vmem:[%s1 + $0x58] sm:$0xff]
  %v27 = vld [vmem:[%s1 + $0x60] sm:$0xff]
  %v28 = vld [vmem:[%s1 + $0x68] sm:$0xff]
  %v29 = vld [vmem:[%s1 + $0x70] sm:$0xff]
  %v30 = vld [vmem:[%s1 + $0x78] sm:$0xff]
  %vm31 = vcmask 523264
  %v33 = vsel %vm31, %v11, 0
  %v36 = vsel %vm31, %v12, 0
  %v39 = vsel %vm31, %v13, 0
  %v42 = vsel %vm31, %v14, 0
  %44 = vmatprep.subr.mxu0 0.0
  %45 = vmatpush1.msra.mxu0 0.0
  %46 = vmatprep.subr.mxu0 0.0
  %47 = vmatpush1.msra.mxu0 0.0
  %48 = vmatprep.subr.mxu0 0.0
  %49 = vmatpush1.msra.mxu0 0.0
  %50 = vmatprep.subr.mxu0 0.0
  %51 = vmatpush1.msra.mxu0 0.0
  %52 = vmatprep.subr.mxu0 0.0
  %53 = vmatpush1.msra.mxu0 0.0
  %54 = vmatprep.subr.mxu0 0.0
  %55 = vmatpush1.msra.mxu0 0.0
  %56 = vmatprep.subr.mxu0 0.0
  %57 = vmatpush1.msra.mxu0 0.0
  %58 = vmatprep.subr.mxu0 0.0
  %59 = vmatpush1.msra.mxu0 0.0
  %60 = vmatprep.subr.mxu0 %v30
  %61 = vmatpush1.msra.mxu0 %v29
  %62 = vmatprep.subr.mxu0 %v28
  %63 = vmatpush1.msra.mxu0 %v27
  %64 = vmatprep.subr.mxu0 %v26
  %65 = vmatpush1.msra.mxu0 %v25
  %66 = vmatprep.subr.mxu0 %v24
  %67 = vmatpush1.msra.mxu0 %v23
  %68 = vmatprep.subr.mxu0 %v22
  %69 = vmatpush1.msra.mxu0 %v21
  %70 = vmatprep.subr.mxu0 %v20
  %71 = vmatpush1.msra.mxu0 %v19
  %72 = vmatprep.subr.mxu0 %v18
  %73 = vmatpush1.msra.mxu0 %v17
  %74 = vmatprep.subr.mxu0 %v16
  %75 = vmatpush1.msra.mxu0 %v15
  %76 = vmatprep.subr.mxu0 0.0
  %77 = vmatpush2.msra.mxu0 0.0
  %78 = vmatprep.subr.mxu0 0.0
  %79 = vmatpush2.msra.mxu0 0.0
  %80 = vmatprep.subr.mxu0 0.0
  %81 = vmatpush2.msra.mxu0 0.0
  %82 = vmatprep.subr.mxu0 0.0
  %83 = vmatpush2.msra.mxu0 0.0
  %84 = vmatprep.subr.mxu0 0.0
  %85 = vmatpush2.msra.mxu0 0.0
  %86 = vmatprep.subr.mxu0 0.0
  %87 = vmatpush2.msra.mxu0 0.0
  %88 = vmatprep.subr.mxu0 0.0
  %89 = vmatpush2.msra.mxu0 0.0
  %90 = vmatprep.subr.mxu0 0.0
  %91 = vmatpush2.msra.mxu0 0.0
  %92 = vmatprep.subr.mxu0 0.0
  %93 = vmatpush2.msra.mxu0 0.0
  %94 = vmatprep.subr.mxu0 0.0
  %95 = vmatpush2.msra.mxu0 0.0
  %96 = vmatprep.subr.mxu0 0.0
  %97 = vmatpush2.msra.mxu0 0.0
  %98 = vmatprep.subr.mxu0 0.0
  %99 = vmatpush2.msra.mxu0 0.0
  %100 = vmatprep.subr.mxu0 0.0
  %101 = vmatpush2.msra.mxu0 0.0
  %102 = vmatprep.subr.mxu0 0.0
  %103 = vmatpush2.msra.mxu0 0.0
  %104 = vmatprep.subr.mxu0 0.0
  %105 = vmatpush2.msra.mxu0 0.0
  %106 = vmatprep.subr.mxu0 0.0
  %107 = vmatpush2.msra.mxu0 0.0
  %108 = vmatprep.mubr.f32.mxu0 0.0
  %109 = vmatmul.mubr.f32.gmra.mxu0 %v33
  %v110 = vpop.f32.mrf.mxu0
  %v111 = vadd.f32 0.0, %v110
  %v112 = vpop.f32.mrf.mxu0
  %v113 = vadd.f32 0.0, %v112
  %114 = vmatprep.mubr.f32.mxu0 0.0
  %115 = vmatmul.mubr.f32.gmra.mxu0 %v36
  %v116 = vpop.f32.mrf.mxu0
  %v117 = vadd.f32 0.0, %v116
  %v118 = vpop.f32.mrf.mxu0
  %v119 = vadd.f32 0.0, %v118
  %120 = vmatprep.mubr.f32.mxu0 0.0
  %121 = vmatmul.mubr.f32.gmra.mxu0 %v39
  %v122 = vpop.f32.mrf.mxu0
  %v123 = vadd.f32 0.0, %v122
  %v124 = vpop.f32.mrf.mxu0
  %v125 = vadd.f32 0.0, %v124
  %126 = vmatprep.mubr.f32.mxu0 0.0
  %127 = vmatmul.mubr.f32.gmra.mxu0 %v42
  %v128 = vpop.f32.mrf.mxu0
  %v129 = vadd.f32 0.0, %v128
  %v130 = vpop.f32.mrf.mxu0
  %v131 = vadd.f32 0.0, %v130
  %132 = vdwg.mxu0
  %133 = vst [vmem:[%s2] sm:$0xff] %v111
  %134 = vst [vmem:[%s2 + $0x8] sm:$0xff] %v113
  %135 = vst [vmem:[%s2 + $0x10] sm:$0xff] %v117
  %136 = vst [vmem:[%s2 + $0x18] sm:$0xff] %v119
  %137 = vst [vmem:[%s2 + $0x20] sm:$0xff] %v123
  %138 = vst [vmem:[%s2 + $0x28] sm:$0xff] %v125
  %139 = vst [vmem:[%s2 + $0x30] sm:$0xff] %v129
  %140 = vst [vmem:[%s2 + $0x38] sm:$0xff] %v131
  // Predicated region
  $region10: #{_lambda_.19} parent=0 // pred_check
    _
  $region11: #{_lambda_.19} parent=0 // pred_check_branch
    %142 = sbr.rel (0) target = $region13
  $region12: #{_lambda_.19} parent=0 // pred_region
    _
  $region13: #{_lambda_.19} parent=0 // pred_fallthru
    _
  // Predicated region
  $region14: #{_lambda_.19} parent=0 // pred_check
    _
  $region15: #{_lambda_.19} parent=0 // pred_check_branch
    %144 = sbr.rel (0) target = $region17
  $region16: #{_lambda_.19} parent=0 // pred_region
    _
  $region17: #{_lambda_.19} parent=0 // pred_fallthru
    _

// kernel: _lambda_.21
$region0: #{_lambda_.21}
  #allocation0 [shape = 'u32[]', space=smem, size = 0x4, offset = 0x4, fixed_abs, tag = 'smem constant byte address 0x4 - core index']
  #allocation1 [shape = 'u32[144,128]{1,0:T(1,128)}', space=vmem, size = 0x12000, scoped, tag = 'internal scratch']
  %s0 = inlined_call_operand.vmem [shape: f32[3,7,512], index: 0, kind: input, shape index: {}]
  %s1 = inlined_call_operand.vmem [shape: f32[7,512], index: 1, kind: input, shape index: {}]
  %s2 = inlined_call_operand.vmem [shape: f32[3,7,1], index: 2, kind: input, shape index: {}]
  %s3 = inlined_call_operand.vmem [shape: f32[3,7,512], index: 3, kind: output, shape index: {}]
  %s4 = sld [smem:[#allocation0]]
  $region22: #{_lambda_.21} parent=0
    _
  %s6 = ssub.s32 1, %s4
  %s7 = scalar_select 0, %s6, %s4
  // Predicated region
  $region2: #{_lambda_.21} parent=0 // pred_check
    _
  $region3: #{_lambda_.21} parent=0 // pred_check_branch
    %9 = sbr.rel (0) target = $region5
  $region4: #{_lambda_.21} parent=0 // pred_region
    _
  $region5: #{_lambda_.21} parent=0 // pred_fallthru
    _
  // Predicated region
  $region6: #{_lambda_.21} parent=0 // pred_check
    _
  $region7: #{_lambda_.21} parent=0 // pred_check_branch
    %11 = sbr.rel (0) target = $region9
  $region8: #{_lambda_.21} parent=0 // pred_region
    _
  $region9: #{_lambda_.21} parent=0 // pred_fallthru
    _
  // Predicated region
  $region10: #{_lambda_.21} parent=0 // pred_check
    _
  $region11: #{_lambda_.21} parent=0 // pred_check_branch
    %13 = sbr.rel (0) target = $region13
  $region12: #{_lambda_.21} parent=0 // pred_region
    _
  $region13: #{_lambda_.21} parent=0 // pred_fallthru
    _
  %v14 = vld [vmem:[%s0] sm:$0x7f]
  %v15 = vld [vmem:[%s0 + $0x8] sm:$0x7f]
  %v16 = vld [vmem:[%s0 + $0x10] sm:$0x7f]
  %v17 = vld [vmem:[%s0 + $0x18] sm:$0x7f]
  %v18 = vld [vmem:[%s0 + $0x20] sm:$0x7f]
  %v19 = vld [vmem:[%s0 + $0x28] sm:$0x7f]
  %v20 = vld [vmem:[%s0 + $0x30] sm:$0x7f]
  %v21 = vld [vmem:[%s0 + $0x38] sm:$0x7f]
  %v22 = vld [vmem:[%s0 + $0x40] sm:$0x7f]
  %v23 = vld [vmem:[%s0 + $0x48] sm:$0x7f]
  %v24 = vld [vmem:[%s0 + $0x50] sm:$0x7f]
  %v25 = vld [vmem:[%s0 + $0x58] sm:$0x7f]
  %v26 = vld [vmem:[%s1] sm:$0x7f]
  %v27 = vld [vmem:[%s1 + $0x8] sm:$0x7f]
  %v28 = vld [vmem:[%s1 + $0x10] sm:$0x7f]
  %v29 = vld [vmem:[%s1 + $0x18] sm:$0x7f]
  %v30 = vld [vmem:[%s2] sm:$0x7f]
  %v31 = vld [vmem:[%s2 + $0x8] sm:$0x7f]
  %v32 = vld [vmem:[%s2 + $0x10] sm:$0x7f]
  %v33 = vlaneseq
  %v34 = vshrl.u32 %v33, 7
  %v35 = vsub.f32 0.0, %v14
  %v36 = vsub.f32 0.0, %v15
  %v37 = vsub.f32 0.0, %v16
  %v38 = vsub.f32 0.0, %v17
  %v39 = vsub.f32 0.0, %v18
  %v40 = vsub.f32 0.0, %v19
  %v41 = vsub.f32 0.0, %v20
  %v42 = vsub.f32 0.0, %v21
  %v43 = vsub.f32 0.0, %v22
  %v44 = vsub.f32 0.0, %v23
  %v45 = vsub.f32 0.0, %v24
  %v46 = vsub.f32 0.0, %v25
  %v47 = vmul.f32 %v35, 1.442695
  %v48 = vpow.pop %v47
  %v49 = vmul.f32 %v36, 1.442695
  %v50 = vpow.pop %v49
  %v51 = vmul.f32 %v37, 1.442695
  %v52 = vpow.pop %v51
  %v53 = vmul.f32 %v38, 1.442695
  %v54 = vpow.pop %v53
  %v55 = vmul.f32 %v39, 1.442695
  %v56 = vpow.pop %v55
  %v57 = vmul.f32 %v40, 1.442695
  %v58 = vpow.pop %v57
  %v59 = vmul.f32 %v41, 1.442695
  %v60 = vpow.pop %v59
  %v61 = vmul.f32 %v42, 1.442695
  %v62 = vpow.pop %v61
  %v63 = vmul.f32 %v43, 1.442695
  %v64 = vpow.pop %v63
  %v65 = vmul.f32 %v44, 1.442695
  %v66 = vpow.pop %v65
  %v67 = vmul.f32 %v45, 1.442695
  %v68 = vpow.pop %v67
  %v69 = vmul.f32 %v46, 1.442695
  %v70 = vpow.pop %v69
  %v71 = vadd.f32 %v48, 1.0
  %v72 = vadd.f32 %v50, 1.0
  %v73 = vadd.f32 %v52, 1.0
  %v74 = vadd.f32 %v54, 1.0
  %v75 = vadd.f32 %v56, 1.0
  %v76 = vadd.f32 %v58, 1.0
  %v77 = vadd.f32 %v60, 1.0
  %v78 = vadd.f32 %v62, 1.0
  %v79 = vadd.f32 %v64, 1.0
  %v80 = vadd.f32 %v66, 1.0
  %v81 = vadd.f32 %v68, 1.0
  %v82 = vadd.f32 %v70, 1.0
  %v83 = vrcp.pop %v71
  %v84 = vmul.f32 1.0, %v83
  %v85 = vrcp.pop %v72
  %v86 = vmul.f32 1.0, %v85
  %v87 = vrcp.pop %v73
  %v88 = vmul.f32 1.0, %v87
  %v89 = vrcp.pop %v74
  %v90 = vmul.f32 1.0, %v89
  %v91 = vrcp.pop %v75
  %v92 = vmul.f32 1.0, %v91
  %v93 = vrcp.pop %v76
  %v94 = vmul.f32 1.0, %v93
  %v95 = vrcp.pop %v77
  %v96 = vmul.f32 1.0, %v95
  %v97 = vrcp.pop %v78
  %v98 = vmul.f32 1.0, %v97
  %v99 = vrcp.pop %v79
  %v100 = vmul.f32 1.0, %v99
  %v101 = vrcp.pop %v80
  %v102 = vmul.f32 1.0, %v101
  %v103 = vrcp.pop %v81
  %v104 = vmul.f32 1.0, %v103
  %v105 = vrcp.pop %v82
  %v106 = vmul.f32 1.0, %v105
  %v107 = vadd.f32 %v84, %v26
  %v108 = vadd.f32 %v86, %v27
  %v109 = vadd.f32 %v88, %v28
  %v110 = vadd.f32 %v90, %v29
  %v111 = vadd.f32 %v92, %v26
  %v112 = vadd.f32 %v94, %v27
  %v113 = vadd.f32 %v96, %v28
  %v114 = vadd.f32 %v98, %v29
  %v115 = vadd.f32 %v100, %v26
  %v116 = vadd.f32 %v102, %v27
  %v117 = vadd.f32 %v104, %v28
  %v118 = vadd.f32 %v106, %v29
  %v119 = vmul.f32 %v107, 2.0
  %v120 = vmul.f32 %v108, 2.0
  %v121 = vmul.f32 %v109, 2.0
  %v122 = vmul.f32 %v110, 2.0
  %v123 = vmul.f32 %v111, 2.0
  %v124 = vmul.f32 %v112, 2.0
  %v125 = vmul.f32 %v113, 2.0
  %v126 = vmul.f32 %v114, 2.0
  %v127 = vmul.f32 %v115, 2.0
  %v128 = vmul.f32 %v116, 2.0
  %v129 = vmul.f32 %v117, 2.0
  %v130 = vmul.f32 %v118, 2.0
  %v131 = vmul.f32 %v14, 1.442695
  %v132 = vpow.pop %v131
  %v133 = vmul.f32 %v15, 1.442695
  %v134 = vpow.pop %v133
  %v135 = vmul.f32 %v16, 1.442695
  %v136 = vpow.pop %v135
  %v137 = vmul.f32 %v17, 1.442695
  %v138 = vpow.pop %v137
  %v139 = vmul.f32 %v18, 1.442695
  %v140 = vpow.pop %v139
  %v141 = vmul.f32 %v19, 1.442695
  %v142 = vpow.pop %v141
  %v143 = vmul.f32 %v20, 1.442695
  %v144 = vpow.pop %v143
  %v145 = vmul.f32 %v21, 1.442695
  %v146 = vpow.pop %v145
  %v147 = vmul.f32 %v22, 1.442695
  %v148 = vpow.pop %v147
  %v149 = vmul.f32 %v23, 1.442695
  %v150 = vpow.pop %v149
  %v151 = vmul.f32 %v24, 1.442695
  %v152 = vpow.pop %v151
  %v153 = vmul.f32 %v25, 1.442695
  %v154 = vpow.pop %v153
  %156 = vset.pattern.permute.xlu0 0
  %157 = vperm.xlu0 %156, %v30
  %v158 = vpop.permute.xlu0 %157
  %161 = vset.pattern.permute.xlu0 0
  %162 = vperm.xlu0 %161, %v31
  %v163 = vpop.permute.xlu0 %162
  %166 = vset.pattern.permute.xlu0 0
  %167 = vperm.xlu0 %166, %v32
  %v168 = vpop.permute.xlu0 %167
  %v170 = vmul.f32 %v132, %v158
  %v171 = vmul.f32 %v134, %v158
  %v172 = vmul.f32 %v136, %v158
  %v173 = vmul.f32 %v138, %v158
  %v174 = vmul.f32 %v140, %v163
  %v175 = vmul.f32 %v142, %v163
  %v176 = vmul.f32 %v144, %v163
  %v177 = vmul.f32 %v146, %v163
  %v178 = vmul.f32 %v148, %v168
  %v179 = vmul.f32 %v150, %v168
  %v180 = vmul.f32 %v152, %v168
  %v181 = vmul.f32 %v154, %v168
  %v182 = vmul.f32 %v170, 2.0
  %v183 = vmul.f32 %v171, 2.0
  %v184 = vmul.f32 %v172, 2.0
  %v185 = vmul.f32 %v173, 2.0
  %v186 = vmul.f32 %v174, 2.0
  %v187 = vmul.f32 %v175, 2.0
  %v188 = vmul.f32 %v176, 2.0
  %v189 = vmul.f32 %v177, 2.0
  %v190 = vmul.f32 %v178, 2.0
  %v191 = vmul.f32 %v179, 2.0
  %v192 = vmul.f32 %v180, 2.0
  %v193 = vmul.f32 %v181, 2.0
  %vm194 = vcmp.lt.s32.totalorder %v34, 2
  %vm195 = vcmp.lt.s32.totalorder %v34, 4
  %v196 = vsel %vm195, %v182, %v84
  %v197 = vsel %vm195, %v183, %v86
  %v198 = vsel %vm195, %v184, %v88
  %v199 = vsel %vm195, %v185, %v90
  %v200 = vsel %vm195, %v186, %v92
  %v201 = vsel %vm195, %v187, %v94
  %v202 = vsel %vm195, %v188, %v96
  %v203 = vsel %vm195, %v189, %v98
  %v204 = vsel %vm195, %v190, %v100
  %v205 = vsel %vm195, %v191, %v102
  %v206 = vsel %vm195, %v192, %v104
  %v207 = vsel %vm195, %v193, %v106
  %v208 = vsel %vm194, %v119, %v196
  %v209 = vsel %vm194, %v120, %v197
  %v210 = vsel %vm194, %v121, %v198
  %v211 = vsel %vm194, %v122, %v199
  %v212 = vsel %vm194, %v123, %v200
  %v213 = vsel %vm194, %v124, %v201
  %v214 = vsel %vm194, %v125, %v202
  %v215 = vsel %vm194, %v126, %v203
  %v216 = vsel %vm194, %v127, %v204
  %v217 = vsel %vm194, %v128, %v205
  %v218 = vsel %vm194, %v129, %v206
  %v219 = vsel %vm194, %v130, %v207
  %220 = vst [vmem:[%s3] sm:$0x7f] %v208
  %221 = vst [vmem:[%s3 + $0x8] sm:$0x7f] %v209
  %222 = vst [vmem:[%s3 + $0x10] sm:$0x7f] %v210
  %223 = vst [vmem:[%s3 + $0x18] sm:$0x7f] %v211
  %224 = vst [vmem:[%s3 + $0x20] sm:$0x7f] %v212
  %225 = vst [vmem:[%s3 + $0x28] sm:$0x7f] %v213
  %226 = vst [vmem:[%s3 + $0x30] sm:$0x7f] %v214
  %227 = vst [vmem:[%s3 + $0x38] sm:$0x7f] %v215
  %228 = vst [vmem:[%s3 + $0x40] sm:$0x7f] %v216
  %229 = vst [vmem:[%s3 + $0x48] sm:$0x7f] %v217
  %230 = vst [vmem:[%s3 + $0x50] sm:$0x7f] %v218
  %231 = vst [vmem:[%s3 + $0x58] sm:$0x7f] %v219
  // Predicated region
  $region14: #{_lambda_.21} parent=0 // pred_check
    _
  $region15: #{_lambda_.21} parent=0 // pred_check_branch
    %233 = sbr.rel (0) target = $region17
  $region16: #{_lambda_.21} parent=0 // pred_region
    _
  $region17: #{_lambda_.21} parent=0 // pred_fallthru
    _
  // Predicated region
  $region18: #{_lambda_.21} parent=0 // pred_check
    _
  $region19: #{_lambda_.21} parent=0 // pred_check_branch
    %235 = sbr.rel (0) target = $region21
  $region20: #{_lambda_.21} parent=0 // pred_region
    _
  $region21: #{_lambda_.21} parent=0 // pred_fallthru
    _

// kernel: _lambda_.20
$region0: #{_lambda_.20}
  #allocation0 [shape = 'u32[]', space=smem, size = 0x4, offset = 0x4, fixed_abs, tag = 'smem constant byte address 0x4 - core index']
  #allocation1 [shape = 'u32[144,128]{1,0:T(1,128)}', space=vmem, size = 0x12000, scoped, tag = 'internal scratch']
  %s0 = inlined_call_operand.vmem [shape: f32[21,288], index: 0, kind: input, shape index: {}]
  %s1 = inlined_call_operand.vmem [shape: f32[288,512], index: 1, kind: input, shape index: {}]
  %s2 = inlined_call_operand.vmem [shape: f32[21,1], index: 2, kind: input, shape index: {}]
  %s3 = inlined_call_operand.vmem [shape: f32[21,512], index: 3, kind: output, shape index: {}]
  %s4 = sld [smem:[#allocation0]]
  $region22: #{_lambda_.20} parent=0
    _
  %s6 = ssub.s32 1, %s4
  %s7 = scalar_select 0, %s6, %s4
  // Predicated region
  $region2: #{_lambda_.20} parent=0 // pred_check
    _
  $region3: #{_lambda_.20} parent=0 // pred_check_branch
    %9 = sbr.rel (0) target = $region5
  $region4: #{_lambda_.20} parent=0 // pred_region
    _
  $region5: #{_lambda_.20} parent=0 // pred_fallthru
    _
  // Predicated region
  $region6: #{_lambda_.20} parent=0 // pred_check
    _
  $region7: #{_lambda_.20} parent=0 // pred_check_branch
    %11 = sbr.rel (0) target = $region9
  $region8: #{_lambda_.20} parent=0 // pred_region
    _
  $region9: #{_lambda_.20} parent=0 // pred_fallthru
    _
  // Predicated region
  $region10: #{_lambda_.20} parent=0 // pred_check
    _
  $region11: #{_lambda_.20} parent=0 // pred_check_branch
    %13 = sbr.rel (0) target = $region13
  $region12: #{_lambda_.20} parent=0 // pred_region
    _
  $region13: #{_lambda_.20} parent=0 // pred_fallthru
    _
  %v15 = vld [vmem:[%s0] sm:$0xff]
  %v16 = vld [vmem:[%s0 + $0x8] sm:$0xff]
  %v17 = vld [vmem:[%s0 + $0x10] sm:$0xff]
  %v18 = vld [vmem:[%s0 + $0x18] sm:$0xff]
  %v19 = vld [vmem:[%s0 + $0x20] sm:$0xff]
  %v20 = vld [vmem:[%s0 + $0x28] sm:$0xff]
  %v21 = vld [vmem:[%s0 + $0x30] sm:$0x1f]
  %v22 = vld [vmem:[%s0 + $0x38] sm:$0x1f]
  %v23 = vld [vmem:[%s0 + $0x40] sm:$0x1f]
  %v24 = vpack.c.bf16 %v18, %v15
  %v25 = vpack.c.bf16 %v19, %v16
  %v26 = vpack.c.bf16 %v20, %v17
  %v27 = vpack.c.bf16 %v21, %v21
  %v28 = vpack.c.bf16 %v22, %v22
  %v29 = vpack.c.bf16 %v23, %v23
  %v30 = vld [vmem:[%s1] sm:$0xff]
  %v31 = vld [vmem:[%s1 + $0x8] sm:$0xff]
  %v32 = vld [vmem:[%s1 + $0x10] sm:$0xff]
  %v33 = vld [vmem:[%s1 + $0x18] sm:$0xff]
  %v34 = vld [vmem:[%s1 + $0x20] sm:$0xff]
  %v35 = vld [vmem:[%s1 + $0x28] sm:$0xff]
  %v36 = vld [vmem:[%s1 + $0x30] sm:$0xff]
  %v37 = vld [vmem:[%s1 + $0x38] sm:$0xff]
  %v38 = vld [vmem:[%s1 + $0x40] sm:$0xff]
  %v39 = vld [vmem:[%s1 + $0x48] sm:$0xff]
  %v40 = vld [vmem:[%s1 + $0x50] sm:$0xff]
  %v41 = vld [vmem:[%s1 + $0x58] sm:$0xff]
  %v42 = vld [vmem:[%s1 + $0x60] sm:$0xff]
  %v43 = vld [vmem:[%s1 + $0x68] sm:$0xff]
  %v44 = vld [vmem:[%s1 + $0x70] sm:$0xff]
  %v45 = vld [vmem:[%s1 + $0x78] sm:$0xff]
  %v46 = vld [vmem:[%s1 + $0x80] sm:$0xff]
  %v47 = vld [vmem:[%s1 + $0x88] sm:$0xff]
  %v48 = vld [vmem:[%s1 + $0x90] sm:$0xff]
  %v49 = vld [vmem:[%s1 + $0x98] sm:$0xff]
  %v50 = vld [vmem:[%s1 + $0xa0] sm:$0xff]
  %v51 = vld [vmem:[%s1 + $0xa8] sm:$0xff]
  %v52 = vld [vmem:[%s1 + $0xb0] sm:$0xff]
  %v53 = vld [vmem:[%s1 + $0xb8] sm:$0xff]
  %v54 = vld [vmem:[%s1 + $0xc0] sm:$0xff]
  %v55 = vld [vmem:[%s1 + $0xc8] sm:$0xff]
  %v56 = vld [vmem:[%s1 + $0xd0] sm:$0xff]
  %v57 = vld [vmem:[%s1 + $0xd8] sm:$0xff]
  %v58 = vld [vmem:[%s1 + $0xe0] sm:$0xff]
  %v59 = vld [vmem:[%s1 + $0xe8] sm:$0xff]
  %v60 = vld [vmem:[%s1 + $0xf0] sm:$0xff]
  %v61 = vld [vmem:[%s1 + $0xf8] sm:$0xff]
  %v62 = vld [vmem:[%s1 + $0x100] sm:$0xff]
  %v63 = vld [vmem:[%s1 + $0x108] sm:$0xff]
  %v64 = vld [vmem:[%s1 + $0x110] sm:$0xff]
  %v65 = vld [vmem:[%s1 + $0x118] sm:$0xff]
  %v66 = vld [vmem:[%s1 + $0x120] sm:$0xff]
  %v67 = vld [vmem:[%s1 + $0x128] sm:$0xff]
  %v68 = vld [vmem:[%s1 + $0x130] sm:$0xff]
  %v69 = vld [vmem:[%s1 + $0x138] sm:$0xff]
  %v70 = vld [vmem:[%s1 + $0x140] sm:$0xff]
  %v71 = vld [vmem:[%s1 + $0x148] sm:$0xff]
  %v72 = vld [vmem:[%s1 + $0x150] sm:$0xff]
  %v73 = vld [vmem:[%s1 + $0x158] sm:$0xff]
  %v74 = vld [vmem:[%s1 + $0x160] sm:$0xff]
  %v75 = vld [vmem:[%s1 + $0x168] sm:$0xff]
  %v76 = vld [vmem:[%s1 + $0x170] sm:$0xff]
  %v77 = vld [vmem:[%s1 + $0x178] sm:$0xff]
  %v78 = vld [vmem:[%s1 + $0x180] sm:$0xff]
  %v79 = vld [vmem:[%s1 + $0x188] sm:$0xff]
  %v80 = vld [vmem:[%s1 + $0x190] sm:$0xff]
  %v81 = vld [vmem:[%s1 + $0x198] sm:$0xff]
  %v82 = vld [vmem:[%s1 + $0x1a0] sm:$0xff]
  %v83 = vld [vmem:[%s1 + $0x1a8] sm:$0xff]
  %v84 = vld [vmem:[%s1 + $0x1b0] sm:$0xff]
  %v85 = vld [vmem:[%s1 + $0x1b8] sm:$0xff]
  %v86 = vld [vmem:[%s1 + $0x1c0] sm:$0xff]
  %v87 = vld [vmem:[%s1 + $0x1c8] sm:$0xff]
  %v88 = vld [vmem:[%s1 + $0x1d0] sm:$0xff]
  %v89 = vld [vmem:[%s1 + $0x1d8] sm:$0xff]
  %v90 = vld [vmem:[%s1 + $0x1e0] sm:$0xff]
  %v91 = vld [vmem:[%s1 + $0x1e8] sm:$0xff]
  %v92 = vld [vmem:[%s1 + $0x1f0] sm:$0xff]
  %v93 = vld [vmem:[%s1 + $0x1f8] sm:$0xff]
  %v94 = vld [vmem:[%s1 + $0x200] sm:$0xff]
  %v95 = vld [vmem:[%s1 + $0x208] sm:$0xff]
  %v96 = vld [vmem:[%s1 + $0x210] sm:$0xff]
  %v97 = vld [vmem:[%s1 + $0x218] sm:$0xff]
  %v98 = vld [vmem:[%s1 + $0x220] sm:$0xff]
  %v99 = vld [vmem:[%s1 + $0x228] sm:$0xff]
  %v100 = vld [vmem:[%s1 + $0x230] sm:$0xff]
  %v101 = vld [vmem:[%s1 + $0x238] sm:$0xff]
  %v102 = vld [vmem:[%s1 + $0x240] sm:$0xff]
  %v103 = vld [vmem:[%s1 + $0x248] sm:$0xff]
  %v104 = vld [vmem:[%s1 + $0x250] sm:$0xff]
  %v105 = vld [vmem:[%s1 + $0x258] sm:$0xff]
  %v106 = vld [vmem:[%s1 + $0x260] sm:$0xff]
  %v107 = vld [vmem:[%s1 + $0x268] sm:$0xff]
  %v108 = vld [vmem:[%s1 + $0x270] sm:$0xff]
  %v109 = vld [vmem:[%s1 + $0x278] sm:$0xff]
  %v110 = vld [vmem:[%s1 + $0x280] sm:$0xff]
  %v111 = vld [vmem:[%s1 + $0x288] sm:$0xff]
  %v112 = vld [vmem:[%s1 + $0x290] sm:$0xff]
  %v113 = vld [vmem:[%s1 + $0x298] sm:$0xff]
  %v114 = vld [vmem:[%s1 + $0x2a0] sm:$0xff]
  %v115 = vld [vmem:[%s1 + $0x2a8] sm:$0xff]
  %v116 = vld [vmem:[%s1 + $0x2b0] sm:$0xff]
  %v117 = vld [vmem:[%s1 + $0x2b8] sm:$0xff]
  %v118 = vld [vmem:[%s1 + $0x2c0] sm:$0xff]
  %v119 = vld [vmem:[%s1 + $0x2c8] sm:$0xff]
  %v120 = vld [vmem:[%s1 + $0x2d0] sm:$0xff]
  %v121 = vld [vmem:[%s1 + $0x2d8] sm:$0xff]
  %v122 = vld [vmem:[%s1 + $0x2e0] sm:$0xff]
  %v123 = vld [vmem:[%s1 + $0x2e8] sm:$0xff]
  %v124 = vld [vmem:[%s1 + $0x2f0] sm:$0xff]
  %v125 = vld [vmem:[%s1 + $0x2f8] sm:$0xff]
  %v126 = vld [vmem:[%s1 + $0x300] sm:$0xff]
  %v127 = vld [vmem:[%s1 + $0x308] sm:$0xff]
  %v128 = vld [vmem:[%s1 + $0x310] sm:$0xff]
  %v129 = vld [vmem:[%s1 + $0x318] sm:$0xff]
  %v130 = vld [vmem:[%s1 + $0x320] sm:$0xff]
  %v131 = vld [vmem:[%s1 + $0x328] sm:$0xff]
  %v132 = vld [vmem:[%s1 + $0x330] sm:$0xff]
  %v133 = vld [vmem:[%s1 + $0x338] sm:$0xff]
  %v134 = vld [vmem:[%s1 + $0x340] sm:$0xff]
  %v135 = vld [vmem:[%s1 + $0x348] sm:$0xff]
  %v136 = vld [vmem:[%s1 + $0x350] sm:$0xff]
  %v137 = vld [vmem:[%s1 + $0x358] sm:$0xff]
  %v138 = vld [vmem:[%s1 + $0x360] sm:$0xff]
  %v139 = vld [vmem:[%s1 + $0x368] sm:$0xff]
  %v140 = vld [vmem:[%s1 + $0x370] sm:$0xff]
  %v141 = vld [vmem:[%s1 + $0x378] sm:$0xff]
  %v142 = vld [vmem:[%s1 + $0x380] sm:$0xff]
  %v143 = vld [vmem:[%s1 + $0x388] sm:$0xff]
  %v144 = vld [vmem:[%s1 + $0x390] sm:$0xff]
  %v145 = vld [vmem:[%s1 + $0x398] sm:$0xff]
  %v146 = vld [vmem:[%s1 + $0x3a0] sm:$0xff]
  %v147 = vld [vmem:[%s1 + $0x3a8] sm:$0xff]
  %v148 = vld [vmem:[%s1 + $0x3b0] sm:$0xff]
  %v149 = vld [vmem:[%s1 + $0x3b8] sm:$0xff]
  %v150 = vld [vmem:[%s1 + $0x3c0] sm:$0xff]
  %v151 = vld [vmem:[%s1 + $0x3c8] sm:$0xff]
  %v152 = vld [vmem:[%s1 + $0x3d0] sm:$0xff]
  %v153 = vld [vmem:[%s1 + $0x3d8] sm:$0xff]
  %v154 = vld [vmem:[%s1 + $0x3e0] sm:$0xff]
  %v155 = vld [vmem:[%s1 + $0x3e8] sm:$0xff]
  %v156 = vld [vmem:[%s1 + $0x3f0] sm:$0xff]
  %v157 = vld [vmem:[%s1 + $0x3f8] sm:$0xff]
  %v158 = vld [vmem:[%s1 + $0x400] sm:$0xff]
  %v159 = vld [vmem:[%s1 + $0x408] sm:$0xff]
  %v160 = vld [vmem:[%s1 + $0x410] sm:$0xff]
  %v161 = vld [vmem:[%s1 + $0x418] sm:$0xff]
  %v162 = vld [vmem:[%s1 + $0x420] sm:$0xff]
  %v163 = vld [vmem:[%s1 + $0x428] sm:$0xff]
  %v164 = vld [vmem:[%s1 + $0x430] sm:$0xff]
  %v165 = vld [vmem:[%s1 + $0x438] sm:$0xff]
  %v166 = vld [vmem:[%s1 + $0x440] sm:$0xff]
  %v167 = vld [vmem:[%s1 + $0x448] sm:$0xff]
  %v168 = vld [vmem:[%s1 + $0x450] sm:$0xff]
  %v169 = vld [vmem:[%s1 + $0x458] sm:$0xff]
  %v170 = vld [vmem:[%s1 + $0x460] sm:$0xff]
  %v171 = vld [vmem:[%s1 + $0x468] sm:$0xff]
  %v172 = vld [vmem:[%s1 + $0x470] sm:$0xff]
  %v173 = vld [vmem:[%s1 + $0x478] sm:$0xff]
  %v174 = vpack.c.bf16 %v34, %v30
  %v175 = vpack.c.bf16 %v35, %v31
  %v176 = vpack.c.bf16 %v36, %v32
  %v177 = vpack.c.bf16 %v37, %v33
  %v178 = vpack.c.bf16 %v42, %v38
  %v179 = vpack.c.bf16 %v43, %v39
  %v180 = vpack.c.bf16 %v44, %v40
  %v181 = vpack.c.bf16 %v45, %v41
  %v182 = vpack.c.bf16 %v50, %v46
  %v183 = vpack.c.bf16 %v51, %v47
  %v184 = vpack.c.bf16 %v52, %v48
  %v185 = vpack.c.bf16 %v53, %v49
  %v186 = vpack.c.bf16 %v58, %v54
  %v187 = vpack.c.bf16 %v59, %v55
  %v188 = vpack.c.bf16 %v60, %v56
  %v189 = vpack.c.bf16 %v61, %v57
  %v190 = vpack.c.bf16 %v66, %v62
  %v191 = vpack.c.bf16 %v67, %v63
  %v192 = vpack.c.bf16 %v68, %v64
  %v193 = vpack.c.bf16 %v69, %v65
  %v194 = vpack.c.bf16 %v74, %v70
  %v195 = vpack.c.bf16 %v75, %v71
  %v196 = vpack.c.bf16 %v76, %v72
  %v197 = vpack.c.bf16 %v77, %v73
  %v198 = vpack.c.bf16 %v82, %v78
  %v199 = vpack.c.bf16 %v83, %v79
  %v200 = vpack.c.bf16 %v84, %v80
  %v201 = vpack.c.bf16 %v85, %v81
  %v202 = vpack.c.bf16 %v90, %v86
  %v203 = vpack.c.bf16 %v91, %v87
  %v204 = vpack.c.bf16 %v92, %v88
  %v205 = vpack.c.bf16 %v93, %v89
  %v206 = vpack.c.bf16 %v98, %v94
  %v207 = vpack.c.bf16 %v99, %v95
  %v208 = vpack.c.bf16 %v100, %v96
  %v209 = vpack.c.bf16 %v101, %v97
  %v210 = vpack.c.bf16 %v106, %v102
  %v211 = vpack.c.bf16 %v107, %v103
  %v212 = vpack.c.bf16 %v108, %v104
  %v213 = vpack.c.bf16 %v109, %v105
  %v214 = vpack.c.bf16 %v114, %v110
  %v215 = vpack.c.bf16 %v115, %v111
  %v216 = vpack.c.bf16 %v116, %v112
  %v217 = vpack.c.bf16 %v117, %v113
  %v218 = vpack.c.bf16 %v122, %v118
  %v219 = vpack.c.bf16 %v123, %v119
  %v220 = vpack.c.bf16 %v124, %v120
  %v221 = vpack.c.bf16 %v125, %v121
  %v222 = vpack.c.bf16 %v130, %v126
  %v223 = vpack.c.bf16 %v131, %v127
  %v224 = vpack.c.bf16 %v132, %v128
  %v225 = vpack.c.bf16 %v133, %v129
  %v226 = vpack.c.bf16 %v138, %v134
  %v227 = vpack.c.bf16 %v139, %v135
  %v228 = vpack.c.bf16 %v140, %v136
  %v229 = vpack.c.bf16 %v141, %v137
  %v230 = vpack.c.bf16 %v146, %v142
  %v231 = vpack.c.bf16 %v147, %v143
  %v232 = vpack.c.bf16 %v148, %v144
  %v233 = vpack.c.bf16 %v149, %v145
  %v234 = vpack.c.bf16 %v154, %v150
  %v235 = vpack.c.bf16 %v155, %v151
  %v236 = vpack.c.bf16 %v156, %v152
  %v237 = vpack.c.bf16 %v157, %v153
  %v238 = vpack.c.bf16 %v162, %v158
  %v239 = vpack.c.bf16 %v163, %v159
  %v240 = vpack.c.bf16 %v164, %v160
  %v241 = vpack.c.bf16 %v165, %v161
  %v242 = vpack.c.bf16 %v170, %v166
  %v243 = vpack.c.bf16 %v171, %v167
  %v244 = vpack.c.bf16 %v172, %v168
  %v245 = vpack.c.bf16 %v173, %v169
  %v246 = vld [vmem:[%s2] sm:$0xff]
  %v247 = vld [vmem:[%s2 + $0x8] sm:$0xff]
  %v248 = vld [vmem:[%s2 + $0x10] sm:$0x1f]
  %250 = vset.pattern.permute.xlu0 0
  %251 = vperm.xlu0 %250, %v246
  %v252 = vpop.permute.xlu0 %251
  %255 = vset.pattern.permute.xlu0 0
  %256 = vperm.xlu0 %255, %v247
  %v257 = vpop.permute.xlu0 %256
  %260 = vset.pattern.permute.xlu0 0
  %261 = vperm.xlu0 %260, %v248
  %v262 = vpop.permute.xlu0 %261
  %vm264 = vcmask 261120
  %v266 = vsel %vm264, %v26, 0
  %v269 = vsel %vm264, %v29, 0
  %271 = vmatprep.subr.bf16.mxu0 %v203
  %272 = vmatpush1.bf16.msra.mxu0 %v202
  %273 = vmatprep.subr.bf16.mxu0 %v199
  %274 = vmatpush1.bf16.msra.mxu0 %v198
  %275 = vmatprep.subr.bf16.mxu0 %v195
  %276 = vmatpush1.bf16.msra.mxu0 %v194
  %277 = vmatprep.subr.bf16.mxu0 %v191
  %278 = vmatpush1.bf16.msra.mxu0 %v190
  %279 = vmatprep.subr.bf16.mxu0 %v187
  %280 = vmatpush1.bf16.msra.mxu0 %v186
  %281 = vmatprep.subr.bf16.mxu0 %v183
  %282 = vmatpush1.bf16.msra.mxu0 %v182
  %283 = vmatprep.subr.bf16.mxu0 %v179
  %284 = vmatpush1.bf16.msra.mxu0 %v178
  %285 = vmatprep.subr.bf16.mxu0 %v175
  %286 = vmatpush1.bf16.msra.mxu0 %v174
  %287 = vmatprep.subr.bf16.mxu0 %v235
  %288 = vmatpush2.bf16.msra.mxu0 %v234
  %289 = vmatprep.subr.bf16.mxu0 %v231
  %290 = vmatpush2.bf16.msra.mxu0 %v230
  %291 = vmatprep.subr.bf16.mxu0 %v227
  %292 = vmatpush2.bf16.msra.mxu0 %v226
  %293 = vmatprep.subr.bf16.mxu0 %v223
  %294 = vmatpush2.bf16.msra.mxu0 %v222
  %295 = vmatprep.subr.bf16.mxu0 %v219
  %296 = vmatpush2.bf16.msra.mxu0 %v218
  %297 = vmatprep.subr.bf16.mxu0 %v215
  %298 = vmatpush2.bf16.msra.mxu0 %v214
  %299 = vmatprep.subr.bf16.mxu0 %v211
  %300 = vmatpush2.bf16.msra.mxu0 %v210
  %301 = vmatprep.subr.bf16.mxu0 %v207
  %302 = vmatpush2.bf16.msra.mxu0 %v206
  %303 = vmatprep.mubr.bf16.mxu0 %v25
  %304 = vmatmul.mubr.bf16.gmra.mxu0 %v24
  %v305 = vpop.f32.mrf.mxu0
  %v306 = vadd.f32 %v252, %v305
  %v307 = vpop.f32.mrf.mxu0
  %v308 = vadd.f32 %v252, %v307
  %v309 = vpop.f32.mrf.mxu0
  %v310 = vadd.f32 %v257, %v309
  %v311 = vpop.f32.mrf.mxu0
  %v312 = vadd.f32 %v257, %v311
  %313 = vmatprep.mubr.bf16.mxu0 %v28
  %314 = vmatmul.mubr.bf16.gmra.mxu0 %v27
  %v315 = vpop.f32.mrf.mxu0
  %v316 = vadd.f32 %v262, %v315
  %v317 = vpop.f32.mrf.mxu0
  %v318 = vadd.f32 %v262, %v317
  %v319 = vpop.f32.mrf.mxu0
  %v320 = vpop.f32.mrf.mxu0
  %321 = vdwg.mxu0
  %322 = vmatprep.subr.bf16.mxu0 0
  %323 = vmatpush1.bf16.msra.mxu0 0
  %324 = vmatprep.subr.bf16.mxu0 0
  %325 = vmatpush1.bf16.msra.mxu0 0
  %326 = vmatprep.subr.bf16.mxu0 0
  %327 = vmatpush1.bf16.msra.mxu0 0
  %328 = vmatprep.subr.bf16.mxu0 0
  %329 = vmatpush1.bf16.msra.mxu0 0
  %330 = vmatprep.subr.bf16.mxu0 0
  %331 = vmatpush1.bf16.msra.mxu0 0
  %332 = vmatprep.subr.bf16.mxu0 0
  %333 = vmatpush1.bf16.msra.mxu0 0
  %334 = vmatprep.subr.bf16.mxu0 %v243
  %335 = vmatpush1.bf16.msra.mxu0 %v242
  %336 = vmatprep.subr.bf16.mxu0 %v239
  %337 = vmatpush1.bf16.msra.mxu0 %v238
  %338 = vmatprep.subr.bf16.mxu0 0
  %339 = vmatpush2.bf16.msra.mxu0 0
  %340 = vmatprep.subr.bf16.mxu0 0
  %341 = vmatpush2.bf16.msra.mxu0 0
  %342 = vmatprep.subr.bf16.mxu0 0
  %343 = vmatpush2.bf16.msra.mxu0 0
  %344 = vmatprep.subr.bf16.mxu0 0
  %345 = vmatpush2.bf16.msra.mxu0 0
  %346 = vmatprep.subr.bf16.mxu0 0
  %347 = vmatpush2.bf16.msra.mxu0 0
  %348 = vmatprep.subr.bf16.mxu0 0
  %349 = vmatpush2.bf16.msra.mxu0 0
  %350 = vmatprep.subr.bf16.mxu0 0
  %351 = vmatpush2.bf16.msra.mxu0 0
  %352 = vmatprep.subr.bf16.mxu0 0
  %353 = vmatpush2.bf16.msra.mxu0 0
  %354 = vmatprep.mubr.bf16.mxu0 0
  %355 = vmatmul.mubr.bf16.gmra.mxu0 %v266
  %v356 = vpop.f32.mrf.mxu0
  %v357 = vadd.f32 %v306, %v356
  %v358 = vpop.f32.mrf.mxu0
  %v359 = vadd.f32 %v308, %v358
  %v360 = vpop.f32.mrf.mxu0
  %v361 = vadd.f32 %v310, %v360
  %v362 = vpop.f32.mrf.mxu0
  %v363 = vadd.f32 %v312, %v362
  %364 = vmatprep.mubr.bf16.mxu0 0
  %365 = vmatmul.mubr.bf16.gmra.mxu0 %v269
  %v366 = vpop.f32.mrf.mxu0
  %v367 = vadd.f32 %v316, %v366
  %v368 = vpop.f32.mrf.mxu0
  %v369 = vadd.f32 %v318, %v368
  %v370 = vpop.f32.mrf.mxu0
  %v371 = vpop.f32.mrf.mxu0
  %372 = vdwg.mxu0
  %373 = vmatprep.subr.bf16.mxu0 %v205
  %374 = vmatpush1.bf16.msra.mxu0 %v204
  %375 = vmatprep.subr.bf16.mxu0 %v201
  %376 = vmatpush1.bf16.msra.mxu0 %v200
  %377 = vmatprep.subr.bf16.mxu0 %v197
  %378 = vmatpush1.bf16.msra.mxu0 %v196
  %379 = vmatprep.subr.bf16.mxu0 %v193
  %380 = vmatpush1.bf16.msra.mxu0 %v192
  %381 = vmatprep.subr.bf16.mxu0 %v189
  %382 = vmatpush1.bf16.msra.mxu0 %v188
  %383 = vmatprep.subr.bf16.mxu0 %v185
  %384 = vmatpush1.bf16.msra.mxu0 %v184
  %385 = vmatprep.subr.bf16.mxu0 %v181
  %386 = vmatpush1.bf16.msra.mxu0 %v180
  %387 = vmatprep.subr.bf16.mxu0 %v177
  %388 = vmatpush1.bf16.msra.mxu0 %v176
  %389 = vmatprep.subr.bf16.mxu0 %v237
  %390 = vmatpush2.bf16.msra.mxu0 %v236
  %391 = vmatprep.subr.bf16.mxu0 %v233
  %392 = vmatpush2.bf16.msra.mxu0 %v232
  %393 = vmatprep.subr.bf16.mxu0 %v229
  %394 = vmatpush2.bf16.msra.mxu0 %v228
  %395 = vmatprep.subr.bf16.mxu0 %v225
  %396 = vmatpush2.bf16.msra.mxu0 %v224
  %397 = vmatprep.subr.bf16.mxu0 %v221
  %398 = vmatpush2.bf16.msra.mxu0 %v220
  %399 = vmatprep.subr.bf16.mxu0 %v217
  %400 = vmatpush2.bf16.msra.mxu0 %v216
  %401 = vmatprep.subr.bf16.mxu0 %v213
  %402 = vmatpush2.bf16.msra.mxu0 %v212
  %403 = vmatprep.subr.bf16.mxu0 %v209
  %404 = vmatpush2.bf16.msra.mxu0 %v208
  %405 = vmatprep.mubr.bf16.mxu0 %v25
  %406 = vmatmul.mubr.bf16.gmra.mxu0 %v24
  %v407 = vpop.f32.mrf.mxu0
  %v408 = vadd.f32 %v252, %v407
  %v409 = vpop.f32.mrf.mxu0
  %v410 = vadd.f32 %v252, %v409
  %v411 = vpop.f32.mrf.mxu0
  %v412 = vadd.f32 %v257, %v411
  %v413 = vpop.f32.mrf.mxu0
  %v414 = vadd.f32 %v257, %v413
  %415 = vmatprep.mubr.bf16.mxu0 %v28
  %416 = vmatmul.mubr.bf16.gmra.mxu0 %v27
  %v417 = vpop.f32.mrf.mxu0
  %v418 = vadd.f32 %v262, %v417
  %v419 = vpop.f32.mrf.mxu0
  %v420 = vadd.f32 %v262, %v419
  %v421 = vpop.f32.mrf.mxu0
  %v422 = vpop.f32.mrf.mxu0
  %423 = vdwg.mxu0
  %424 = vmatprep.subr.bf16.mxu0 0
  %425 = vmatpush1.bf16.msra.mxu0 0
  %426 = vmatprep.subr.bf16.mxu0 0
  %427 = vmatpush1.bf16.msra.mxu0 0
  %428 = vmatprep.subr.bf16.mxu0 0
  %429 = vmatpush1.bf16.msra.mxu0 0
  %430 = vmatprep.subr.bf16.mxu0 0
  %431 = vmatpush1.bf16.msra.mxu0 0
  %432 = vmatprep.subr.bf16.mxu0 0
  %433 = vmatpush1.bf16.msra.mxu0 0
  %434 = vmatprep.subr.bf16.mxu0 0
  %435 = vmatpush1.bf16.msra.mxu0 0
  %436 = vmatprep.subr.bf16.mxu0 %v245
  %437 = vmatpush1.bf16.msra.mxu0 %v244
  %438 = vmatprep.subr.bf16.mxu0 %v241
  %439 = vmatpush1.bf16.msra.mxu0 %v240
  %440 = vmatprep.subr.bf16.mxu0 0
  %441 = vmatpush2.bf16.msra.mxu0 0
  %442 = vmatprep.subr.bf16.mxu0 0
  %443 = vmatpush2.bf16.msra.mxu0 0
  %444 = vmatprep.subr.bf16.mxu0 0
  %445 = vmatpush2.bf16.msra.mxu0 0
  %446 = vmatprep.subr.bf16.mxu0 0
  %447 = vmatpush2.bf16.msra.mxu0 0
  %448 = vmatprep.subr.bf16.mxu0 0
  %449 = vmatpush2.bf16.msra.mxu0 0
  %450 = vmatprep.subr.bf16.mxu0 0
  %451 = vmatpush2.bf16.msra.mxu0 0
  %452 = vmatprep.subr.bf16.mxu0 0
  %453 = vmatpush2.bf16.msra.mxu0 0
  %454 = vmatprep.subr.bf16.mxu0 0
  %455 = vmatpush2.bf16.msra.mxu0 0
  %456 = vmatprep.mubr.bf16.mxu0 0
  %457 = vmatmul.mubr.bf16.gmra.mxu0 %v266
  %v458 = vpop.f32.mrf.mxu0
  %v459 = vadd.f32 %v408, %v458
  %v460 = vpop.f32.mrf.mxu0
  %v461 = vadd.f32 %v410, %v460
  %v462 = vpop.f32.mrf.mxu0
  %v463 = vadd.f32 %v412, %v462
  %v464 = vpop.f32.mrf.mxu0
  %v465 = vadd.f32 %v414, %v464
  %466 = vmatprep.mubr.bf16.mxu0 0
  %467 = vmatmul.mubr.bf16.gmra.mxu0 %v269
  %v468 = vpop.f32.mrf.mxu0
  %v469 = vadd.f32 %v418, %v468
  %v470 = vpop.f32.mrf.mxu0
  %v471 = vadd.f32 %v420, %v470
  %v472 = vpop.f32.mrf.mxu0
  %v473 = vpop.f32.mrf.mxu0
  %474 = vdwg.mxu0
  %475 = vst [vmem:[%s3] sm:$0xff] %v357
  %476 = vst [vmem:[%s3 + $0x8] sm:$0xff] %v359
  %477 = vst [vmem:[%s3 + $0x10] sm:$0xff] %v459
  %478 = vst [vmem:[%s3 + $0x18] sm:$0xff] %v461
  %479 = vst [vmem:[%s3 + $0x20] sm:$0xff] %v361
  %480 = vst [vmem:[%s3 + $0x28] sm:$0xff] %v363
  %481 = vst [vmem:[%s3 + $0x30] sm:$0xff] %v463
  %482 = vst [vmem:[%s3 + $0x38] sm:$0xff] %v465
  %483 = vst [vmem:[%s3 + $0x40] sm:$0x1f] %v367
  %484 = vst [vmem:[%s3 + $0x48] sm:$0x1f] %v369
  %485 = vst [vmem:[%s3 + $0x50] sm:$0x1f] %v469
  %486 = vst [vmem:[%s3 + $0x58] sm:$0x1f] %v471
  // Predicated region
  $region14: #{_lambda_.20} parent=0 // pred_check
    _
  $region15: #{_lambda_.20} parent=0 // pred_check_branch
    %488 = sbr.rel (0) target = $region17
  $region16: #{_lambda_.20} parent=0 // pred_region
    _
  $region17: #{_lambda_.20} parent=0 // pred_fallthru
    _
  // Predicated region
  $region18: #{_lambda_.20} parent=0 // pred_check
    _
  $region19: #{_lambda_.20} parent=0 // pred_check_branch
    %490 = sbr.rel (0) target = $region21
  $region20: #{_lambda_.20} parent=0 // pred_region
    _
  $region21: #{_lambda_.20} parent=0 // pred_fallthru
    _

// kernel: _lambda_.16
$region0: #{_lambda_.16}
  #allocation0 [shape = 'u32[]', space=smem, size = 0x4, offset = 0x4, fixed_abs, tag = 'smem constant byte address 0x4 - core index']
  #allocation1 [shape = 'u32[144,128]{1,0:T(1,128)}', space=vmem, size = 0x12000, scoped, tag = 'internal scratch']
  %s0 = inlined_call_operand.vmem [shape: f32[21,32], index: 0, kind: input, shape index: {}]
  %s1 = inlined_call_operand.vmem [shape: f32[32,128], index: 1, kind: input, shape index: {}]
  %s2 = inlined_call_operand.vmem [shape: f32[21,1], index: 2, kind: input, shape index: {}]
  %s3 = inlined_call_operand.vmem [shape: f32[21,128], index: 3, kind: output, shape index: {}]
  %s4 = sld [smem:[#allocation0]]
  $region22: #{_lambda_.16} parent=0
    _
  %s6 = ssub.s32 1, %s4
  %s7 = scalar_select 0, %s6, %s4
  // Predicated region
  $region2: #{_lambda_.16} parent=0 // pred_check
    _
  $region3: #{_lambda_.16} parent=0 // pred_check_branch
    %9 = sbr.rel (0) target = $region5
  $region4: #{_lambda_.16} parent=0 // pred_region
    _
  $region5: #{_lambda_.16} parent=0 // pred_fallthru
    _
  // Predicated region
  $region6: #{_lambda_.16} parent=0 // pred_check
    _
  $region7: #{_lambda_.16} parent=0 // pred_check_branch
    %11 = sbr.rel (0) target = $region9
  $region8: #{_lambda_.16} parent=0 // pred_region
    _
  $region9: #{_lambda_.16} parent=0 // pred_fallthru
    _
  // Predicated region
  $region10: #{_lambda_.16} parent=0 // pred_check
    _
  $region11: #{_lambda_.16} parent=0 // pred_check_branch
    %13 = sbr.rel (0) target = $region13
  $region12: #{_lambda_.16} parent=0 // pred_region
    _
  $region13: #{_lambda_.16} parent=0 // pred_fallthru
    _
  %v15 = vld [vmem:[%s0] sm:$0xff]
  %v16 = vld [vmem:[%s0 + $0x8] sm:$0xff]
  %v17 = vld [vmem:[%s0 + $0x10] sm:$0x1f]
  %v18 = vpack.c.bf16 %v16, %v15
  %v19 = vpack.c.bf16 %v17, %v17
  %v20 = vld [vmem:[%s1] sm:$0xff]
  %v21 = vld [vmem:[%s1 + $0x8] sm:$0xff]
  %v22 = vld [vmem:[%s1 + $0x10] sm:$0xff]
  %v23 = vld [vmem:[%s1 + $0x18] sm:$0xff]
  %v24 = vpack.c.bf16 %v21, %v20
  %v25 = vpack.c.bf16 %v23, %v22
  %v26 = vld [vmem:[%s2] sm:$0xff]
  %v27 = vld [vmem:[%s2 + $0x8] sm:$0xff]
  %v28 = vld [vmem:[%s2 + $0x10] sm:$0x1f]
  %30 = vset.pattern.permute.xlu0 0
  %31 = vperm.xlu0 %30, %v26
  %v32 = vpop.permute.xlu0 %31
  %35 = vset.pattern.permute.xlu0 0
  %36 = vperm.xlu0 %35, %v27
  %v37 = vpop.permute.xlu0 %36
  %40 = vset.pattern.permute.xlu0 0
  %41 = vperm.xlu0 %40, %v28
  %v42 = vpop.permute.xlu0 %41
  %vm44 = vcmask 261120
  %v46 = vsel %vm44, %v18, 0
  %v49 = vsel %vm44, %v19, 0
  %51 = vmatprep.subr.bf16.mxu0 0
  %52 = vmatpush1.bf16.msra.mxu0 0
  %53 = vmatprep.subr.bf16.mxu0 0
  %54 = vmatpush1.bf16.msra.mxu0 0
  %55 = vmatprep.subr.bf16.mxu0 0
  %56 = vmatpush1.bf16.msra.mxu0 0
  %57 = vmatprep.subr.bf16.mxu0 0
  %58 = vmatpush1.bf16.msra.mxu0 0
  %59 = vmatprep.subr.bf16.mxu0 0
  %60 = vmatpush1.bf16.msra.mxu0 0
  %61 = vmatprep.subr.bf16.mxu0 0
  %62 = vmatpush1.bf16.msra.mxu0 0
  %63 = vmatprep.subr.bf16.mxu0 0
  %64 = vmatpush1.bf16.msra.mxu0 %v25
  %65 = vmatprep.subr.bf16.mxu0 0
  %66 = vmatpush1.bf16.msra.mxu0 %v24
  %67 = vmatprep.subr.bf16.mxu0 0
  %68 = vmatpush2.bf16.msra.mxu0 0
  %69 = vmatprep.subr.bf16.mxu0 0
  %70 = vmatpush2.bf16.msra.mxu0 0
  %71 = vmatprep.subr.bf16.mxu0 0
  %72 = vmatpush2.bf16.msra.mxu0 0
  %73 = vmatprep.subr.bf16.mxu0 0
  %74 = vmatpush2.bf16.msra.mxu0 0
  %75 = vmatprep.subr.bf16.mxu0 0
  %76 = vmatpush2.bf16.msra.mxu0 0
  %77 = vmatprep.subr.bf16.mxu0 0
  %78 = vmatpush2.bf16.msra.mxu0 0
  %79 = vmatprep.subr.bf16.mxu0 0
  %80 = vmatpush2.bf16.msra.mxu0 0
  %81 = vmatprep.subr.bf16.mxu0 0
  %82 = vmatpush2.bf16.msra.mxu0 0
  %83 = vmatprep.mubr.bf16.mxu0 0
  %84 = vmatmul.mubr.bf16.gmra.mxu0 %v46
  %v85 = vpop.f32.mrf.mxu0
  %v86 = vadd.f32 %v32, %v85
  %v87 = vpop.f32.mrf.mxu0
  %v88 = vpop.f32.mrf.mxu0
  %v89 = vadd.f32 %v37, %v88
  %v90 = vpop.f32.mrf.mxu0
  %91 = vmatprep.mubr.bf16.mxu0 0
  %92 = vmatmul.mubr.bf16.gmra.mxu0 %v49
  %v93 = vpop.f32.mrf.mxu0
  %v94 = vadd.f32 %v42, %v93
  %v95 = vpop.f32.mrf.mxu0
  %v96 = vpop.f32.mrf.mxu0
  %v97 = vpop.f32.mrf.mxu0
  %98 = vdwg.mxu0
  %99 = vst [vmem:[%s3] sm:$0xff] %v86
  %100 = vst [vmem:[%s3 + $0x8] sm:$0xff] %v89
  %101 = vst [vmem:[%s3 + $0x10] sm:$0x1f] %v94
  // Predicated region
  $region14: #{_lambda_.16} parent=0 // pred_check
    _
  $region15: #{_lambda_.16} parent=0 // pred_check_branch
    %103 = sbr.rel (0) target = $region17
  $region16: #{_lambda_.16} parent=0 // pred_region
    _
  $region17: #{_lambda_.16} parent=0 // pred_fallthru
    _
  // Predicated region
  $region18: #{_lambda_.16} parent=0 // pred_check
    _
  $region19: #{_lambda_.16} parent=0 // pred_check_branch
    %105 = sbr.rel (0) target = $region21
  $region20: #{_lambda_.16} parent=0 // pred_region
    _
  $region21: #{_lambda_.16} parent=0 // pred_fallthru
    _

// kernel: _lambda_.17
$region0: #{_lambda_.17}
  #allocation0 [shape = 'u32[]', space=smem, size = 0x4, offset = 0x4, fixed_abs, tag = 'smem constant byte address 0x4 - core index']
  #allocation1 [shape = 'u32[144,128]{1,0:T(1,128)}', space=vmem, size = 0x12000, scoped, tag = 'internal scratch']
  %s0 = inlined_call_operand.vmem [shape: f32[3,7,128], index: 0, kind: input, shape index: {}]
  %s1 = inlined_call_operand.vmem [shape: f32[7,128], index: 1, kind: input, shape index: {}]
  %s2 = inlined_call_operand.vmem [shape: f32[3,7,1], index: 2, kind: input, shape index: {}]
  %s3 = inlined_call_operand.vmem [shape: f32[3,7,128], index: 3, kind: output, shape index: {}]
  %s4 = sld [smem:[#allocation0]]
  $region22: #{_lambda_.17} parent=0
    _
  %s6 = ssub.s32 1, %s4
  %s7 = scalar_select 0, %s6, %s4
  // Predicated region
  $region2: #{_lambda_.17} parent=0 // pred_check
    _
  $region3: #{_lambda_.17} parent=0 // pred_check_branch
    %9 = sbr.rel (0) target = $region5
  $region4: #{_lambda_.17} parent=0 // pred_region
    _
  $region5: #{_lambda_.17} parent=0 // pred_fallthru
    _
  // Predicated region
  $region6: #{_lambda_.17} parent=0 // pred_check
    _
  $region7: #{_lambda_.17} parent=0 // pred_check_branch
    %11 = sbr.rel (0) target = $region9
  $region8: #{_lambda_.17} parent=0 // pred_region
    _
  $region9: #{_lambda_.17} parent=0 // pred_fallthru
    _
  // Predicated region
  $region10: #{_lambda_.17} parent=0 // pred_check
    _
  $region11: #{_lambda_.17} parent=0 // pred_check_branch
    %13 = sbr.rel (0) target = $region13
  $region12: #{_lambda_.17} parent=0 // pred_region
    _
  $region13: #{_lambda_.17} parent=0 // pred_fallthru
    _
  %v14 = vld [vmem:[%s0] sm:$0x7f]
  %v15 = vld [vmem:[%s0 + $0x8] sm:$0x7f]
  %v16 = vld [vmem:[%s0 + $0x10] sm:$0x7f]
  %v17 = vld [vmem:[%s1] sm:$0x7f]
  %v18 = vld [vmem:[%s2] sm:$0x7f]
  %v19 = vld [vmem:[%s2 + $0x8] sm:$0x7f]
  %v20 = vld [vmem:[%s2 + $0x10] sm:$0x7f]
  %v21 = vlaneseq
  %v22 = vshrl.u32 %v21, 7
  %v23 = vsub.f32 0.0, %v14
  %v24 = vsub.f32 0.0, %v15
  %v25 = vsub.f32 0.0, %v16
  %v26 = vmul.f32 %v23, 1.442695
  %v27 = vpow.pop %v26
  %v28 = vmul.f32 %v24, 1.442695
  %v29 = vpow.pop %v28
  %v30 = vmul.f32 %v25, 1.442695
  %v31 = vpow.pop %v30
  %v32 = vadd.f32 %v27, 1.0
  %v33 = vadd.f32 %v29, 1.0
  %v34 = vadd.f32 %v31, 1.0
  %v35 = vrcp.pop %v32
  %v36 = vmul.f32 1.0, %v35
  %v37 = vrcp.pop %v33
  %v38 = vmul.f32 1.0, %v37
  %v39 = vrcp.pop %v34
  %v40 = vmul.f32 1.0, %v39
  %v41 = vadd.f32 %v36, %v17
  %v42 = vadd.f32 %v38, %v17
  %v43 = vadd.f32 %v40, %v17
  %v44 = vmul.f32 %v41, 4.0
  %v45 = vmul.f32 %v42, 4.0
  %v46 = vmul.f32 %v43, 4.0
  %v47 = vmul.f32 %v14, 1.442695
  %v48 = vpow.pop %v47
  %v49 = vmul.f32 %v15, 1.442695
  %v50 = vpow.pop %v49
  %v51 = vmul.f32 %v16, 1.442695
  %v52 = vpow.pop %v51
  %54 = vset.pattern.permute.xlu0 0
  %55 = vperm.xlu0 %54, %v18
  %v56 = vpop.permute.xlu0 %55
  %59 = vset.pattern.permute.xlu0 0
  %60 = vperm.xlu0 %59, %v19
  %v61 = vpop.permute.xlu0 %60
  %64 = vset.pattern.permute.xlu0 0
  %65 = vperm.xlu0 %64, %v20
  %v66 = vpop.permute.xlu0 %65
  %v68 = vmul.f32 %v48, %v56
  %v69 = vmul.f32 %v50, %v61
  %v70 = vmul.f32 %v52, %v66
  %v71 = vmul.f32 %v68, 4.0
  %v72 = vmul.f32 %v69, 4.0
  %v73 = vmul.f32 %v70, 4.0
  %vm74 = vcmp.lt.s32.totalorder %v22, 2
  %vm75 = vcmp.lt.s32.totalorder %v22, 4
  %v76 = vsel %vm75, %v71, %v36
  %v77 = vsel %vm75, %v72, %v38
  %v78 = vsel %vm75, %v73, %v40
  %v79 = vsel %vm74, %v44, %v76
  %v80 = vsel %vm74, %v45, %v77
  %v81 = vsel %vm74, %v46, %v78
  %82 = vst [vmem:[%s3] sm:$0x7f] %v79
  %83 = vst [vmem:[%s3 + $0x8] sm:$0x7f] %v80
  %84 = vst [vmem:[%s3 + $0x10] sm:$0x7f] %v81
  // Predicated region
  $region14: #{_lambda_.17} parent=0 // pred_check
    _
  $region15: #{_lambda_.17} parent=0 // pred_check_branch
    %86 = sbr.rel (0) target = $region17
  $region16: #{_lambda_.17} parent=0 // pred_region
    _
  $region17: #{_lambda_.17} parent=0 // pred_fallthru
    _
  // Predicated region
  $region18: #{_lambda_.17} parent=0 // pred_check
    _
  $region19: #{_lambda_.17} parent=0 // pred_check_branch
    %88 = sbr.rel (0) target = $region21
  $region20: #{_lambda_.17} parent=0 // pred_region
    _
  $region21: #{_lambda_.17} parent=0 // pred_fallthru
    _

</llo_original>
